<compile_context>
chip_gen: v7x
topology: tpu7x:2x2x1
jax: 0.10.0
libtpu: 0.0.40
codegen_flags: <defaults>
</compile_context>

<pallas_src>
import functools

import jax
import jax.numpy as jnp
from jax import lax
from jax.experimental import pallas as pl
from jax.experimental.pallas import tpu as pltpu

# Safe on every listed generation (v5e/v6e: 128 MiB physical, v7x: 64 MiB).
_VMEM_LIMIT = 48 * 1024 * 1024


def _pick_tile(n, target):
    """Largest multiple-of-8 divisor of n that is <= target (else n itself)."""
    if n <= target:
        return n
    t = target - (target % 8)
    while t >= 8:
        if n % t == 0:
            return t
        t -= 8
    return n


# -----------------------------------------------------------------------------
# In-kernel helper: 3x3 conv (pad=1, no conv bias) + folded BN + ReLU, im2col.
# No HBM padding: rows handled by two zero row-blocks (outer-dim concat), the
# W boundary by column masks on the row-major flattened view.  Weight must be
# packed as (9*Cin, Cout) in (ky, kx, cin) row order (HWIO reshape).
# -----------------------------------------------------------------------------
def _conv3x3_bn_relu(x3, w, scale, bias):
    H, W, Cin = x3.shape
    N = H * W
    zr = jnp.zeros((2, W, Cin), x3.dtype)
    xf = jnp.concatenate([zr, x3, zr], axis=0).reshape((H + 4) * W, Cin)
    xpos = lax.broadcasted_iota(jnp.int32, (N, 1), 0) % W
    not_left = xpos >= 1
    not_right = xpos <= W - 2
    pieces = []
    for ky in range(3):
        for kx in range(3):
            start = (ky + 1) * W + kx - 1          # static row offset into xf
            piece = xf[start:start + N, :]
            if kx == 0:
                piece = jnp.where(not_left, piece, 0.0)
            elif kx == 2:
                piece = jnp.where(not_right, piece, 0.0)
            pieces.append(piece)
    patch = jnp.concatenate(pieces, axis=-1).astype(jnp.bfloat16)    # (N, 9*Cin)
    y = jnp.dot(patch, w.astype(jnp.bfloat16),
                preferred_element_type=jnp.float32)                   # (N, Cout)
    return jnp.maximum(y * scale + bias, 0.0)                         # BN + ReLU


# -----------------------------------------------------------------------------
# Kernel 1 (front): fused conv5a+conv5c (concat weights, one im2col matmul)
# plus fused q/k/v 1x1 projections of feat1 (one concat matmul, then slice).
# -----------------------------------------------------------------------------
def _front_kernel(x_ref, wac_ref, sac_ref, bac_ref, wqkv_ref, bqkv_ref,
                  f1_ref, f2_ref, q_ref, k_ref, v_ref):
    H, W = x_ref.shape[1], x_ref.shape[2]
    C = f1_ref.shape[2]
    C8 = q_ref.shape[2]
    y = _conv3x3_bn_relu(x_ref[0], wac_ref[...], sac_ref[...], bac_ref[...])  # (N, 2C)
    f1 = y[:, :C]
    f2 = y[:, C:]
    f1_ref[0] = f1
    f2_ref[0] = f2.reshape(H, W, C)
    qkv = jnp.dot(f1.astype(jnp.bfloat16), wqkv_ref[...],
                  preferred_element_type=jnp.float32) + bqkv_ref[...]          # (N, 2*C8+C)
    q_ref[0] = qkv[:, :C8]
    k_ref[0] = qkv[:, C8:2 * C8]
    v_ref[0] = qkv[:, 2 * C8:]


def front_conv_qkv(x, wac, sac, bac, wqkv, bqkv):
    B, H, W, Cin = x.shape
    N = H * W
    C2 = sac.shape[1]
    C = C2 // 2
    Dqkv = wqkv.shape[1]
    C8 = (Dqkv - C) // 2
    out_shape = (
        jax.ShapeDtypeStruct((B, N, C), jnp.float32),       # feat1
        jax.ShapeDtypeStruct((B, H, W, C), jnp.float32),    # feat2
        jax.ShapeDtypeStruct((B, N, C8), jnp.float32),      # q
        jax.ShapeDtypeStruct((B, N, C8), jnp.float32),      # k
        jax.ShapeDtypeStruct((B, N, C), jnp.float32),       # v
    )
    return pl.pallas_call(
        _front_kernel,
        out_shape=out_shape,
        grid=(B,),
        in_specs=[
            pl.BlockSpec((1, H, W, Cin), lambda b: (b, 0, 0, 0)),
            pl.BlockSpec((9 * Cin, C2), lambda b: (0, 0)),
            pl.BlockSpec((1, C2), lambda b: (0, 0)),
            pl.BlockSpec((1, C2), lambda b: (0, 0)),
            pl.BlockSpec((C, Dqkv), lambda b: (0, 0)),
            pl.BlockSpec((1, Dqkv), lambda b: (0, 0)),
        ],
        out_specs=(
            pl.BlockSpec((1, N, C), lambda b: (b, 0, 0)),
            pl.BlockSpec((1, H, W, C), lambda b: (b, 0, 0, 0)),
            pl.BlockSpec((1, N, C8), lambda b: (b, 0, 0)),
            pl.BlockSpec((1, N, C8), lambda b: (b, 0, 0)),
            pl.BlockSpec((1, N, C), lambda b: (b, 0, 0)),
        ),
        compiler_params=pltpu.CompilerParams(
            dimension_semantics=("parallel",),
            vmem_limit_bytes=_VMEM_LIMIT),
    )(x, wac, sac, bac, wqkv, bqkv)


# -----------------------------------------------------------------------------
# Kernel 2: PAM (position attention), flash-style online softmax over k-tiles.
#   out_q = gamma * softmax(q @ k^T) @ v + feat1_q
# -----------------------------------------------------------------------------
def _pam_flash_kernel(q_ref, k_ref, v_ref, x_ref, gamma_ref, o_ref,
                      m_sc, l_sc, acc_sc):
    kv = pl.program_id(2)

    @pl.when(kv == 0)
    def _():
        m_sc[...] = jnp.full_like(m_sc, -jnp.inf)
        l_sc[...] = jnp.zeros_like(l_sc)
        acc_sc[...] = jnp.zeros_like(acc_sc)

    q = q_ref[0].astype(jnp.bfloat16)                                 # (TQ, C8)
    k = k_ref[0].astype(jnp.bfloat16)                                 # (TK, C8)
    s = lax.dot_general(q, k, (((1,), (1,)), ((), ())),
                        preferred_element_type=jnp.float32)           # (TQ, TK)
    m_prev = m_sc[...]
    m_new = jnp.maximum(m_prev, jnp.max(s, axis=-1, keepdims=True))
    alpha = jnp.exp(m_prev - m_new)
    p = jnp.exp(s - m_new)
    l_sc[...] = alpha * l_sc[...] + jnp.sum(p, axis=-1, keepdims=True)
    acc_sc[...] = alpha * acc_sc[...] + jnp.dot(
        p.astype(jnp.bfloat16), v_ref[0].astype(jnp.bfloat16),
        preferred_element_type=jnp.float32)
    m_sc[...] = m_new

    @pl.when(kv == pl.num_programs(2) - 1)
    def _():
        out = acc_sc[...] * pl.reciprocal(l_sc[...], approx=True)
        o_ref[0] = gamma_ref[0, 0] * out + x_ref[0]


def pam_flash(q, k, v, x, gamma):
    B, N, C8 = q.shape
    C = v.shape[2]
    TQ = _pick_tile(N, 256)
    TK = _pick_tile(N, 512)
    return pl.pallas_call(
        _pam_flash_kernel,
        out_shape=jax.ShapeDtypeStruct((B, N, C), jnp.float32),
        grid=(B, N // TQ, N // TK),
        in_specs=[
            pl.BlockSpec((1, TQ, C8), lambda b, qi, ki: (b, qi, 0)),
            pl.BlockSpec((1, TK, C8), lambda b, qi, ki: (b, ki, 0)),
            pl.BlockSpec((1, TK, C), lambda b, qi, ki: (b, ki, 0)),
            pl.BlockSpec((1, TQ, C), lambda b, qi, ki: (b, qi, 0)),
            pl.BlockSpec((1, 1), lambda b, qi, ki: (0, 0)),
        ],
        out_specs=pl.BlockSpec((1, TQ, C), lambda b, qi, ki: (b, qi, 0)),
        scratch_shapes=[
            pltpu.VMEM((TQ, 1), jnp.float32),     # running max
            pltpu.VMEM((TQ, 1), jnp.float32),     # running denom
            pltpu.VMEM((TQ, C), jnp.float32),     # running numerator
        ],
        compiler_params=pltpu.CompilerParams(
            dimension_semantics=("parallel", "parallel", "arbitrary"),
            vmem_limit_bytes=_VMEM_LIMIT),
    )(q, k, v, x, gamma)


# -----------------------------------------------------------------------------
# Kernel 3 (tail): CAM(feat2) -> conv52, conv51(sa_feat), gate by sigmoid(enc),
# 1x1 conv8 — all fused (no intermediate HBM round trips).
# -----------------------------------------------------------------------------
def _tail_kernel(sa_ref, f2_ref, enc_ref, gsc_ref,
                 w51_ref, s51_ref, b51_ref,
                 w52_ref, s52_ref, b52_ref,
                 w8_ref, b8_ref, o_ref):
    H, W, C = f2_ref.shape[1], f2_ref.shape[2], f2_ref.shape[3]
    N = H * W

    # --- CAM (channel attention) applied to feat2 ---
    f2 = f2_ref[0].reshape(N, C)
    f2b = f2.astype(jnp.bfloat16)
    energy = lax.dot_general(f2b, f2b, (((0,), (0,)), ((), ())),
                             preferred_element_type=jnp.float32)       # (C, C)
    # TODO(synk): for large N, accumulate this Gram over N row-tiles instead of
    # a single leading-axis contraction.
    e = jnp.max(energy, axis=-1, keepdims=True) - energy
    e = e - jnp.max(e, axis=-1, keepdims=True)
    p = jnp.exp(e)
    att = p / jnp.sum(p, axis=-1, keepdims=True)                       # (C, C)
    mixed = lax.dot_general(f2b, att.astype(jnp.bfloat16),
                            (((1,), (1,)), ((), ())),
                            preferred_element_type=jnp.float32)        # (N, C)
    sc_feat = gsc_ref[0, 0] * mixed + f2

    # --- conv51(sa_feat), conv52(sc_feat): 3x3 + folded BN + ReLU ---
    sa_conv = _conv3x3_bn_relu(sa_ref[0], w51_ref[...],
                               s51_ref[...], b51_ref[...])             # (N, C)
    sc_conv = _conv3x3_bn_relu(sc_feat.reshape(H, W, C), w52_ref[...],
                               s52_ref[...], b52_ref[...])             # (N, C)

    # --- gate by sigmoid(enc) and 1x1 conv8 (Dropout2d = inference identity) ---
    g = (sa_conv + sc_conv) * jax.nn.sigmoid(enc_ref[0].reshape(N, C))
    out = jnp.dot(g.astype(jnp.bfloat16), w8_ref[...],
                  preferred_element_type=jnp.float32) + b8_ref[...]
    o_ref[0] = out.reshape(H, W, out.shape[-1])


def tail_fused(sa, f2, enc, gamma_sc, w51, s51, b51, w52, s52, b52, w8, b8):
    B, H, W, C = f2.shape
    Cout = w8.shape[1]
    return pl.pallas_call(
        _tail_kernel,
        out_shape=jax.ShapeDtypeStruct((B, H, W, Cout), jnp.float32),
        grid=(B,),
        in_specs=[
            pl.BlockSpec((1, H, W, C), lambda b: (b, 0, 0, 0)),    # sa_feat
            pl.BlockSpec((1, H, W, C), lambda b: (b, 0, 0, 0)),    # feat2
            pl.BlockSpec((1, H, W, C), lambda b: (b, 0, 0, 0)),    # enc_feat
            pl.BlockSpec((1, 1), lambda b: (0, 0)),                # gamma_sc
            pl.BlockSpec((9 * C, C), lambda b: (0, 0)),            # w51 (im2col)
            pl.BlockSpec((1, C), lambda b: (0, 0)),
            pl.BlockSpec((1, C), lambda b: (0, 0)),
            pl.BlockSpec((9 * C, C), lambda b: (0, 0)),            # w52 (im2col)
            pl.BlockSpec((1, C), lambda b: (0, 0)),
            pl.BlockSpec((1, C), lambda b: (0, 0)),
            pl.BlockSpec((C, Cout), lambda b: (0, 0)),             # w8 (1x1)
            pl.BlockSpec((1, Cout), lambda b: (0, 0)),
        ],
        out_specs=pl.BlockSpec((1, H, W, Cout), lambda b: (b, 0, 0, 0)),
        compiler_params=pltpu.CompilerParams(
            dimension_semantics=("parallel",),
            vmem_limit_bytes=_VMEM_LIMIT),
    )(sa, f2, enc, gamma_sc, w51, s51, b51, w52, s52, b52, w8, b8)


# -----------------------------------------------------------------------------
# DANetHead forward (glue is plain JAX: transposes / reshapes only)
# -----------------------------------------------------------------------------
def danet_head(pp, x_nchw, enc_nchw):
    B, _, H, W = x_nchw.shape
    C = pp["s51"].shape[1]
    x = jnp.transpose(x_nchw, (0, 2, 3, 1))                           # NCHW -> NHWC
    enc = jnp.transpose(enc_nchw, (0, 2, 3, 1))

    feat1, feat2, q, k, v = front_conv_qkv(
        x, pp["wac"], pp["sac"], pp["bac"], pp["wqkv"], pp["bqkv"])
    sa_feat = pam_flash(q, k, v, feat1, pp["gamma_sa"])               # (B, N, C)
    out = tail_fused(sa_feat.reshape(B, H, W, C), feat2, enc, pp["gamma_sc"],
                     pp["w51i"], pp["s51"], pp["b51"],
                     pp["w52i"], pp["s52"], pp["b52"],
                     pp["w8"], pp["b8"])
    return jnp.transpose(out, (0, 3, 1, 2))                           # NHWC -> NCHW


# -----------------------------------------------------------------------------
# Deterministic parameter construction (shapes as in DANetHead.__init__)
# -----------------------------------------------------------------------------
def init_params(key, in_channels, inter_channels):
    C = inter_channels
    C8 = max(C // 8, 1)
    keys = iter(jax.random.split(key, 32))

    def conv_w(cin, cout):
        return 0.1 * jax.random.normal(next(keys), (3, 3, cin, cout), jnp.float32)

    def folded_bn():
        gamma = 1.0 + 0.1 * jax.random.normal(next(keys), (1, C), jnp.float32)
        beta = 0.1 * jax.random.normal(next(keys), (1, C), jnp.float32)
        mean = 0.1 * jax.random.normal(next(keys), (1, C), jnp.float32)
        var = jax.random.uniform(next(keys), (1, C), jnp.float32, 0.5, 1.5)
        scale = gamma / jnp.sqrt(var + 1e-5)
        bias = beta - mean * scale
        return scale, bias

    p = {}
    p["w5a"] = conv_w(in_channels, C); p["s5a"], p["b5a"] = folded_bn()
    p["w5c"] = conv_w(in_channels, C); p["s5c"], p["b5c"] = folded_bn()
    p["w51"] = conv_w(C, C);           p["s51"], p["b51"] = folded_bn()
    p["w52"] = conv_w(C, C);           p["s52"], p["b52"] = folded_bn()
    p["wq"] = 0.1 * jax.random.normal(next(keys), (C, C8), jnp.float32)
    p["bq"] = 0.1 * jax.random.normal(next(keys), (1, C8), jnp.float32)
    p["wk"] = 0.1 * jax.random.normal(next(keys), (C, C8), jnp.float32)
    p["bk"] = 0.1 * jax.random.normal(next(keys), (1, C8), jnp.float32)
    p["wv"] = 0.1 * jax.random.normal(next(keys), (C, C), jnp.float32)
    p["bv"] = 0.1 * jax.random.normal(next(keys), (1, C), jnp.float32)
    # torch inits gamma to 0 (identity attention); use nonzero to exercise math
    p["gamma_sa"] = jnp.full((1, 1), 0.5, jnp.float32)
    p["gamma_sc"] = jnp.full((1, 1), 0.5, jnp.float32)
    p["w8"] = 0.1 * jax.random.normal(next(keys), (C, C), jnp.float32)
    p["b8"] = 0.1 * jax.random.normal(next(keys), (1, C), jnp.float32)
    return p


def pack_params(p):
    """Fold/concat weights into the layouts the fused kernels expect."""
    C = p["s51"].shape[1]
    Cin = p["w5a"].shape[2]
    bf = jnp.bfloat16
    pp = {}
    # conv5a & conv5c concatenated along Cout, packed to im2col (9*Cin, 2C)
    pp["wac"] = jnp.concatenate([p["w5a"], p["w5c"]],
                                axis=-1).reshape(9 * Cin, 2 * C).astype(bf)
    pp["sac"] = jnp.concatenate([p["s5a"], p["s5c"]], axis=-1)
    pp["bac"] = jnp.concatenate([p["b5a"], p["b5c"]], axis=-1)
    # q/k/v 1x1 projections fused into one (C, 2*C8 + C) matmul
    pp["wqkv"] = jnp.concatenate([p["wq"], p["wk"], p["wv"]], axis=-1).astype(bf)
    pp["bqkv"] = jnp.concatenate([p["bq"], p["bk"], p["bv"]], axis=-1)
    # conv51 / conv52 packed to im2col
    pp["w51i"] = p["w51"].reshape(9 * C, C).astype(bf)
    pp["w52i"] = p["w52"].reshape(9 * C, C).astype(bf)
    pp["w8"] = p["w8"].astype(bf)
    for name in ("s51", "b51", "s52", "b52", "b8", "gamma_sa", "gamma_sc"):
        pp[name] = p[name]
    return pp


if __name__ == "__main__":
    B, Cin, Cinter, H, W = 2, 8, 32, 8, 8
    key = jax.random.PRNGKey(0)
    kp, kx, ke = jax.random.split(key, 3)
    params = init_params(kp, Cin, Cinter)
    pp = pack_params(params)
    x = jax.random.normal(kx, (B, Cin, H, W), jnp.float32)            # NCHW like torch
    enc_feat = jax.random.normal(ke, (B, Cinter, H, W), jnp.float32)

    fwd = jax.jit(functools.partial(danet_head, pp))
    out = fwd(x, enc_feat)
    jax.block_until_ready(out)
    assert out.shape == (B, Cinter, H, W) and out.dtype == jnp.float32
    assert bool(jnp.all(jnp.isfinite(out)))
    print("KERNEL_OK")
</pallas_src>

<mosaic_0001>
module attributes {stable_mosaic.version = 11 : i64} {
  func.func @_pam_flash_kernel(%arg0: i32, %arg1: i32, %arg2: i32, %arg3: memref<1x64x4xf32, #tpu.memory_space<vmem>>, %arg4: memref<1x64x4xf32, #tpu.memory_space<vmem>>, %arg5: memref<1x64x32xf32, #tpu.memory_space<vmem>>, %arg6: memref<1x64x32xf32, #tpu.memory_space<vmem>>, %arg7: memref<1x1xf32, #tpu.memory_space<vmem>>, %arg8: memref<1x64x32xf32, #tpu.memory_space<vmem>>, %arg9: memref<64x1xf32, #tpu.memory_space<vmem>>, %arg10: memref<64x1xf32, #tpu.memory_space<vmem>>, %arg11: memref<64x32xf32, #tpu.memory_space<vmem>>) attributes {dimension_semantics = [#tpu.dimension_semantics<parallel>, #tpu.dimension_semantics<parallel>, #tpu.dimension_semantics<arbitrary>], iteration_bounds = array<i64: 2, 1, 1>, scalar_prefetch = 0 : i64, scratch_operands = 3 : i64, tpu.core_type = #tpu.core_type<tc>, window_params = [{transform_indices = @transform_0, window_bounds = array<i64: 1, 64, 4>}, {transform_indices = @transform_1, window_bounds = array<i64: 1, 64, 4>}, {transform_indices = @transform_2, window_bounds = array<i64: 1, 64, 32>}, {transform_indices = @transform_3, window_bounds = array<i64: 1, 64, 32>}, {pipeline_mode = #tpu.pipeline_mode<synchronous>, transform_indices = @transform_4, window_bounds = array<i64: 1, 1>}, {transform_indices = @transform_5, window_bounds = array<i64: 1, 64, 32>}]} {
    %c0_i32 = arith.constant 0 : i32
    %0 = arith.cmpi eq, %arg2, %c0_i32 : i32
    %1 = arith.extui %0 : i1 to i32
    %c0_i32_0 = arith.constant 0 : i32
    %2 = arith.cmpi ne, %1, %c0_i32_0 : i32
    scf.if %2 {
      %cst_26 = arith.constant 0xFF800000 : f32
      %39 = vector.broadcast %cst_26 : f32 to vector<64x1xf32>
      %c0_27 = arith.constant 0 : index
      %c0_28 = arith.constant 0 : index
      %40 = vector.load %arg9[%c0_27, %c0_28] : memref<64x1xf32, #tpu.memory_space<vmem>>, vector<64x1xf32>
      tpu.vector_store %arg9[%c0_27, %c0_28], %39 {strides = array<i32>} : memref<64x1xf32, #tpu.memory_space<vmem>>, vector<64x1xf32>,
      %cst_29 = arith.constant 0.000000e+00 : f32
      %41 = vector.broadcast %cst_29 : f32 to vector<64x1xf32>
      %c0_30 = arith.constant 0 : index
      %c0_31 = arith.constant 0 : index
      %42 = vector.load %arg10[%c0_30, %c0_31] : memref<64x1xf32, #tpu.memory_space<vmem>>, vector<64x1xf32>
      tpu.vector_store %arg10[%c0_30, %c0_31], %41 {strides = array<i32>} : memref<64x1xf32, #tpu.memory_space<vmem>>, vector<64x1xf32>,
      %cst_32 = arith.constant 0.000000e+00 : f32
      %43 = vector.broadcast %cst_32 : f32 to vector<64x32xf32>
      %c0_33 = arith.constant 0 : index
      %c0_34 = arith.constant 0 : index
      %44 = vector.load %arg11[%c0_33, %c0_34] : memref<64x32xf32, #tpu.memory_space<vmem>>, vector<64x32xf32>
      tpu.vector_store %arg11[%c0_33, %c0_34], %43 {strides = array<i32>} : memref<64x32xf32, #tpu.memory_space<vmem>>, vector<64x32xf32>,
    } else {
    }
    %c0 = arith.constant 0 : index
    %c0_1 = arith.constant 0 : index
    %c0_2 = arith.constant 0 : index
    %3 = vector.load %arg3[%c0, %c0_1, %c0_2] : memref<1x64x4xf32, #tpu.memory_space<vmem>>, vector<1x64x4xf32>
    %4 = vector.shape_cast %3 : vector<1x64x4xf32> to vector<64x4xf32>
    %5 = arith.truncf %4 : vector<64x4xf32> to vector<64x4xbf16>
    %c0_3 = arith.constant 0 : index
    %c0_4 = arith.constant 0 : index
    %c0_5 = arith.constant 0 : index
    %6 = vector.load %arg4[%c0_3, %c0_4, %c0_5] : memref<1x64x4xf32, #tpu.memory_space<vmem>>, vector<1x64x4xf32>
    %7 = vector.shape_cast %6 : vector<1x64x4xf32> to vector<64x4xf32>
    %8 = arith.truncf %7 : vector<64x4xf32> to vector<64x4xbf16>
    %cst = arith.constant dense<0.000000e+00> : vector<64x64xf32>
    %9 = tpu.matmul %5, %8, %cst {dimension_numbers = #tpu.dot_dimension_numbers<[1], [1], [0], [0], [0, 0, 1, 0], [], []>} : vector<64x4xbf16>, vector<64x4xbf16>, vector<64x64xf32> -> vector<64x64xf32>
    %c0_6 = arith.constant 0 : index
    %c0_7 = arith.constant 0 : index
    %10 = vector.load %arg9[%c0_6, %c0_7] : memref<64x1xf32, #tpu.memory_space<vmem>>, vector<64x1xf32>
    %cst_8 = arith.constant dense<0xFF800000> : vector<64xf32>
    %11 = vector.multi_reduction <maximumf>, %9, %cst_8 [1] : vector<64x64xf32> to vector<64xf32>
    %12 = vector.shape_cast %11 : vector<64xf32> to vector<64x1xf32>
    %13 = arith.maximumf %10, %12 : vector<64x1xf32>
    %14 = arith.subf %10, %13 : vector<64x1xf32>
    %15 = math.exp %14 : vector<64x1xf32>
    %16 = vector.broadcast %13 : vector<64x1xf32> to vector<64x64xf32>
    %17 = arith.subf %9, %16 : vector<64x64xf32>
    %18 = math.exp %17 : vector<64x64xf32>
    %c0_9 = arith.constant 0 : index
    %c0_10 = arith.constant 0 : index
    %19 = vector.load %arg10[%c0_9, %c0_10] : memref<64x1xf32, #tpu.memory_space<vmem>>, vector<64x1xf32>
    %20 = arith.mulf %15, %19 : vector<64x1xf32>
    %cst_11 = arith.constant dense<0.000000e+00> : vector<64xf32>
    %21 = vector.multi_reduction <add>, %18, %cst_11 [1] : vector<64x64xf32> to vector<64xf32>
    %22 = vector.shape_cast %21 : vector<64xf32> to vector<64x1xf32>
    %23 = arith.addf %20, %22 : vector<64x1xf32>
    %c0_12 = arith.constant 0 : index
    %c0_13 = arith.constant 0 : index
    %24 = vector.load %arg10[%c0_12, %c0_13] : memref<64x1xf32, #tpu.memory_space<vmem>>, vector<64x1xf32>
    tpu.vector_store %arg10[%c0_12, %c0_13], %23 {strides = array<i32>} : memref<64x1xf32, #tpu.memory_space<vmem>>, vector<64x1xf32>,
    %c0_14 = arith.constant 0 : index
    %c0_15 = arith.constant 0 : index
    %25 = vector.load %arg11[%c0_14, %c0_15] : memref<64x32xf32, #tpu.memory_space<vmem>>, vector<64x32xf32>
    %26 = vector.broadcast %15 : vector<64x1xf32> to vector<64x32xf32>
    %27 = arith.mulf %26, %25 : vector<64x32xf32>
    %28 = arith.truncf %18 : vector<64x64xf32> to vector<64x64xbf16>
    %c0_16 = arith.constant 0 : index
    %c0_17 = arith.constant 0 : index
    %c0_18 = arith.constant 0 : index
    %29 = vector.load %arg5[%c0_16, %c0_17, %c0_18] : memref<1x64x32xf32, #tpu.memory_space<vmem>>, vector<1x64x32xf32>
    %30 = vector.shape_cast %29 : vector<1x64x32xf32> to vector<64x32xf32>
    %31 = arith.truncf %30 : vector<64x32xf32> to vector<64x32xbf16>
    %cst_19 = arith.constant dense<0.000000e+00> : vector<64x32xf32>
    %32 = tpu.matmul %28, %31, %cst_19 {dimension_numbers = #tpu.dot_dimension_numbers<[1], [0], [0], [1], [0, 0, 1, 1], [], []>} : vector<64x64xbf16>, vector<64x32xbf16>, vector<64x32xf32> -> vector<64x32xf32>
    %33 = arith.addf %27, %32 : vector<64x32xf32>
    %c0_20 = arith.constant 0 : index
    %c0_21 = arith.constant 0 : index
    %34 = vector.load %arg11[%c0_20, %c0_21] : memref<64x32xf32, #tpu.memory_space<vmem>>, vector<64x32xf32>
    tpu.vector_store %arg11[%c0_20, %c0_21], %33 {strides = array<i32>} : memref<64x32xf32, #tpu.memory_space<vmem>>, vector<64x32xf32>,
    %c0_22 = arith.constant 0 : index
    %c0_23 = arith.constant 0 : index
    %35 = vector.load %arg9[%c0_22, %c0_23] : memref<64x1xf32, #tpu.memory_space<vmem>>, vector<64x1xf32>
    tpu.vector_store %arg9[%c0_22, %c0_23], %13 {strides = array<i32>} : memref<64x1xf32, #tpu.memory_space<vmem>>, vector<64x1xf32>,
    %c0_i32_24 = arith.constant 0 : i32
    %36 = arith.cmpi eq, %arg2, %c0_i32_24 : i32
    %37 = arith.extui %36 : i1 to i32
    %c0_i32_25 = arith.constant 0 : i32
    %38 = arith.cmpi ne, %37, %c0_i32_25 : i32
    scf.if %38 {
      %c0_26 = arith.constant 0 : index
      %c0_27 = arith.constant 0 : index
      %39 = vector.load %arg11[%c0_26, %c0_27] : memref<64x32xf32, #tpu.memory_space<vmem>>, vector<64x32xf32>
      %c0_28 = arith.constant 0 : index
      %c0_29 = arith.constant 0 : index
      %40 = vector.load %arg10[%c0_28, %c0_29] : memref<64x1xf32, #tpu.memory_space<vmem>>, vector<64x1xf32>
      %41 = tpu.reciprocal %40 {approx = true} : vector<64x1xf32> -> vector<64x1xf32>
      %42 = vector.broadcast %41 : vector<64x1xf32> to vector<64x32xf32>
      %43 = arith.mulf %39, %42 : vector<64x32xf32>
      %c0_30 = arith.constant 0 : index
      %c0_31 = arith.constant 0 : index
      %44 = vector.load %arg7[%c0_30, %c0_31] : memref<1x1xf32, #tpu.memory_space<vmem>>, vector<1x1xf32>
      %45 = vector.extract %44[0, 0] : f32 from vector<1x1xf32>
      %46 = vector.broadcast %45 : f32 to vector<64x32xf32>
      %47 = arith.mulf %46, %43 : vector<64x32xf32>
      %c0_32 = arith.constant 0 : index
      %c0_33 = arith.constant 0 : index
      %c0_34 = arith.constant 0 : index
      %48 = vector.load %arg6[%c0_32, %c0_33, %c0_34] : memref<1x64x32xf32, #tpu.memory_space<vmem>>, vector<1x64x32xf32>
      %49 = vector.shape_cast %48 : vector<1x64x32xf32> to vector<64x32xf32>
      %50 = arith.addf %47, %49 : vector<64x32xf32>
      %c0_35 = arith.constant 0 : index
      %c0_36 = arith.constant 0 : index
      %c0_37 = arith.constant 0 : index
      %51 = vector.load %arg8[%c0_35, %c0_36, %c0_37] : memref<1x64x32xf32, #tpu.memory_space<vmem>>, vector<1x64x32xf32>
      %52 = vector.shape_cast %51 : vector<1x64x32xf32> to vector<64x32xf32>
      %53 = vector.shape_cast %50 : vector<64x32xf32> to vector<1x64x32xf32>
      tpu.vector_store %arg8[%c0_35, %c0_36, %c0_37], %53 {strides = array<i32>} : memref<1x64x32xf32, #tpu.memory_space<vmem>>, vector<1x64x32xf32>,
    } else {
    }
    return
  }
  func.func @transform_0(%arg0: i32, %arg1: i32, %arg2: i32) -> (i32, i32, i32) {
    %c0_i32 = arith.constant 0 : i32
    %c0_i32_0 = arith.constant 0 : i32
    return %arg0, %arg1, %c0_i32 : i32, i32, i32
  }
  func.func @transform_1(%arg0: i32, %arg1: i32, %arg2: i32) -> (i32, i32, i32) {
    %c0_i32 = arith.constant 0 : i32
    %c0_i32_0 = arith.constant 0 : i32
    return %arg0, %arg2, %c0_i32 : i32, i32, i32
  }
  func.func @transform_2(%arg0: i32, %arg1: i32, %arg2: i32) -> (i32, i32, i32) {
    %c0_i32 = arith.constant 0 : i32
    %c0_i32_0 = arith.constant 0 : i32
    return %arg0, %arg2, %c0_i32 : i32, i32, i32
  }
  func.func @transform_3(%arg0: i32, %arg1: i32, %arg2: i32) -> (i32, i32, i32) {
    %c0_i32 = arith.constant 0 : i32
    %c0_i32_0 = arith.constant 0 : i32
    return %arg0, %arg1, %c0_i32 : i32, i32, i32
  }
  func.func @transform_4(%arg0: i32, %arg1: i32, %arg2: i32) -> (i32, i32) {
    %c0_i32 = arith.constant 0 : i32
    %c0_i32_0 = arith.constant 0 : i32
    %c0_i32_1 = arith.constant 0 : i32
    return %c0_i32, %c0_i32_0 : i32, i32
  }
  func.func @transform_5(%arg0: i32, %arg1: i32, %arg2: i32) -> (i32, i32, i32) {
    %c0_i32 = arith.constant 0 : i32
    %c0_i32_0 = arith.constant 0 : i32
    return %arg0, %arg1, %c0_i32 : i32, i32, i32
  }
}

module attributes {stable_mosaic.version = 11 : i64} {
  func.func @_tail_kernel(%arg0: i32, %arg1: memref<1x8x8x32xf32, #tpu.memory_space<vmem>>, %arg2: memref<1x8x8x32xf32, #tpu.memory_space<vmem>>, %arg3: memref<1x8x8x32xf32, #tpu.memory_space<vmem>>, %arg4: memref<1x1xf32, #tpu.memory_space<vmem>>, %arg5: memref<288x32xbf16, #tpu.memory_space<vmem>>, %arg6: memref<1x32xf32, #tpu.memory_space<vmem>>, %arg7: memref<1x32xf32, #tpu.memory_space<vmem>>, %arg8: memref<288x32xbf16, #tpu.memory_space<vmem>>, %arg9: memref<1x32xf32, #tpu.memory_space<vmem>>, %arg10: memref<1x32xf32, #tpu.memory_space<vmem>>, %arg11: memref<32x32xbf16, #tpu.memory_space<vmem>>, %arg12: memref<1x32xf32, #tpu.memory_space<vmem>>, %arg13: memref<1x8x8x32xf32, #tpu.memory_space<vmem>>) attributes {dimension_semantics = [#tpu.dimension_semantics<parallel>], iteration_bounds = array<i64: 2>, scalar_prefetch = 0 : i64, scratch_operands = 0 : i64, tpu.core_type = #tpu.core_type<tc>, window_params = [{transform_indices = @transform_0, window_bounds = array<i64: 1, 8, 8, 32>}, {transform_indices = @transform_1, window_bounds = array<i64: 1, 8, 8, 32>}, {transform_indices = @transform_2, window_bounds = array<i64: 1, 8, 8, 32>}, {pipeline_mode = #tpu.pipeline_mode<synchronous>, transform_indices = @transform_3, window_bounds = array<i64: 1, 1>}, {pipeline_mode = #tpu.pipeline_mode<synchronous>, transform_indices = @transform_4, window_bounds = array<i64: 288, 32>}, {pipeline_mode = #tpu.pipeline_mode<synchronous>, transform_indices = @transform_5, window_bounds = array<i64: 1, 32>}, {pipeline_mode = #tpu.pipeline_mode<synchronous>, transform_indices = @transform_6, window_bounds = array<i64: 1, 32>}, {pipeline_mode = #tpu.pipeline_mode<synchronous>, transform_indices = @transform_7, window_bounds = array<i64: 288, 32>}, {pipeline_mode = #tpu.pipeline_mode<synchronous>, transform_indices = @transform_8, window_bounds = array<i64: 1, 32>}, {pipeline_mode = #tpu.pipeline_mode<synchronous>, transform_indices = @transform_9, window_bounds = array<i64: 1, 32>}, {pipeline_mode = #tpu.pipeline_mode<synchronous>, transform_indices = @transform_10, window_bounds = array<i64: 32, 32>}, {pipeline_mode = #tpu.pipeline_mode<synchronous>, transform_indices = @transform_11, window_bounds = array<i64: 1, 32>}, {transform_indices = @transform_12, window_bounds = array<i64: 1, 8, 8, 32>}]} {
    %c0 = arith.constant 0 : index
    %c0_0 = arith.constant 0 : index
    %c0_1 = arith.constant 0 : index
    %c0_2 = arith.constant 0 : index
    %0 = vector.load %arg2[%c0, %c0_0, %c0_1, %c0_2] : memref<1x8x8x32xf32, #tpu.memory_space<vmem>>, vector<1x8x8x32xf32>
    %1 = vector.shape_cast %0 : vector<1x8x8x32xf32> to vector<8x8x32xf32>
    %2 = vector.shape_cast %1 : vector<8x8x32xf32> to vector<64x32xf32>
    %3 = arith.truncf %2 : vector<64x32xf32> to vector<64x32xbf16>
    %cst = arith.constant dense<0.000000e+00> : vector<32x32xf32>
    %4 = tpu.matmul %3, %3, %cst {dimension_numbers = #tpu.dot_dimension_numbers<[0], [0], [1], [1], [0, 1, 1, 1], [], []>} : vector<64x32xbf16>, vector<64x32xbf16>, vector<32x32xf32> -> vector<32x32xf32>
    %cst_3 = arith.constant dense<0xFF800000> : vector<32xf32>
    %5 = vector.multi_reduction <maximumf>, %4, %cst_3 [1] : vector<32x32xf32> to vector<32xf32>
    %6 = vector.shape_cast %5 : vector<32xf32> to vector<32x1xf32>
    %7 = vector.broadcast %6 : vector<32x1xf32> to vector<32x32xf32>
    %8 = arith.subf %7, %4 : vector<32x32xf32>
    %cst_4 = arith.constant dense<0xFF800000> : vector<32xf32>
    %9 = vector.multi_reduction <maximumf>, %8, %cst_4 [1] : vector<32x32xf32> to vector<32xf32>
    %10 = vector.shape_cast %9 : vector<32xf32> to vector<32x1xf32>
    %11 = vector.broadcast %10 : vector<32x1xf32> to vector<32x32xf32>
    %12 = arith.subf %8, %11 : vector<32x32xf32>
    %13 = math.exp %12 : vector<32x32xf32>
    %cst_5 = arith.constant dense<0.000000e+00> : vector<32xf32>
    %14 = vector.multi_reduction <add>, %13, %cst_5 [1] : vector<32x32xf32> to vector<32xf32>
    %15 = vector.shape_cast %14 : vector<32xf32> to vector<32x1xf32>
    %16 = vector.broadcast %15 : vector<32x1xf32> to vector<32x32xf32>
    %17 = arith.divf %13, %16 : vector<32x32xf32>
    %18 = arith.truncf %17 : vector<32x32xf32> to vector<32x32xbf16>
    %cst_6 = arith.constant dense<0.000000e+00> : vector<64x32xf32>
    %19 = tpu.matmul %3, %18, %cst_6 {dimension_numbers = #tpu.dot_dimension_numbers<[1], [1], [0], [0], [0, 0, 1, 0], [], []>} : vector<64x32xbf16>, vector<32x32xbf16>, vector<64x32xf32> -> vector<64x32xf32>
    %c0_7 = arith.constant 0 : index
    %c0_8 = arith.constant 0 : index
    %20 = vector.load %arg4[%c0_7, %c0_8] : memref<1x1xf32, #tpu.memory_space<vmem>>, vector<1x1xf32>
    %21 = vector.extract %20[0, 0] : f32 from vector<1x1xf32>
    %22 = vector.broadcast %21 : f32 to vector<64x32xf32>
    %23 = arith.mulf %22, %19 : vector<64x32xf32>
    %24 = arith.addf %23, %2 : vector<64x32xf32>
    %c0_9 = arith.constant 0 : index
    %c0_10 = arith.constant 0 : index
    %c0_11 = arith.constant 0 : index
    %c0_12 = arith.constant 0 : index
    %25 = vector.load %arg1[%c0_9, %c0_10, %c0_11, %c0_12] : memref<1x8x8x32xf32, #tpu.memory_space<vmem>>, vector<1x8x8x32xf32>
    %26 = vector.shape_cast %25 : vector<1x8x8x32xf32> to vector<8x8x32xf32>
    %c0_13 = arith.constant 0 : index
    %c0_14 = arith.constant 0 : index
    %27 = vector.load %arg5[%c0_13, %c0_14] : memref<288x32xbf16, #tpu.memory_space<vmem>>, vector<288x32xbf16>
    %c0_15 = arith.constant 0 : index
    %c0_16 = arith.constant 0 : index
    %28 = vector.load %arg6[%c0_15, %c0_16] : memref<1x32xf32, #tpu.memory_space<vmem>>, vector<1x32xf32>
    %c0_17 = arith.constant 0 : index
    %c0_18 = arith.constant 0 : index
    %29 = vector.load %arg7[%c0_17, %c0_18] : memref<1x32xf32, #tpu.memory_space<vmem>>, vector<1x32xf32>
    %cst_19 = arith.constant 0.000000e+00 : f32
    %30 = vector.broadcast %cst_19 : f32 to vector<2x8x32xf32>
    %31 = tpu.concatenate %30, %26, %30 in 0 : vector<2x8x32xf32>, vector<8x8x32xf32>, vector<2x8x32xf32> -> vector<12x8x32xf32>
    %32 = vector.shape_cast %31 : vector<12x8x32xf32> to vector<96x32xf32>
    %33 = tpu.iota {dimensions = array<i32: 0>} : vector<64x1xi32>
    %c8_i32 = arith.constant 8 : i32
    %c0_i32 = arith.constant 0 : i32
    %34 = arith.cmpi eq, %c8_i32, %c0_i32 : i32
    %c1_i32 = arith.constant 1 : i32
    %35 = arith.select %34, %c1_i32, %c8_i32 : i32
    %36 = vector.broadcast %35 : i32 to vector<64x1xi32>
    %37 = arith.remsi %33, %36 : vector<64x1xi32>
    %c0_i32_20 = arith.constant 0 : i32
    %38 = vector.broadcast %c0_i32_20 : i32 to vector<64x1xi32>
    %39 = arith.cmpi ne, %37, %38 : vector<64x1xi32>
    %c0_i32_21 = arith.constant 0 : i32
    %40 = vector.broadcast %c0_i32_21 : i32 to vector<64x1xi32>
    %41 = arith.cmpi slt, %37, %40 : vector<64x1xi32>
    %c0_i32_22 = arith.constant 0 : i32
    %42 = arith.cmpi slt, %35, %c0_i32_22 : i32
    %43 = vector.broadcast %42 : i1 to vector<64x1xi1>
    %44 = vector.broadcast %43 : vector<64x1xi1> to vector<64x1xi1>
    %45 = arith.xori %41, %44 : vector<64x1xi1>
    %46 = arith.andi %45, %39 : vector<64x1xi1>
    %47 = vector.broadcast %35 : i32 to vector<64x1xi32>
    %48 = arith.addi %37, %47 : vector<64x1xi32>
    %49 = arith.select %46, %48, %37 : vector<64x1xi1>, vector<64x1xi32>
    %c1_i32_23 = arith.constant 1 : i32
    %50 = vector.broadcast %c1_i32_23 : i32 to vector<64x1xi32>
    %51 = arith.cmpi sge, %49, %50 : vector<64x1xi32>
    %c6_i32 = arith.constant 6 : i32
    %52 = vector.broadcast %c6_i32 : i32 to vector<64x1xi32>
    %53 = arith.cmpi sle, %49, %52 : vector<64x1xi32>
    %54 = vector.extract_strided_slice %32 {offsets = [7, 0], sizes = [64, 32], strides = [1, 1]} : vector<96x32xf32> to vector<64x32xf32>
    %cst_24 = arith.constant 0.000000e+00 : f32
    %55 = vector.shape_cast %51 : vector<64x1xi1> to vector<64x1xi1>
    %56 = vector.broadcast %55 : vector<64x1xi1> to vector<64x32xi1>
    %57 = vector.broadcast %cst_24 : f32 to vector<64x32xf32>
    %58 = arith.select %56, %54, %57 : vector<64x32xi1>, vector<64x32xf32>
    %59 = vector.extract_strided_slice %32 {offsets = [8, 0], sizes = [64, 32], strides = [1, 1]} : vector<96x32xf32> to vector<64x32xf32>
    %60 = vector.extract_strided_slice %32 {offsets = [9, 0], sizes = [64, 32], strides = [1, 1]} : vector<96x32xf32> to vector<64x32xf32>
    %cst_25 = arith.constant 0.000000e+00 : f32
    %61 = vector.shape_cast %53 : vector<64x1xi1> to vector<64x1xi1>
    %62 = vector.broadcast %61 : vector<64x1xi1> to vector<64x32xi1>
    %63 = vector.broadcast %cst_25 : f32 to vector<64x32xf32>
    %64 = arith.select %62, %60, %63 : vector<64x32xi1>, vector<64x32xf32>
    %65 = vector.extract_strided_slice %32 {offsets = [15, 0], sizes = [64, 32], strides = [1, 1]} : vector<96x32xf32> to vector<64x32xf32>
    %cst_26 = arith.constant 0.000000e+00 : f32
    %66 = vector.shape_cast %51 : vector<64x1xi1> to vector<64x1xi1>
    %67 = vector.broadcast %66 : vector<64x1xi1> to vector<64x32xi1>
    %68 = vector.broadcast %cst_26 : f32 to vector<64x32xf32>
    %69 = arith.select %67, %65, %68 : vector<64x32xi1>, vector<64x32xf32>
    %70 = vector.extract_strided_slice %32 {offsets = [16, 0], sizes = [64, 32], strides = [1, 1]} : vector<96x32xf32> to vector<64x32xf32>
    %71 = vector.extract_strided_slice %32 {offsets = [17, 0], sizes = [64, 32], strides = [1, 1]} : vector<96x32xf32> to vector<64x32xf32>
    %cst_27 = arith.constant 0.000000e+00 : f32
    %72 = vector.shape_cast %53 : vector<64x1xi1> to vector<64x1xi1>
    %73 = vector.broadcast %72 : vector<64x1xi1> to vector<64x32xi1>
    %74 = vector.broadcast %cst_27 : f32 to vector<64x32xf32>
    %75 = arith.select %73, %71, %74 : vector<64x32xi1>, vector<64x32xf32>
    %76 = vector.extract_strided_slice %32 {offsets = [23, 0], sizes = [64, 32], strides = [1, 1]} : vector<96x32xf32> to vector<64x32xf32>
    %cst_28 = arith.constant 0.000000e+00 : f32
    %77 = vector.shape_cast %51 : vector<64x1xi1> to vector<64x1xi1>
    %78 = vector.broadcast %77 : vector<64x1xi1> to vector<64x32xi1>
    %79 = vector.broadcast %cst_28 : f32 to vector<64x32xf32>
    %80 = arith.select %78, %76, %79 : vector<64x32xi1>, vector<64x32xf32>
    %81 = vector.extract_strided_slice %32 {offsets = [24, 0], sizes = [64, 32], strides = [1, 1]} : vector<96x32xf32> to vector<64x32xf32>
    %82 = vector.extract_strided_slice %32 {offsets = [25, 0], sizes = [64, 32], strides = [1, 1]} : vector<96x32xf32> to vector<64x32xf32>
    %cst_29 = arith.constant 0.000000e+00 : f32
    %83 = vector.shape_cast %53 : vector<64x1xi1> to vector<64x1xi1>
    %84 = vector.broadcast %83 : vector<64x1xi1> to vector<64x32xi1>
    %85 = vector.broadcast %cst_29 : f32 to vector<64x32xf32>
    %86 = arith.select %84, %82, %85 : vector<64x32xi1>, vector<64x32xf32>
    %87 = tpu.concatenate %58, %59, %64, %69, %70, %75, %80, %81, %86 in 1 : vector<64x32xf32>, vector<64x32xf32>, vector<64x32xf32>, vector<64x32xf32>, vector<64x32xf32>, vector<64x32xf32>, vector<64x32xf32>, vector<64x32xf32>, vector<64x32xf32> -> vector<64x288xf32>
    %88 = arith.truncf %87 : vector<64x288xf32> to vector<64x288xbf16>
    %cst_30 = arith.constant dense<0.000000e+00> : vector<64x32xf32>
    %89 = tpu.matmul %88, %27, %cst_30 {dimension_numbers = #tpu.dot_dimension_numbers<[1], [0], [0], [1], [0, 0, 1, 1], [], []>} : vector<64x288xbf16>, vector<288x32xbf16>, vector<64x32xf32> -> vector<64x32xf32>
    %90 = vector.broadcast %28 : vector<1x32xf32> to vector<64x32xf32>
    %91 = arith.mulf %89, %90 : vector<64x32xf32>
    %92 = vector.broadcast %29 : vector<1x32xf32> to vector<64x32xf32>
    %93 = arith.addf %91, %92 : vector<64x32xf32>
    %cst_31 = arith.constant 0.000000e+00 : f32
    %94 = vector.broadcast %cst_31 : f32 to vector<64x32xf32>
    %95 = arith.maximumf %93, %94 : vector<64x32xf32>
    %96 = vector.shape_cast %24 : vector<64x32xf32> to vector<8x8x32xf32>
    %c0_32 = arith.constant 0 : index
    %c0_33 = arith.constant 0 : index
    %97 = vector.load %arg8[%c0_32, %c0_33] : memref<288x32xbf16, #tpu.memory_space<vmem>>, vector<288x32xbf16>
    %c0_34 = arith.constant 0 : index
    %c0_35 = arith.constant 0 : index
    %98 = vector.load %arg9[%c0_34, %c0_35] : memref<1x32xf32, #tpu.memory_space<vmem>>, vector<1x32xf32>
    %c0_36 = arith.constant 0 : index
    %c0_37 = arith.constant 0 : index
    %99 = vector.load %arg10[%c0_36, %c0_37] : memref<1x32xf32, #tpu.memory_space<vmem>>, vector<1x32xf32>
    %cst_38 = arith.constant 0.000000e+00 : f32
    %100 = vector.broadcast %cst_38 : f32 to vector<2x8x32xf32>
    %101 = tpu.concatenate %100, %96, %100 in 0 : vector<2x8x32xf32>, vector<8x8x32xf32>, vector<2x8x32xf32> -> vector<12x8x32xf32>
    %102 = vector.shape_cast %101 : vector<12x8x32xf32> to vector<96x32xf32>
    %103 = tpu.iota {dimensions = array<i32: 0>} : vector<64x1xi32>
    %c8_i32_39 = arith.constant 8 : i32
    %c0_i32_40 = arith.constant 0 : i32
    %104 = arith.cmpi eq, %c8_i32_39, %c0_i32_40 : i32
    %c1_i32_41 = arith.constant 1 : i32
    %105 = arith.select %104, %c1_i32_41, %c8_i32_39 : i32
    %106 = vector.broadcast %105 : i32 to vector<64x1xi32>
    %107 = arith.remsi %103, %106 : vector<64x1xi32>
    %c0_i32_42 = arith.constant 0 : i32
    %108 = vector.broadcast %c0_i32_42 : i32 to vector<64x1xi32>
    %109 = arith.cmpi ne, %107, %108 : vector<64x1xi32>
    %c0_i32_43 = arith.constant 0 : i32
    %110 = vector.broadcast %c0_i32_43 : i32 to vector<64x1xi32>
    %111 = arith.cmpi slt, %107, %110 : vector<64x1xi32>
    %c0_i32_44 = arith.constant 0 : i32
    %112 = arith.cmpi slt, %105, %c0_i32_44 : i32
    %113 = vector.broadcast %112 : i1 to vector<64x1xi1>
    %114 = vector.broadcast %113 : vector<64x1xi1> to vector<64x1xi1>
    %115 = arith.xori %111, %114 : vector<64x1xi1>
    %116 = arith.andi %115, %109 : vector<64x1xi1>
    %117 = vector.broadcast %105 : i32 to vector<64x1xi32>
    %118 = arith.addi %107, %117 : vector<64x1xi32>
    %119 = arith.select %116, %118, %107 : vector<64x1xi1>, vector<64x1xi32>
    %c1_i32_45 = arith.constant 1 : i32
    %120 = vector.broadcast %c1_i32_45 : i32 to vector<64x1xi32>
    %121 = arith.cmpi sge, %119, %120 : vector<64x1xi32>
    %c6_i32_46 = arith.constant 6 : i32
    %122 = vector.broadcast %c6_i32_46 : i32 to vector<64x1xi32>
    %123 = arith.cmpi sle, %119, %122 : vector<64x1xi32>
    %124 = vector.extract_strided_slice %102 {offsets = [7, 0], sizes = [64, 32], strides = [1, 1]} : vector<96x32xf32> to vector<64x32xf32>
    %cst_47 = arith.constant 0.000000e+00 : f32
    %125 = vector.shape_cast %121 : vector<64x1xi1> to vector<64x1xi1>
    %126 = vector.broadcast %125 : vector<64x1xi1> to vector<64x32xi1>
    %127 = vector.broadcast %cst_47 : f32 to vector<64x32xf32>
    %128 = arith.select %126, %124, %127 : vector<64x32xi1>, vector<64x32xf32>
    %129 = vector.extract_strided_slice %102 {offsets = [8, 0], sizes = [64, 32], strides = [1, 1]} : vector<96x32xf32> to vector<64x32xf32>
    %130 = vector.extract_strided_slice %102 {offsets = [9, 0], sizes = [64, 32], strides = [1, 1]} : vector<96x32xf32> to vector<64x32xf32>
    %cst_48 = arith.constant 0.000000e+00 : f32
    %131 = vector.shape_cast %123 : vector<64x1xi1> to vector<64x1xi1>
    %132 = vector.broadcast %131 : vector<64x1xi1> to vector<64x32xi1>
    %133 = vector.broadcast %cst_48 : f32 to vector<64x32xf32>
    %134 = arith.select %132, %130, %133 : vector<64x32xi1>, vector<64x32xf32>
    %135 = vector.extract_strided_slice %102 {offsets = [15, 0], sizes = [64, 32], strides = [1, 1]} : vector<96x32xf32> to vector<64x32xf32>
    %cst_49 = arith.constant 0.000000e+00 : f32
    %136 = vector.shape_cast %121 : vector<64x1xi1> to vector<64x1xi1>
    %137 = vector.broadcast %136 : vector<64x1xi1> to vector<64x32xi1>
    %138 = vector.broadcast %cst_49 : f32 to vector<64x32xf32>
    %139 = arith.select %137, %135, %138 : vector<64x32xi1>, vector<64x32xf32>
    %140 = vector.extract_strided_slice %102 {offsets = [16, 0], sizes = [64, 32], strides = [1, 1]} : vector<96x32xf32> to vector<64x32xf32>
    %141 = vector.extract_strided_slice %102 {offsets = [17, 0], sizes = [64, 32], strides = [1, 1]} : vector<96x32xf32> to vector<64x32xf32>
    %cst_50 = arith.constant 0.000000e+00 : f32
    %142 = vector.shape_cast %123 : vector<64x1xi1> to vector<64x1xi1>
    %143 = vector.broadcast %142 : vector<64x1xi1> to vector<64x32xi1>
    %144 = vector.broadcast %cst_50 : f32 to vector<64x32xf32>
    %145 = arith.select %143, %141, %144 : vector<64x32xi1>, vector<64x32xf32>
    %146 = vector.extract_strided_slice %102 {offsets = [23, 0], sizes = [64, 32], strides = [1, 1]} : vector<96x32xf32> to vector<64x32xf32>
    %cst_51 = arith.constant 0.000000e+00 : f32
    %147 = vector.shape_cast %121 : vector<64x1xi1> to vector<64x1xi1>
    %148 = vector.broadcast %147 : vector<64x1xi1> to vector<64x32xi1>
    %149 = vector.broadcast %cst_51 : f32 to vector<64x32xf32>
    %150 = arith.select %148, %146, %149 : vector<64x32xi1>, vector<64x32xf32>
    %151 = vector.extract_strided_slice %102 {offsets = [24, 0], sizes = [64, 32], strides = [1, 1]} : vector<96x32xf32> to vector<64x32xf32>
    %152 = vector.extract_strided_slice %102 {offsets = [25, 0], sizes = [64, 32], strides = [1, 1]} : vector<96x32xf32> to vector<64x32xf32>
    %cst_52 = arith.constant 0.000000e+00 : f32
    %153 = vector.shape_cast %123 : vector<64x1xi1> to vector<64x1xi1>
    %154 = vector.broadcast %153 : vector<64x1xi1> to vector<64x32xi1>
    %155 = vector.broadcast %cst_52 : f32 to vector<64x32xf32>
    %156 = arith.select %154, %152, %155 : vector<64x32xi1>, vector<64x32xf32>
    %157 = tpu.concatenate %128, %129, %134, %139, %140, %145, %150, %151, %156 in 1 : vector<64x32xf32>, vector<64x32xf32>, vector<64x32xf32>, vector<64x32xf32>, vector<64x32xf32>, vector<64x32xf32>, vector<64x32xf32>, vector<64x32xf32>, vector<64x32xf32> -> vector<64x288xf32>
    %158 = arith.truncf %157 : vector<64x288xf32> to vector<64x288xbf16>
    %cst_53 = arith.constant dense<0.000000e+00> : vector<64x32xf32>
    %159 = tpu.matmul %158, %97, %cst_53 {dimension_numbers = #tpu.dot_dimension_numbers<[1], [0], [0], [1], [0, 0, 1, 1], [], []>} : vector<64x288xbf16>, vector<288x32xbf16>, vector<64x32xf32> -> vector<64x32xf32>
    %160 = vector.broadcast %98 : vector<1x32xf32> to vector<64x32xf32>
    %161 = arith.mulf %159, %160 : vector<64x32xf32>
    %162 = vector.broadcast %99 : vector<1x32xf32> to vector<64x32xf32>
    %163 = arith.addf %161, %162 : vector<64x32xf32>
    %cst_54 = arith.constant 0.000000e+00 : f32
    %164 = vector.broadcast %cst_54 : f32 to vector<64x32xf32>
    %165 = arith.maximumf %163, %164 : vector<64x32xf32>
    %166 = arith.addf %95, %165 : vector<64x32xf32>
    %c0_55 = arith.constant 0 : index
    %c0_56 = arith.constant 0 : index
    %c0_57 = arith.constant 0 : index
    %c0_58 = arith.constant 0 : index
    %167 = vector.load %arg3[%c0_55, %c0_56, %c0_57, %c0_58] : memref<1x8x8x32xf32, #tpu.memory_space<vmem>>, vector<1x8x8x32xf32>
    %168 = vector.shape_cast %167 : vector<1x8x8x32xf32> to vector<8x8x32xf32>
    %169 = vector.shape_cast %168 : vector<8x8x32xf32> to vector<64x32xf32>
    %170 = arith.negf %169 : vector<64x32xf32>
    %171 = math.exp %170 : vector<64x32xf32>
    %cst_59 = arith.constant 1.000000e+00 : f32
    %172 = vector.broadcast %cst_59 : f32 to vector<64x32xf32>
    %173 = arith.addf %172, %171 : vector<64x32xf32>
    %174 = arith.divf %172, %173 : vector<64x32xf32>
    %175 = arith.mulf %166, %174 : vector<64x32xf32>
    %176 = arith.truncf %175 : vector<64x32xf32> to vector<64x32xbf16>
    %c0_60 = arith.constant 0 : index
    %c0_61 = arith.constant 0 : index
    %177 = vector.load %arg11[%c0_60, %c0_61] : memref<32x32xbf16, #tpu.memory_space<vmem>>, vector<32x32xbf16>
    %cst_62 = arith.constant dense<0.000000e+00> : vector<64x32xf32>
    %178 = tpu.matmul %176, %177, %cst_62 {dimension_numbers = #tpu.dot_dimension_numbers<[1], [0], [0], [1], [0, 0, 1, 1], [], []>} : vector<64x32xbf16>, vector<32x32xbf16>, vector<64x32xf32> -> vector<64x32xf32>
    %c0_63 = arith.constant 0 : index
    %c0_64 = arith.constant 0 : index
    %179 = vector.load %arg12[%c0_63, %c0_64] : memref<1x32xf32, #tpu.memory_space<vmem>>, vector<1x32xf32>
    %180 = vector.broadcast %179 : vector<1x32xf32> to vector<64x32xf32>
    %181 = arith.addf %178, %180 : vector<64x32xf32>
    %182 = vector.shape_cast %181 : vector<64x32xf32> to vector<8x8x32xf32>
    %c0_65 = arith.constant 0 : index
    %c0_66 = arith.constant 0 : index
    %c0_67 = arith.constant 0 : index
    %c0_68 = arith.constant 0 : index
    %183 = vector.load %arg13[%c0_65, %c0_66, %c0_67, %c0_68] : memref<1x8x8x32xf32, #tpu.memory_space<vmem>>, vector<1x8x8x32xf32>
    %184 = vector.shape_cast %183 : vector<1x8x8x32xf32> to vector<8x8x32xf32>
    %185 = vector.shape_cast %182 : vector<8x8x32xf32> to vector<1x8x8x32xf32>
    tpu.vector_store %arg13[%c0_65, %c0_66, %c0_67, %c0_68], %185 {strides = array<i32>} : memref<1x8x8x32xf32, #tpu.memory_space<vmem>>, vector<1x8x8x32xf32>,
    return
  }
  func.func @transform_0(%arg0: i32) -> (i32, i32, i32, i32) {
    %c0_i32 = arith.constant 0 : i32
    %c0_i32_0 = arith.constant 0 : i32
    %c0_i32_1 = arith.constant 0 : i32
    %c0_i32_2 = arith.constant 0 : i32
    return %arg0, %c0_i32, %c0_i32_0, %c0_i32_1 : i32, i32, i32, i32
  }
  func.func @transform_1(%arg0: i32) -> (i32, i32, i32, i32) {
    %c0_i32 = arith.constant 0 : i32
    %c0_i32_0 = arith.constant 0 : i32
    %c0_i32_1 = arith.constant 0 : i32
    %c0_i32_2 = arith.constant 0 : i32
    return %arg0, %c0_i32, %c0_i32_0, %c0_i32_1 : i32, i32, i32, i32
  }
  func.func @transform_2(%arg0: i32) -> (i32, i32, i32, i32) {
    %c0_i32 = arith.constant 0 : i32
    %c0_i32_0 = arith.constant 0 : i32
    %c0_i32_1 = arith.constant 0 : i32
    %c0_i32_2 = arith.constant 0 : i32
    return %arg0, %c0_i32, %c0_i32_0, %c0_i32_1 : i32, i32, i32, i32
  }
  func.func @transform_3(%arg0: i32) -> (i32, i32) {
    %c0_i32 = arith.constant 0 : i32
    %c0_i32_0 = arith.constant 0 : i32
    %c0_i32_1 = arith.constant 0 : i32
    return %c0_i32, %c0_i32_0 : i32, i32
  }
  func.func @transform_4(%arg0: i32) -> (i32, i32) {
    %c0_i32 = arith.constant 0 : i32
    %c0_i32_0 = arith.constant 0 : i32
    %c0_i32_1 = arith.constant 0 : i32
    return %c0_i32, %c0_i32_0 : i32, i32
  }
  func.func @transform_5(%arg0: i32) -> (i32, i32) {
    %c0_i32 = arith.constant 0 : i32
    %c0_i32_0 = arith.constant 0 : i32
    %c0_i32_1 = arith.constant 0 : i32
    return %c0_i32, %c0_i32_0 : i32, i32
  }
  func.func @transform_6(%arg0: i32) -> (i32, i32) {
    %c0_i32 = arith.constant 0 : i32
    %c0_i32_0 = arith.constant 0 : i32
    %c0_i32_1 = arith.constant 0 : i32
    return %c0_i32, %c0_i32_0 : i32, i32
  }
  func.func @transform_7(%arg0: i32) -> (i32, i32) {
    %c0_i32 = arith.constant 0 : i32
    %c0_i32_0 = arith.constant 0 : i32
    %c0_i32_1 = arith.constant 0 : i32
    return %c0_i32, %c0_i32_0 : i32, i32
  }
  func.func @transform_8(%arg0: i32) -> (i32, i32) {
    %c0_i32 = arith.constant 0 : i32
    %c0_i32_0 = arith.constant 0 : i32
    %c0_i32_1 = arith.constant 0 : i32
    return %c0_i32, %c0_i32_0 : i32, i32
  }
  func.func @transform_9(%arg0: i32) -> (i32, i32) {
    %c0_i32 = arith.constant 0 : i32
    %c0_i32_0 = arith.constant 0 : i32
    %c0_i32_1 = arith.constant 0 : i32
    return %c0_i32, %c0_i32_0 : i32, i32
  }
  func.func @transform_10(%arg0: i32) -> (i32, i32) {
    %c0_i32 = arith.constant 0 : i32
    %c0_i32_0 = arith.constant 0 : i32
    %c0_i32_1 = arith.constant 0 : i32
    return %c0_i32, %c0_i32_0 : i32, i32
  }
  func.func @transform_11(%arg0: i32) -> (i32, i32) {
    %c0_i32 = arith.constant 0 : i32
    %c0_i32_0 = arith.constant 0 : i32
    %c0_i32_1 = arith.constant 0 : i32
    return %c0_i32, %c0_i32_0 : i32, i32
  }
  func.func @transform_12(%arg0: i32) -> (i32, i32, i32, i32) {
    %c0_i32 = arith.constant 0 : i32
    %c0_i32_0 = arith.constant 0 : i32
    %c0_i32_1 = arith.constant 0 : i32
    %c0_i32_2 = arith.constant 0 : i32
    return %arg0, %c0_i32, %c0_i32_0, %c0_i32_1 : i32, i32, i32, i32
  }
}

module attributes {stable_mosaic.version = 11 : i64} {
  func.func @_front_kernel(%arg0: i32, %arg1: memref<1x8x8x8xf32, #tpu.memory_space<vmem>>, %arg2: memref<72x64xbf16, #tpu.memory_space<vmem>>, %arg3: memref<1x64xf32, #tpu.memory_space<vmem>>, %arg4: memref<1x64xf32, #tpu.memory_space<vmem>>, %arg5: memref<32x40xbf16, #tpu.memory_space<vmem>>, %arg6: memref<1x40xf32, #tpu.memory_space<vmem>>, %arg7: memref<1x64x32xf32, #tpu.memory_space<vmem>>, %arg8: memref<1x8x8x32xf32, #tpu.memory_space<vmem>>, %arg9: memref<1x64x4xf32, #tpu.memory_space<vmem>>, %arg10: memref<1x64x4xf32, #tpu.memory_space<vmem>>, %arg11: memref<1x64x32xf32, #tpu.memory_space<vmem>>) attributes {dimension_semantics = [#tpu.dimension_semantics<parallel>], iteration_bounds = array<i64: 2>, scalar_prefetch = 0 : i64, scratch_operands = 0 : i64, tpu.core_type = #tpu.core_type<tc>, window_params = [{transform_indices = @transform_0, window_bounds = array<i64: 1, 8, 8, 8>}, {pipeline_mode = #tpu.pipeline_mode<synchronous>, transform_indices = @transform_1, window_bounds = array<i64: 72, 64>}, {pipeline_mode = #tpu.pipeline_mode<synchronous>, transform_indices = @transform_2, window_bounds = array<i64: 1, 64>}, {pipeline_mode = #tpu.pipeline_mode<synchronous>, transform_indices = @transform_3, window_bounds = array<i64: 1, 64>}, {pipeline_mode = #tpu.pipeline_mode<synchronous>, transform_indices = @transform_4, window_bounds = array<i64: 32, 40>}, {pipeline_mode = #tpu.pipeline_mode<synchronous>, transform_indices = @transform_5, window_bounds = array<i64: 1, 40>}, {transform_indices = @transform_6, window_bounds = array<i64: 1, 64, 32>}, {transform_indices = @transform_7, window_bounds = array<i64: 1, 8, 8, 32>}, {transform_indices = @transform_8, window_bounds = array<i64: 1, 64, 4>}, {transform_indices = @transform_9, window_bounds = array<i64: 1, 64, 4>}, {transform_indices = @transform_10, window_bounds = array<i64: 1, 64, 32>}]} {
    %c0 = arith.constant 0 : index
    %c0_0 = arith.constant 0 : index
    %c0_1 = arith.constant 0 : index
    %c0_2 = arith.constant 0 : index
    %0 = vector.load %arg1[%c0, %c0_0, %c0_1, %c0_2] : memref<1x8x8x8xf32, #tpu.memory_space<vmem>>, vector<1x8x8x8xf32>
    %1 = vector.shape_cast %0 : vector<1x8x8x8xf32> to vector<8x8x8xf32>
    %c0_3 = arith.constant 0 : index
    %c0_4 = arith.constant 0 : index
    %2 = vector.load %arg2[%c0_3, %c0_4] : memref<72x64xbf16, #tpu.memory_space<vmem>>, vector<72x64xbf16>
    %c0_5 = arith.constant 0 : index
    %c0_6 = arith.constant 0 : index
    %3 = vector.load %arg3[%c0_5, %c0_6] : memref<1x64xf32, #tpu.memory_space<vmem>>, vector<1x64xf32>
    %c0_7 = arith.constant 0 : index
    %c0_8 = arith.constant 0 : index
    %4 = vector.load %arg4[%c0_7, %c0_8] : memref<1x64xf32, #tpu.memory_space<vmem>>, vector<1x64xf32>
    %cst = arith.constant 0.000000e+00 : f32
    %5 = vector.broadcast %cst : f32 to vector<2x8x8xf32>
    %6 = tpu.concatenate %5, %1, %5 in 0 : vector<2x8x8xf32>, vector<8x8x8xf32>, vector<2x8x8xf32> -> vector<12x8x8xf32>
    %7 = vector.shape_cast %6 : vector<12x8x8xf32> to vector<96x8xf32>
    %8 = tpu.iota {dimensions = array<i32: 0>} : vector<64x1xi32>
    %c8_i32 = arith.constant 8 : i32
    %c0_i32 = arith.constant 0 : i32
    %9 = arith.cmpi eq, %c8_i32, %c0_i32 : i32
    %c1_i32 = arith.constant 1 : i32
    %10 = arith.select %9, %c1_i32, %c8_i32 : i32
    %11 = vector.broadcast %10 : i32 to vector<64x1xi32>
    %12 = arith.remsi %8, %11 : vector<64x1xi32>
    %c0_i32_9 = arith.constant 0 : i32
    %13 = vector.broadcast %c0_i32_9 : i32 to vector<64x1xi32>
    %14 = arith.cmpi ne, %12, %13 : vector<64x1xi32>
    %c0_i32_10 = arith.constant 0 : i32
    %15 = vector.broadcast %c0_i32_10 : i32 to vector<64x1xi32>
    %16 = arith.cmpi slt, %12, %15 : vector<64x1xi32>
    %c0_i32_11 = arith.constant 0 : i32
    %17 = arith.cmpi slt, %10, %c0_i32_11 : i32
    %18 = vector.broadcast %17 : i1 to vector<64x1xi1>
    %19 = vector.broadcast %18 : vector<64x1xi1> to vector<64x1xi1>
    %20 = arith.xori %16, %19 : vector<64x1xi1>
    %21 = arith.andi %20, %14 : vector<64x1xi1>
    %22 = vector.broadcast %10 : i32 to vector<64x1xi32>
    %23 = arith.addi %12, %22 : vector<64x1xi32>
    %24 = arith.select %21, %23, %12 : vector<64x1xi1>, vector<64x1xi32>
    %c1_i32_12 = arith.constant 1 : i32
    %25 = vector.broadcast %c1_i32_12 : i32 to vector<64x1xi32>
    %26 = arith.cmpi sge, %24, %25 : vector<64x1xi32>
    %c6_i32 = arith.constant 6 : i32
    %27 = vector.broadcast %c6_i32 : i32 to vector<64x1xi32>
    %28 = arith.cmpi sle, %24, %27 : vector<64x1xi32>
    %29 = vector.extract_strided_slice %7 {offsets = [7, 0], sizes = [64, 8], strides = [1, 1]} : vector<96x8xf32> to vector<64x8xf32>
    %cst_13 = arith.constant 0.000000e+00 : f32
    %30 = vector.shape_cast %26 : vector<64x1xi1> to vector<64x1xi1>
    %31 = vector.broadcast %30 : vector<64x1xi1> to vector<64x8xi1>
    %32 = vector.broadcast %cst_13 : f32 to vector<64x8xf32>
    %33 = arith.select %31, %29, %32 : vector<64x8xi1>, vector<64x8xf32>
    %34 = vector.extract_strided_slice %7 {offsets = [8, 0], sizes = [64, 8], strides = [1, 1]} : vector<96x8xf32> to vector<64x8xf32>
    %35 = vector.extract_strided_slice %7 {offsets = [9, 0], sizes = [64, 8], strides = [1, 1]} : vector<96x8xf32> to vector<64x8xf32>
    %cst_14 = arith.constant 0.000000e+00 : f32
    %36 = vector.shape_cast %28 : vector<64x1xi1> to vector<64x1xi1>
    %37 = vector.broadcast %36 : vector<64x1xi1> to vector<64x8xi1>
    %38 = vector.broadcast %cst_14 : f32 to vector<64x8xf32>
    %39 = arith.select %37, %35, %38 : vector<64x8xi1>, vector<64x8xf32>
    %40 = vector.extract_strided_slice %7 {offsets = [15, 0], sizes = [64, 8], strides = [1, 1]} : vector<96x8xf32> to vector<64x8xf32>
    %cst_15 = arith.constant 0.000000e+00 : f32
    %41 = vector.shape_cast %26 : vector<64x1xi1> to vector<64x1xi1>
    %42 = vector.broadcast %41 : vector<64x1xi1> to vector<64x8xi1>
    %43 = vector.broadcast %cst_15 : f32 to vector<64x8xf32>
    %44 = arith.select %42, %40, %43 : vector<64x8xi1>, vector<64x8xf32>
    %45 = vector.extract_strided_slice %7 {offsets = [16, 0], sizes = [64, 8], strides = [1, 1]} : vector<96x8xf32> to vector<64x8xf32>
    %46 = vector.extract_strided_slice %7 {offsets = [17, 0], sizes = [64, 8], strides = [1, 1]} : vector<96x8xf32> to vector<64x8xf32>
    %cst_16 = arith.constant 0.000000e+00 : f32
    %47 = vector.shape_cast %28 : vector<64x1xi1> to vector<64x1xi1>
    %48 = vector.broadcast %47 : vector<64x1xi1> to vector<64x8xi1>
    %49 = vector.broadcast %cst_16 : f32 to vector<64x8xf32>
    %50 = arith.select %48, %46, %49 : vector<64x8xi1>, vector<64x8xf32>
    %51 = vector.extract_strided_slice %7 {offsets = [23, 0], sizes = [64, 8], strides = [1, 1]} : vector<96x8xf32> to vector<64x8xf32>
    %cst_17 = arith.constant 0.000000e+00 : f32
    %52 = vector.shape_cast %26 : vector<64x1xi1> to vector<64x1xi1>
    %53 = vector.broadcast %52 : vector<64x1xi1> to vector<64x8xi1>
    %54 = vector.broadcast %cst_17 : f32 to vector<64x8xf32>
    %55 = arith.select %53, %51, %54 : vector<64x8xi1>, vector<64x8xf32>
    %56 = vector.extract_strided_slice %7 {offsets = [24, 0], sizes = [64, 8], strides = [1, 1]} : vector<96x8xf32> to vector<64x8xf32>
    %57 = vector.extract_strided_slice %7 {offsets = [25, 0], sizes = [64, 8], strides = [1, 1]} : vector<96x8xf32> to vector<64x8xf32>
    %cst_18 = arith.constant 0.000000e+00 : f32
    %58 = vector.shape_cast %28 : vector<64x1xi1> to vector<64x1xi1>
    %59 = vector.broadcast %58 : vector<64x1xi1> to vector<64x8xi1>
    %60 = vector.broadcast %cst_18 : f32 to vector<64x8xf32>
    %61 = arith.select %59, %57, %60 : vector<64x8xi1>, vector<64x8xf32>
    %62 = tpu.concatenate %33, %34, %39, %44, %45, %50, %55, %56, %61 in 1 : vector<64x8xf32>, vector<64x8xf32>, vector<64x8xf32>, vector<64x8xf32>, vector<64x8xf32>, vector<64x8xf32>, vector<64x8xf32>, vector<64x8xf32>, vector<64x8xf32> -> vector<64x72xf32>
    %63 = arith.truncf %62 : vector<64x72xf32> to vector<64x72xbf16>
    %cst_19 = arith.constant dense<0.000000e+00> : vector<64x64xf32>
    %64 = tpu.matmul %63, %2, %cst_19 {dimension_numbers = #tpu.dot_dimension_numbers<[1], [0], [0], [1], [0, 0, 1, 1], [], []>} : vector<64x72xbf16>, vector<72x64xbf16>, vector<64x64xf32> -> vector<64x64xf32>
    %65 = vector.broadcast %3 : vector<1x64xf32> to vector<64x64xf32>
    %66 = arith.mulf %64, %65 : vector<64x64xf32>
    %67 = vector.broadcast %4 : vector<1x64xf32> to vector<64x64xf32>
    %68 = arith.addf %66, %67 : vector<64x64xf32>
    %cst_20 = arith.constant 0.000000e+00 : f32
    %69 = vector.broadcast %cst_20 : f32 to vector<64x64xf32>
    %70 = arith.maximumf %68, %69 : vector<64x64xf32>
    %71 = vector.extract_strided_slice %70 {offsets = [0, 0], sizes = [64, 32], strides = [1, 1]} : vector<64x64xf32> to vector<64x32xf32>
    %72 = vector.extract_strided_slice %70 {offsets = [0, 32], sizes = [64, 32], strides = [1, 1]} : vector<64x64xf32> to vector<64x32xf32>
    %c0_21 = arith.constant 0 : index
    %c0_22 = arith.constant 0 : index
    %c0_23 = arith.constant 0 : index
    %73 = vector.load %arg7[%c0_21, %c0_22, %c0_23] : memref<1x64x32xf32, #tpu.memory_space<vmem>>, vector<1x64x32xf32>
    %74 = vector.shape_cast %73 : vector<1x64x32xf32> to vector<64x32xf32>
    %75 = vector.shape_cast %71 : vector<64x32xf32> to vector<1x64x32xf32>
    tpu.vector_store %arg7[%c0_21, %c0_22, %c0_23], %75 {strides = array<i32>} : memref<1x64x32xf32, #tpu.memory_space<vmem>>, vector<1x64x32xf32>,
    %76 = vector.shape_cast %72 : vector<64x32xf32> to vector<8x8x32xf32>
    %c0_24 = arith.constant 0 : index
    %c0_25 = arith.constant 0 : index
    %c0_26 = arith.constant 0 : index
    %c0_27 = arith.constant 0 : index
    %77 = vector.load %arg8[%c0_24, %c0_25, %c0_26, %c0_27] : memref<1x8x8x32xf32, #tpu.memory_space<vmem>>, vector<1x8x8x32xf32>
    %78 = vector.shape_cast %77 : vector<1x8x8x32xf32> to vector<8x8x32xf32>
    %79 = vector.shape_cast %76 : vector<8x8x32xf32> to vector<1x8x8x32xf32>
    tpu.vector_store %arg8[%c0_24, %c0_25, %c0_26, %c0_27], %79 {strides = array<i32>} : memref<1x8x8x32xf32, #tpu.memory_space<vmem>>, vector<1x8x8x32xf32>,
    %80 = arith.truncf %71 : vector<64x32xf32> to vector<64x32xbf16>
    %c0_28 = arith.constant 0 : index
    %c0_29 = arith.constant 0 : index
    %81 = vector.load %arg5[%c0_28, %c0_29] : memref<32x40xbf16, #tpu.memory_space<vmem>>, vector<32x40xbf16>
    %cst_30 = arith.constant dense<0.000000e+00> : vector<64x40xf32>
    %82 = tpu.matmul %80, %81, %cst_30 {dimension_numbers = #tpu.dot_dimension_numbers<[1], [0], [0], [1], [0, 0, 1, 1], [], []>} : vector<64x32xbf16>, vector<32x40xbf16>, vector<64x40xf32> -> vector<64x40xf32>
    %c0_31 = arith.constant 0 : index
    %c0_32 = arith.constant 0 : index
    %83 = vector.load %arg6[%c0_31, %c0_32] : memref<1x40xf32, #tpu.memory_space<vmem>>, vector<1x40xf32>
    %84 = vector.broadcast %83 : vector<1x40xf32> to vector<64x40xf32>
    %85 = arith.addf %82, %84 : vector<64x40xf32>
    %86 = vector.extract_strided_slice %85 {offsets = [0, 0], sizes = [64, 4], strides = [1, 1]} : vector<64x40xf32> to vector<64x4xf32>
    %c0_33 = arith.constant 0 : index
    %c0_34 = arith.constant 0 : index
    %c0_35 = arith.constant 0 : index
    %87 = vector.load %arg9[%c0_33, %c0_34, %c0_35] : memref<1x64x4xf32, #tpu.memory_space<vmem>>, vector<1x64x4xf32>
    %88 = vector.shape_cast %87 : vector<1x64x4xf32> to vector<64x4xf32>
    %89 = vector.shape_cast %86 : vector<64x4xf32> to vector<1x64x4xf32>
    tpu.vector_store %arg9[%c0_33, %c0_34, %c0_35], %89 {strides = array<i32>} : memref<1x64x4xf32, #tpu.memory_space<vmem>>, vector<1x64x4xf32>,
    %90 = vector.extract_strided_slice %85 {offsets = [0, 4], sizes = [64, 4], strides = [1, 1]} : vector<64x40xf32> to vector<64x4xf32>
    %c0_36 = arith.constant 0 : index
    %c0_37 = arith.constant 0 : index
    %c0_38 = arith.constant 0 : index
    %91 = vector.load %arg10[%c0_36, %c0_37, %c0_38] : memref<1x64x4xf32, #tpu.memory_space<vmem>>, vector<1x64x4xf32>
    %92 = vector.shape_cast %91 : vector<1x64x4xf32> to vector<64x4xf32>
    %93 = vector.shape_cast %90 : vector<64x4xf32> to vector<1x64x4xf32>
    tpu.vector_store %arg10[%c0_36, %c0_37, %c0_38], %93 {strides = array<i32>} : memref<1x64x4xf32, #tpu.memory_space<vmem>>, vector<1x64x4xf32>,
    %94 = vector.extract_strided_slice %85 {offsets = [0, 8], sizes = [64, 32], strides = [1, 1]} : vector<64x40xf32> to vector<64x32xf32>
    %c0_39 = arith.constant 0 : index
    %c0_40 = arith.constant 0 : index
    %c0_41 = arith.constant 0 : index
    %95 = vector.load %arg11[%c0_39, %c0_40, %c0_41] : memref<1x64x32xf32, #tpu.memory_space<vmem>>, vector<1x64x32xf32>
    %96 = vector.shape_cast %95 : vector<1x64x32xf32> to vector<64x32xf32>
    %97 = vector.shape_cast %94 : vector<64x32xf32> to vector<1x64x32xf32>
    tpu.vector_store %arg11[%c0_39, %c0_40, %c0_41], %97 {strides = array<i32>} : memref<1x64x32xf32, #tpu.memory_space<vmem>>, vector<1x64x32xf32>,
    return
  }
  func.func @transform_0(%arg0: i32) -> (i32, i32, i32, i32) {
    %c0_i32 = arith.constant 0 : i32
    %c0_i32_0 = arith.constant 0 : i32
    %c0_i32_1 = arith.constant 0 : i32
    %c0_i32_2 = arith.constant 0 : i32
    return %arg0, %c0_i32, %c0_i32_0, %c0_i32_1 : i32, i32, i32, i32
  }
  func.func @transform_1(%arg0: i32) -> (i32, i32) {
    %c0_i32 = arith.constant 0 : i32
    %c0_i32_0 = arith.constant 0 : i32
    %c0_i32_1 = arith.constant 0 : i32
    return %c0_i32, %c0_i32_0 : i32, i32
  }
  func.func @transform_2(%arg0: i32) -> (i32, i32) {
    %c0_i32 = arith.constant 0 : i32
    %c0_i32_0 = arith.constant 0 : i32
    %c0_i32_1 = arith.constant 0 : i32
    return %c0_i32, %c0_i32_0 : i32, i32
  }
  func.func @transform_3(%arg0: i32) -> (i32, i32) {
    %c0_i32 = arith.constant 0 : i32
    %c0_i32_0 = arith.constant 0 : i32
    %c0_i32_1 = arith.constant 0 : i32
    return %c0_i32, %c0_i32_0 : i32, i32
  }
  func.func @transform_4(%arg0: i32) -> (i32, i32) {
    %c0_i32 = arith.constant 0 : i32
    %c0_i32_0 = arith.constant 0 : i32
    %c0_i32_1 = arith.constant 0 : i32
    return %c0_i32, %c0_i32_0 : i32, i32
  }
  func.func @transform_5(%arg0: i32) -> (i32, i32) {
    %c0_i32 = arith.constant 0 : i32
    %c0_i32_0 = arith.constant 0 : i32
    %c0_i32_1 = arith.constant 0 : i32
    return %c0_i32, %c0_i32_0 : i32, i32
  }
  func.func @transform_6(%arg0: i32) -> (i32, i32, i32) {
    %c0_i32 = arith.constant 0 : i32
    %c0_i32_0 = arith.constant 0 : i32
    %c0_i32_1 = arith.constant 0 : i32
    return %arg0, %c0_i32, %c0_i32_0 : i32, i32, i32
  }
  func.func @transform_7(%arg0: i32) -> (i32, i32, i32, i32) {
    %c0_i32 = arith.constant 0 : i32
    %c0_i32_0 = arith.constant 0 : i32
    %c0_i32_1 = arith.constant 0 : i32
    %c0_i32_2 = arith.constant 0 : i32
    return %arg0, %c0_i32, %c0_i32_0, %c0_i32_1 : i32, i32, i32, i32
  }
  func.func @transform_8(%arg0: i32) -> (i32, i32, i32) {
    %c0_i32 = arith.constant 0 : i32
    %c0_i32_0 = arith.constant 0 : i32
    %c0_i32_1 = arith.constant 0 : i32
    return %arg0, %c0_i32, %c0_i32_0 : i32, i32, i32
  }
  func.func @transform_9(%arg0: i32) -> (i32, i32, i32) {
    %c0_i32 = arith.constant 0 : i32
    %c0_i32_0 = arith.constant 0 : i32
    %c0_i32_1 = arith.constant 0 : i32
    return %arg0, %c0_i32, %c0_i32_0 : i32, i32, i32
  }
  func.func @transform_10(%arg0: i32) -> (i32, i32, i32) {
    %c0_i32 = arith.constant 0 : i32
    %c0_i32_0 = arith.constant 0 : i32
    %c0_i32_1 = arith.constant 0 : i32
    return %arg0, %c0_i32, %c0_i32_0 : i32, i32, i32
  }
}

</mosaic_0001>

<llo_original>
// kernel: danet_head.4
$region0: #{danet_head.4}
  #allocation0 [shape = 'u32[]', space=smem, size = 0x4, offset = 0x4, fixed_abs, tag = 'smem constant byte address 0x4 - core index']
  #allocation1 [shape = 'u32[144,128]{1,0:T(1,128)}', space=vmem, size = 0x12000, scoped, tag = 'internal scratch']
  #allocation2 [shape = 'f32[64,1]{1,0:T(8,128)}', space=vmem, size = 0x8000, scoped, tag = 'scratch operand']
  #allocation3 [shape = 'f32[64,1]{1,0:T(8,128)}', space=vmem, size = 0x8000, scoped, tag = 'scratch operand']
  #allocation4 [shape = 'f32[64,32]{1,0:T(8,128)}', space=vmem, size = 0x8000, scoped, tag = 'scratch operand']
  #allocation5 [shape = 'f32[1,1]{1,0:T(1,128)S(1)}', space=vmem, size = 0x200, scoped, tag = 'scoped memory for danet_head.4']
  %s0 = inlined_call_operand.vmem [shape: f32[2,64,4], index: 0, kind: input, shape index: {}]
  %s1 = inlined_call_operand.vmem [shape: f32[2,64,4], index: 1, kind: input, shape index: {}]
  %s2 = inlined_call_operand.vmem [shape: f32[2,64,32], index: 2, kind: input, shape index: {}]
  %s3 = inlined_call_operand.vmem [shape: f32[2,64,32], index: 3, kind: input, shape index: {}]
  %s4 = inlined_call_operand.<no memory space> [shape: f32[1,1], index: 4, kind: input, shape index: {}]
  %s5 = inlined_call_operand.vmem [shape: f32[2,64,32], index: 5, kind: output, shape index: {}]
  %s6 = sld [smem:[#allocation0]]
  $region61: #{danet_head.4} parent=0
    _
  %s8 = ssub.s32 1, %s6
  %s9 = scalar_select 0, %s8, %s6
  %v10 = vstv %s4
  %11 = vst [vmem:[#allocation5] sm:$0x1] %v10
  loop: start=0, step=1, limit=4
  $region2: #{danet_head.4} parent=0 // loop_pre_header
    _
  $region3: #{danet_head.4} parent=0 // loop_header
    %s13 = sphi 0, %s17
    %p14 = scmp.ge.s32.totalorder %s13, 4
    %s20 = sphi 0, %s39
    %s21 = sphi 0, %s35
    %s22 = sphi 0, %s31
    %s23 = sphi 0, %s20
    %s24 = sphi 0, %s21
    %s25 = sphi 0, %s22
    %s26 = sphi 0, %s23
    %s27 = sphi 0, %s24
    %s28 = sphi 0, %s25
    %s44 = sphi 0, %s46
    %s47 = sphi 0, %s44
    %s48 = sphi 0, %s47
    %s64 = sphi 0, %s48
    %s72 = sphi 0, %s74
    %s75 = sphi 0, %s72
    %s76 = sphi 0, %s75
    %s92 = sphi 0, %s76
    %s100 = sphi 0, %s102
    %s103 = sphi 0, %s100
    %s104 = sphi 0, %s103
    %s120 = sphi 0, %s104
    %s128 = sphi 0, %s130
    %s131 = sphi 0, %s128
    %s132 = sphi 0, %s131
    %s148 = sphi 0, %s132
    %s152 = sphi 0, %s152
    %s154 = sphi 0, %s152
    %s155 = sphi 0, %s154
    %s169 = sphi 0, %s155
    %s177 = sphi 0, %s179
    %s180 = sphi 0, %s177
    %s181 = sphi 0, %s180
    %s197 = sphi 0, %s181
  $region4: #{danet_head.4} parent=0 // loop_header_branch
    %16 = sbr.rel (%p14) target = $region8
  $region5: #{danet_head.4} parent=0 // loop_body
    %s18 = ssub.s32 %s13, 1
    %s19 = ssub.s32 %s13, 2
    %s29 = sadd.s32 1, %s22
    %p30 = scmp.ge.s32.totalorder %s29, 1
    %s31 = scalar_select %p30, 0, %s29
    %s32 = sadd.s32 1, %s21
    %s33 = scalar_select %p30, %s32, %s21
    %p34 = scmp.ge.s32.totalorder %s33, 1
    %s35 = scalar_select %p34, 0, %s33
    %s36 = sadd.s32 1, %s20
    %s37 = scalar_select %p34, %s36, %s20
    %p38 = scmp.ge.s32.totalorder %s37, 2
    %s39 = scalar_select %p38, 0, %s37
    %s40 = ssub.s32 %s20, %s39
    %s41 = ssub.s32 %s21, %s35
    %s42 = sor.u32 %s40, %s41
    %p43 = scmp.eq.s32.totalorder %s42, 0
    %s45 = sadd.s32 %s44, 1
    %s46 = scalar_select %p43, %s44, %s45
    %p49 = pneg %p43
    %p50 = scmp.eq.s32.totalorder %s13, 1
    %p51 = por %p49, %p50
    %p52 = scmp.ne.s32.totalorder %s44, %s47
    %p53 = scmp.eq.s32.totalorder %s13, 0
    %p54 = por %p52, %p53
    %p55 = scmp.ne.s32.totalorder %s44, %s47
    %p56 = scmp.eq.s32.totalorder %s18, 1
    %p57 = por %p55, %p56
    %p58 = scmp.ne.s32.totalorder %s47, %s48
    %p59 = scmp.eq.s32.totalorder %s18, 0
    %p60 = por %p58, %p59
    %p61 = scmp.ne.s32.totalorder %s47, %s48
    %p62 = scmp.eq.s32.totalorder %s19, 1
    %p63 = por %p61, %p62
    %p65 = scmp.ne.s32.totalorder %s48, %s64
    %p66 = scmp.eq.s32.totalorder %s19, 0
    %p67 = por %p65, %p66
    %s68 = ssub.s32 %s20, %s39
    %s69 = ssub.s32 %s22, %s31
    %s70 = sor.u32 %s68, %s69
    %p71 = scmp.eq.s32.totalorder %s70, 0
    %s73 = sadd.s32 %s72, 1
    %s74 = scalar_select %p71, %s72, %s73
    %p77 = pneg %p71
    %p78 = scmp.eq.s32.totalorder %s13, 1
    %p79 = por %p77, %p78
    %p80 = scmp.ne.s32.totalorder %s72, %s75
    %p81 = scmp.eq.s32.totalorder %s13, 0
    %p82 = por %p80, %p81
    %p83 = scmp.ne.s32.totalorder %s72, %s75
    %p84 = scmp.eq.s32.totalorder %s18, 1
    %p85 = por %p83, %p84
    %p86 = scmp.ne.s32.totalorder %s75, %s76
    %p87 = scmp.eq.s32.totalorder %s18, 0
    %p88 = por %p86, %p87
    %p89 = scmp.ne.s32.totalorder %s75, %s76
    %p90 = scmp.eq.s32.totalorder %s19, 1
    %p91 = por %p89, %p90
    %p93 = scmp.ne.s32.totalorder %s76, %s92
    %p94 = scmp.eq.s32.totalorder %s19, 0
    %p95 = por %p93, %p94
    %s96 = ssub.s32 %s20, %s39
    %s97 = ssub.s32 %s22, %s31
    %s98 = sor.u32 %s96, %s97
    %p99 = scmp.eq.s32.totalorder %s98, 0
    %s101 = sadd.s32 %s100, 1
    %s102 = scalar_select %p99, %s100, %s101
    %p105 = pneg %p99
    %p106 = scmp.eq.s32.totalorder %s13, 1
    %p107 = por %p105, %p106
    %p108 = scmp.ne.s32.totalorder %s100, %s103
    %p109 = scmp.eq.s32.totalorder %s13, 0
    %p110 = por %p108, %p109
    %p111 = scmp.ne.s32.totalorder %s100, %s103
    %p112 = scmp.eq.s32.totalorder %s18, 1
    %p113 = por %p111, %p112
    %p114 = scmp.ne.s32.totalorder %s103, %s104
    %p115 = scmp.eq.s32.totalorder %s18, 0
    %p116 = por %p114, %p115
    %p117 = scmp.ne.s32.totalorder %s103, %s104
    %p118 = scmp.eq.s32.totalorder %s19, 1
    %p119 = por %p117, %p118
    %p121 = scmp.ne.s32.totalorder %s104, %s120
    %p122 = scmp.eq.s32.totalorder %s19, 0
    %p123 = por %p121, %p122
    %s124 = ssub.s32 %s20, %s39
    %s125 = ssub.s32 %s21, %s35
    %s126 = sor.u32 %s124, %s125
    %p127 = scmp.eq.s32.totalorder %s126, 0
    %s129 = sadd.s32 %s128, 1
    %s130 = scalar_select %p127, %s128, %s129
    %p133 = pneg %p127
    %p134 = scmp.eq.s32.totalorder %s13, 1
    %p135 = por %p133, %p134
    %p136 = scmp.ne.s32.totalorder %s128, %s131
    %p137 = scmp.eq.s32.totalorder %s13, 0
    %p138 = por %p136, %p137
    %p139 = scmp.ne.s32.totalorder %s128, %s131
    %p140 = scmp.eq.s32.totalorder %s18, 1
    %p141 = por %p139, %p140
    %p142 = scmp.ne.s32.totalorder %s131, %s132
    %p143 = scmp.eq.s32.totalorder %s18, 0
    %p144 = por %p142, %p143
    %p145 = scmp.ne.s32.totalorder %s131, %s132
    %p146 = scmp.eq.s32.totalorder %s19, 1
    %p147 = por %p145, %p146
    %p149 = scmp.ne.s32.totalorder %s132, %s148
    %p150 = scmp.eq.s32.totalorder %s19, 0
    %p151 = por %p149, %p150
    %s153 = sadd.s32 %s152, 1
    %p156 = scmp.eq.s32.totalorder %s13, 1
    %p157 = scmp.ne.s32.totalorder %s152, %s154
    %p158 = scmp.eq.s32.totalorder %s13, 0
    %p159 = por %p157, %p158
    %p160 = scmp.ne.s32.totalorder %s152, %s154
    %p161 = scmp.eq.s32.totalorder %s18, 1
    %p162 = por %p160, %p161
    %p163 = scmp.ne.s32.totalorder %s154, %s155
    %p164 = scmp.eq.s32.totalorder %s18, 0
    %p165 = por %p163, %p164
    %p166 = scmp.ne.s32.totalorder %s154, %s155
    %p167 = scmp.eq.s32.totalorder %s19, 1
    %p168 = por %p166, %p167
    %p170 = scmp.ne.s32.totalorder %s155, %s169
    %p171 = scmp.eq.s32.totalorder %s19, 0
    %p172 = por %p170, %p171
    %s173 = ssub.s32 %s20, %s39
    %s174 = ssub.s32 %s21, %s35
    %s175 = sor.u32 %s173, %s174
    %p176 = scmp.eq.s32.totalorder %s175, 0
    %s178 = sadd.s32 %s177, 1
    %s179 = scalar_select %p176, %s177, %s178
    %p182 = pneg %p176
    %p183 = scmp.eq.s32.totalorder %s13, 1
    %p184 = por %p182, %p183
    %p185 = scmp.ne.s32.totalorder %s177, %s180
    %p186 = scmp.eq.s32.totalorder %s13, 0
    %p187 = por %p185, %p186
    %p188 = scmp.ne.s32.totalorder %s177, %s180
    %p189 = scmp.eq.s32.totalorder %s18, 1
    %p190 = por %p188, %p189
    %p191 = scmp.ne.s32.totalorder %s180, %s181
    %p192 = scmp.eq.s32.totalorder %s18, 0
    %p193 = por %p191, %p192
    %p194 = scmp.ne.s32.totalorder %s180, %s181
    %p195 = scmp.eq.s32.totalorder %s19, 1
    %p196 = por %p194, %p195
    %p198 = scmp.ne.s32.totalorder %s181, %s197
    %p199 = scmp.eq.s32.totalorder %s19, 0
    %p200 = por %p198, %p199
    %p201 = scmp.le.s32.totalorder 1, %s13
    %p202 = scmp.lt.s32.totalorder %s13, 3
    %p203 = pnand %p201, %p202
    %p204 = pneg %p203
    // Predicated region
    $region9: #{danet_head.4} parent=5 // pred_check
      _
    $region10: #{danet_head.4} parent=5 // pred_check_branch
      %206 = sbr.rel (%p203) target = $region12
    $region11: #{danet_head.4} parent=5 // pred_region
      %s207 = ssub.s32 %s13, 1
      // Predicated region
      $region13: #{danet_head.4} parent=11 // pred_check
        %p208 = pneg %p165
      $region14: #{danet_head.4} parent=11 // pred_check_branch
        %210 = sbr.rel (%p208) target = $region16
      $region15: #{danet_head.4} parent=11 // pred_region
        _
      $region16: #{danet_head.4} parent=11 // pred_fallthru
        _
    $region12: #{danet_head.4} parent=5 // pred_fallthru
      _
    %p211 = scmp.lt.s32.totalorder %s13, 2
    // Predicated region
    $region17: #{danet_head.4} parent=5 // pred_check
      %p212 = pneg %p211
    $region18: #{danet_head.4} parent=5 // pred_check_branch
      %214 = sbr.rel (%p212) target = $region20
    $region19: #{danet_head.4} parent=5 // pred_region
      // Predicated region
      $region21: #{danet_head.4} parent=19 // pred_check
        %p215 = pneg %p54
      $region22: #{danet_head.4} parent=19 // pred_check_branch
        %217 = sbr.rel (%p215) target = $region24
      $region23: #{danet_head.4} parent=19 // pred_region
        %s218 = smul.u32 8, %s21
        %p219 = scmp.lt.s32.totalorder %s20, 1
        %s220 = scalar_select %p219, %s20, 1
        %p221 = scmp.lt.s32.totalorder %s218, 7
        %s222 = scalar_select %p221, %s218, 7
        %s223 = smul.addr %s220, 8
        %s224 = sadd.s32 %s222, %s223
        %s225 = smul.addr %s224, 8
        %s226 = scalar_lea.vmem %s0, %s225
        %s227 = smul.u32 8, %s21
      $region24: #{danet_head.4} parent=19 // pred_fallthru
        _
      // Predicated region
      $region25: #{danet_head.4} parent=19 // pred_check
        %p228 = pneg %p82
      $region26: #{danet_head.4} parent=19 // pred_check_branch
        %230 = sbr.rel (%p228) target = $region28
      $region27: #{danet_head.4} parent=19 // pred_region
        %s231 = smul.u32 8, %s22
        %p232 = scmp.lt.s32.totalorder %s20, 1
        %s233 = scalar_select %p232, %s20, 1
        %p234 = scmp.lt.s32.totalorder %s231, 7
        %s235 = scalar_select %p234, %s231, 7
        %s236 = smul.addr %s233, 8
        %s237 = sadd.s32 %s235, %s236
        %s238 = smul.addr %s237, 8
        %s239 = scalar_lea.vmem %s1, %s238
        %s240 = smul.u32 8, %s22
      $region28: #{danet_head.4} parent=19 // pred_fallthru
        _
      // Predicated region
      $region29: #{danet_head.4} parent=19 // pred_check
        %p241 = pneg %p110
      $region30: #{danet_head.4} parent=19 // pred_check_branch
        %243 = sbr.rel (%p241) target = $region32
      $region31: #{danet_head.4} parent=19 // pred_region
        %s244 = smul.u32 8, %s22
        %p245 = scmp.lt.s32.totalorder %s20, 1
        %s246 = scalar_select %p245, %s20, 1
        %p247 = scmp.lt.s32.totalorder %s244, 7
        %s248 = scalar_select %p247, %s244, 7
        %s249 = smul.addr %s246, 8
        %s250 = sadd.s32 %s248, %s249
        %s251 = smul.addr %s250, 8
        %s252 = scalar_lea.vmem %s2, %s251
        %s253 = smul.u32 8, %s22
      $region32: #{danet_head.4} parent=19 // pred_fallthru
        _
      // Predicated region
      $region33: #{danet_head.4} parent=19 // pred_check
        %p254 = pneg %p138
      $region34: #{danet_head.4} parent=19 // pred_check_branch
        %256 = sbr.rel (%p254) target = $region36
      $region35: #{danet_head.4} parent=19 // pred_region
        %s257 = smul.u32 8, %s21
        %p258 = scmp.lt.s32.totalorder %s20, 1
        %s259 = scalar_select %p258, %s20, 1
        %p260 = scmp.lt.s32.totalorder %s257, 7
        %s261 = scalar_select %p260, %s257, 7
        %s262 = smul.addr %s259, 8
        %s263 = sadd.s32 %s261, %s262
        %s264 = smul.addr %s263, 8
        %s265 = scalar_lea.vmem %s3, %s264
        %s266 = smul.u32 8, %s21
      $region36: #{danet_head.4} parent=19 // pred_fallthru
        _
    $region20: #{danet_head.4} parent=5 // pred_fallthru
      _
    %p267 = scmp.le.s32.totalorder 1, %s13
    %p268 = scmp.lt.s32.totalorder %s13, 3
    %p269 = pnand %p267, %p268
    %p270 = pneg %p269
    // Predicated region
    $region37: #{danet_head.4} parent=5 // pred_check
      _
    $region38: #{danet_head.4} parent=5 // pred_check_branch
      %272 = sbr.rel (%p269) target = $region40
    $region39: #{danet_head.4} parent=5 // pred_region
      %s273 = ssub.s32 %s13, 1
      %s274 = smul.u32 8, %s24
      %p275 = scmp.lt.s32.totalorder %s23, 1
      %s276 = scalar_select %p275, %s23, 1
      %p277 = scmp.lt.s32.totalorder %s274, 7
      %s278 = scalar_select %p277, %s274, 7
      %s279 = smul.addr %s276, 8
      %s280 = sadd.s32 %s278, %s279
      %s281 = smul.addr %s280, 8
      %s282 = scalar_lea.vmem %s0, %s281
      %p283 = pneg %p60
      %p284 = pneg %p57
      %s285 = smul.u32 8, %s25
      %p286 = scmp.lt.s32.totalorder %s23, 1
      %s287 = scalar_select %p286, %s23, 1
      %p288 = scmp.lt.s32.totalorder %s285, 7
      %s289 = scalar_select %p288, %s285, 7
      %s290 = smul.addr %s287, 8
      %s291 = sadd.s32 %s289, %s290
      %s292 = smul.addr %s291, 8
      %s293 = scalar_lea.vmem %s1, %s292
      %p294 = pneg %p88
      %p295 = pneg %p85
      %s296 = smul.u32 8, %s25
      %p297 = scmp.lt.s32.totalorder %s23, 1
      %s298 = scalar_select %p297, %s23, 1
      %p299 = scmp.lt.s32.totalorder %s296, 7
      %s300 = scalar_select %p299, %s296, 7
      %s301 = smul.addr %s298, 8
      %s302 = sadd.s32 %s300, %s301
      %s303 = smul.addr %s302, 8
      %s304 = scalar_lea.vmem %s2, %s303
      %p305 = pneg %p116
      %p306 = pneg %p113
      %s307 = smul.u32 8, %s24
      %p308 = scmp.lt.s32.totalorder %s23, 1
      %s309 = scalar_select %p308, %s23, 1
      %p310 = scmp.lt.s32.totalorder %s307, 7
      %s311 = scalar_select %p310, %s307, 7
      %s312 = smul.addr %s309, 8
      %s313 = sadd.s32 %s311, %s312
      %s314 = smul.addr %s313, 8
      %s315 = scalar_lea.vmem %s3, %s314
      %p316 = pneg %p144
      %p317 = pneg %p141
      %p318 = pneg %p165
      %p319 = pneg %p162
      %p320 = pneg %p193
      %p321 = pneg %p190
      %s322 = smul.u32 8, %s24
      %p323 = scmp.lt.s32.totalorder %s23, 1
      %s324 = scalar_select %p323, %s23, 1
      %p325 = scmp.lt.s32.totalorder %s322, 7
      %s326 = scalar_select %p325, %s322, 7
      %s327 = smul.addr %s324, 8
      %s328 = sadd.s32 %s326, %s327
      %s329 = smul.addr %s328, 8
      %s330 = scalar_lea.vmem %s5, %s329
      %s331 = smul.u32 8, %s24
      %p332 = scmp.lt.s32.totalorder %s23, 1
      %s333 = scalar_select %p332, %s23, 1
      %p334 = scmp.lt.s32.totalorder %s331, 7
      %s335 = scalar_select %p334, %s331, 7
      %s336 = smul.addr %s333, 8
      %s337 = sadd.s32 %s335, %s336
      %s338 = smul.addr %s337, 8
      %s339 = scalar_lea.vmem %s0, %s338
      %s340 = smul.u32 8, %s24
      %s341 = smul.u32 8, %s25
      %p342 = scmp.lt.s32.totalorder %s23, 1
      %s343 = scalar_select %p342, %s23, 1
      %p344 = scmp.lt.s32.totalorder %s341, 7
      %s345 = scalar_select %p344, %s341, 7
      %s346 = smul.addr %s343, 8
      %s347 = sadd.s32 %s345, %s346
      %s348 = smul.addr %s347, 8
      %s349 = scalar_lea.vmem %s1, %s348
      %s350 = smul.u32 8, %s25
      %s351 = smul.u32 8, %s25
      %p352 = scmp.lt.s32.totalorder %s23, 1
      %s353 = scalar_select %p352, %s23, 1
      %p354 = scmp.lt.s32.totalorder %s351, 7
      %s355 = scalar_select %p354, %s351, 7
      %s356 = smul.addr %s353, 8
      %s357 = sadd.s32 %s355, %s356
      %s358 = smul.addr %s357, 8
      %s359 = scalar_lea.vmem %s2, %s358
      %s360 = smul.u32 8, %s25
      %s361 = smul.u32 8, %s24
      %p362 = scmp.lt.s32.totalorder %s23, 1
      %s363 = scalar_select %p362, %s23, 1
      %p364 = scmp.lt.s32.totalorder %s361, 7
      %s365 = scalar_select %p364, %s361, 7
      %s366 = smul.addr %s363, 8
      %s367 = sadd.s32 %s365, %s366
      %s368 = smul.addr %s367, 8
      %s369 = scalar_lea.vmem %s3, %s368
      %s370 = smul.u32 8, %s24
      %s371 = smul.u32 8, %s24
      %p372 = scmp.lt.s32.totalorder %s23, 1
      %s373 = scalar_select %p372, %s23, 1
      %p374 = scmp.lt.s32.totalorder %s371, 7
      %s375 = scalar_select %p374, %s371, 7
      %s376 = smul.addr %s373, 8
      %s377 = sadd.s32 %s375, %s376
      %s378 = smul.addr %s377, 8
      %s379 = scalar_lea.vmem %s5, %s378
      %s380 = smul.u32 8, %s24
      %p382 = scmp.eq.s32.totalorder %s25, 0
      // Predicated region
      $region41: #{danet_head.4} parent=39 // pred_check
        %p383 = pneg %p382
      $region42: #{danet_head.4} parent=39 // pred_check_branch
        %385 = sbr.rel (%p383) target = $region44
      $region43: #{danet_head.4} parent=39 // pred_region
        %vm386 = vcmask 7168
        %387 = vst.msk [vmem:[#allocation2] sm:$0xff] %vm386, -inf
        %388 = vst.msk [vmem:[#allocation2 + $0x8] sm:$0xff] %vm386, -inf
        %389 = vst.msk [vmem:[#allocation2 + $0x10] sm:$0xff] %vm386, -inf
        %390 = vst.msk [vmem:[#allocation2 + $0x18] sm:$0xff] %vm386, -inf
        %391 = vst.msk [vmem:[#allocation2 + $0x20] sm:$0xff] %vm386, -inf
        %392 = vst.msk [vmem:[#allocation2 + $0x28] sm:$0xff] %vm386, -inf
        %393 = vst.msk [vmem:[#allocation2 + $0x30] sm:$0xff] %vm386, -inf
        %394 = vst.msk [vmem:[#allocation2 + $0x38] sm:$0xff] %vm386, -inf
        %395 = vst.msk [vmem:[#allocation3] sm:$0xff] %vm386, 0.0
        %396 = vst.msk [vmem:[#allocation3 + $0x8] sm:$0xff] %vm386, 0.0
        %397 = vst.msk [vmem:[#allocation3 + $0x10] sm:$0xff] %vm386, 0.0
        %398 = vst.msk [vmem:[#allocation3 + $0x18] sm:$0xff] %vm386, 0.0
        %399 = vst.msk [vmem:[#allocation3 + $0x20] sm:$0xff] %vm386, 0.0
        %400 = vst.msk [vmem:[#allocation3 + $0x28] sm:$0xff] %vm386, 0.0
        %401 = vst.msk [vmem:[#allocation3 + $0x30] sm:$0xff] %vm386, 0.0
        %402 = vst.msk [vmem:[#allocation3 + $0x38] sm:$0xff] %vm386, 0.0
        %vm403 = vcmask 261120
        %404 = vst.msk [vmem:[#allocation4] sm:$0xff] %vm403, 0.0
        %405 = vst.msk [vmem:[#allocation4 + $0x8] sm:$0xff] %vm403, 0.0
        %406 = vst.msk [vmem:[#allocation4 + $0x10] sm:$0xff] %vm403, 0.0
        %407 = vst.msk [vmem:[#allocation4 + $0x18] sm:$0xff] %vm403, 0.0
        %408 = vst.msk [vmem:[#allocation4 + $0x20] sm:$0xff] %vm403, 0.0
        %409 = vst.msk [vmem:[#allocation4 + $0x28] sm:$0xff] %vm403, 0.0
        %410 = vst.msk [vmem:[#allocation4 + $0x30] sm:$0xff] %vm403, 0.0
        %411 = vst.msk [vmem:[#allocation4 + $0x38] sm:$0xff] %vm403, 0.0
      $region44: #{danet_head.4} parent=39 // pred_fallthru
        _
      %v412 = vld [vmem:[%s339] sm:$0xff]
      %v413 = vld [vmem:[%s339 + $0x8] sm:$0xff]
      %v414 = vld [vmem:[%s339 + $0x10] sm:$0xff]
      %v415 = vld [vmem:[%s339 + $0x18] sm:$0xff]
      %v416 = vld [vmem:[%s339 + $0x20] sm:$0xff]
      %v417 = vld [vmem:[%s339 + $0x28] sm:$0xff]
      %v418 = vld [vmem:[%s339 + $0x30] sm:$0xff]
      %v419 = vld [vmem:[%s339 + $0x38] sm:$0xff]
      %v420 = vpack.c.bf16 %v413, %v412
      %v421 = vpack.c.bf16 %v415, %v414
      %v422 = vpack.c.bf16 %v417, %v416
      %v423 = vpack.c.bf16 %v419, %v418
      %v424 = vld [vmem:[%s349] sm:$0xff]
      %v425 = vld [vmem:[%s349 + $0x8] sm:$0xff]
      %v426 = vld [vmem:[%s349 + $0x10] sm:$0xff]
      %v427 = vld [vmem:[%s349 + $0x18] sm:$0xff]
      %v428 = vld [vmem:[%s349 + $0x20] sm:$0xff]
      %v429 = vld [vmem:[%s349 + $0x28] sm:$0xff]
      %v430 = vld [vmem:[%s349 + $0x30] sm:$0xff]
      %v431 = vld [vmem:[%s349 + $0x38] sm:$0xff]
      %v432 = vpack.c.bf16 %v425, %v424
      %v433 = vpack.c.bf16 %v427, %v426
      %v434 = vpack.c.bf16 %v429, %v428
      %v435 = vpack.c.bf16 %v431, %v430
      %vm436 = vcmask 31744
      %v438 = vsel %vm436, %v420, 0
      %v441 = vsel %vm436, %v421, 0
      %v444 = vsel %vm436, %v422, 0
      %v447 = vsel %vm436, %v423, 0
      %v450 = vsel %vm436, %v432, 0
      %v453 = vsel %vm436, %v433, 0
      %v456 = vsel %vm436, %v434, 0
      %v459 = vsel %vm436, %v435, 0
      %461 = vmatprep.subr.bf16.mxu0 0
      %462 = vmatpush1.bf16.xpose.msra.mxu0 %v450
      %463 = vmatprep.subr.bf16.mxu0 0
      %464 = vmatpush1.bf16.xpose.msra.mxu0 %v453
      %465 = vmatprep.subr.bf16.mxu0 0
      %466 = vmatpush1.bf16.xpose.msra.mxu0 %v456
      %467 = vmatprep.subr.bf16.mxu0 0
      %468 = vmatpush1.bf16.xpose.msra.mxu0 %v459
      %469 = vmatprep.subr.bf16.mxu0 0
      %470 = vmatpush1.bf16.xpose.msra.mxu0 0
      %471 = vmatprep.subr.bf16.mxu0 0
      %472 = vmatpush1.bf16.xpose.msra.mxu0 0
      %473 = vmatprep.subr.bf16.mxu0 0
      %474 = vmatpush1.bf16.xpose.msra.mxu0 0
      %475 = vmatprep.subr.bf16.mxu0 0
      %476 = vmatpush1.bf16.xpose.msra.mxu0 0
      %477 = vmatprep.subr.bf16.mxu0 0
      %478 = vmatpush1.bf16.xpose.msra.mxu0 0
      %479 = vmatprep.subr.bf16.mxu0 0
      %480 = vmatpush1.bf16.xpose.msra.mxu0 0
      %481 = vmatprep.subr.bf16.mxu0 0
      %482 = vmatpush1.bf16.xpose.msra.mxu0 0
      %483 = vmatprep.subr.bf16.mxu0 0
      %484 = vmatpush1.bf16.xpose.msra.mxu0 0
      %485 = vmatprep.subr.bf16.mxu0 0
      %486 = vmatpush1.bf16.xpose.msra.mxu0 0
      %487 = vmatprep.subr.bf16.mxu0 0
      %488 = vmatpush1.bf16.xpose.msra.mxu0 0
      %489 = vmatprep.subr.bf16.mxu0 0
      %490 = vmatpush1.bf16.xpose.msra.mxu0 0
      %491 = vmatprep.subr.bf16.mxu0 0
      %492 = vmatpush1.bf16.xpose.msra.mxu0 0
      %493 = vmatprep.mubr.bf16.mxu0 0
      %494 = vmatmul.mubr.bf16.gmra.mrb[0].mxu0 %v438
      %v495 = vpop.f32.mrb[0].mxu0
      %v496 = vadd.f32 0.0, %v495
      %v497 = vpop.f32.mrb[0].mxu0
      %v498 = vpop.f32.mrb[0].mxu0
      %v499 = vadd.f32 0.0, %v498
      %v500 = vpop.f32.mrb[0].mxu0
      %501 = vmatprep.mubr.bf16.mxu0 0
      %502 = vmatmul.mubr.bf16.gmra.mrb[0].mxu0 %v441
      %v503 = vpop.f32.mrb[0].mxu0
      %v504 = vadd.f32 0.0, %v503
      %v505 = vpop.f32.mrb[0].mxu0
      %v506 = vpop.f32.mrb[0].mxu0
      %v507 = vadd.f32 0.0, %v506
      %v508 = vpop.f32.mrb[0].mxu0
      %509 = vmatprep.mubr.bf16.mxu0 0
      %510 = vmatmul.mubr.bf16.gmra.mrb[0].mxu0 %v444
      %v511 = vpop.f32.mrb[0].mxu0
      %v512 = vadd.f32 0.0, %v511
      %v513 = vpop.f32.mrb[0].mxu0
      %v514 = vpop.f32.mrb[0].mxu0
      %v515 = vadd.f32 0.0, %v514
      %v516 = vpop.f32.mrb[0].mxu0
      %517 = vmatprep.mubr.bf16.mxu0 0
      %518 = vmatmul.mubr.bf16.gmra.mrb[0].mxu0 %v447
      %v519 = vpop.f32.mrb[0].mxu0
      %v520 = vadd.f32 0.0, %v519
      %v521 = vpop.f32.mrb[0].mxu0
      %v522 = vpop.f32.mrb[0].mxu0
      %v523 = vadd.f32 0.0, %v522
      %v524 = vpop.f32.mrb[0].mxu0
      %525 = vdwg.mxu0
      %v526 = vld [vmem:[#allocation2] sm:$0xff]
      %v527 = vld [vmem:[#allocation2 + $0x8] sm:$0xff]
      %v528 = vld [vmem:[#allocation2 + $0x10] sm:$0xff]
      %v529 = vld [vmem:[#allocation2 + $0x18] sm:$0xff]
      %v530 = vld [vmem:[#allocation2 + $0x20] sm:$0xff]
      %v531 = vld [vmem:[#allocation2 + $0x28] sm:$0xff]
      %v532 = vld [vmem:[#allocation2 + $0x30] sm:$0xff]
      %v533 = vld [vmem:[#allocation2 + $0x38] sm:$0xff]
      %vm534 = vcmask 523264
      %v535 = vsel %vm534, %v496, -inf
      %536 = vmax.xlane.f32.xlu0 %v535
      %v537 = vpop.xlane.xlu0 %536
      %v538 = vsel %vm534, %v499, -inf
      %539 = vmax.xlane.f32.xlu0 %v538
      %v540 = vpop.xlane.xlu0 %539
      %v541 = vsel %vm534, %v504, -inf
      %542 = vmax.xlane.f32.xlu0 %v541
      %v543 = vpop.xlane.xlu0 %542
      %v544 = vsel %vm534, %v507, -inf
      %545 = vmax.xlane.f32.xlu0 %v544
      %v546 = vpop.xlane.xlu0 %545
      %v547 = vsel %vm534, %v512, -inf
      %548 = vmax.xlane.f32.xlu0 %v547
      %v549 = vpop.xlane.xlu0 %548
      %v550 = vsel %vm534, %v515, -inf
      %551 = vmax.xlane.f32.xlu0 %v550
      %v552 = vpop.xlane.xlu0 %551
      %v553 = vsel %vm534, %v520, -inf
      %554 = vmax.xlane.f32.xlu0 %v553
      %v555 = vpop.xlane.xlu0 %554
      %v556 = vsel %vm534, %v523, -inf
      %557 = vmax.xlane.f32.xlu0 %v556
      %v558 = vpop.xlane.xlu0 %557
      %v559 = vmax.f32 %v526, %v537
      %v560 = vmax.f32 %v527, %v540
      %v561 = vmax.f32 %v528, %v543
      %v562 = vmax.f32 %v529, %v546
      %v563 = vmax.f32 %v530, %v549
      %v564 = vmax.f32 %v531, %v552
      %v565 = vmax.f32 %v532, %v555
      %v566 = vmax.f32 %v533, %v558
      %v567 = vsub.f32 %v526, %v559
      %v568 = vsub.f32 %v527, %v560
      %v569 = vsub.f32 %v528, %v561
      %v570 = vsub.f32 %v529, %v562
      %v571 = vsub.f32 %v530, %v563
      %v572 = vsub.f32 %v531, %v564
      %v573 = vsub.f32 %v532, %v565
      %v574 = vsub.f32 %v533, %v566
      %v575 = vmul.f32 %v567, 1.442695
      %v576 = vpow.pop %v575
      %v577 = vmul.f32 %v568, 1.442695
      %v578 = vpow.pop %v577
      %v579 = vmul.f32 %v569, 1.442695
      %v580 = vpow.pop %v579
      %v581 = vmul.f32 %v570, 1.442695
      %v582 = vpow.pop %v581
      %v583 = vmul.f32 %v571, 1.442695
      %v584 = vpow.pop %v583
      %v585 = vmul.f32 %v572, 1.442695
      %v586 = vpow.pop %v585
      %v587 = vmul.f32 %v573, 1.442695
      %v588 = vpow.pop %v587
      %v589 = vmul.f32 %v574, 1.442695
      %v590 = vpow.pop %v589
      %592 = vset.pattern.permute.xlu0 0
      %593 = vperm.xlu0 %592, %v559
      %v594 = vpop.permute.xlu0 %593
      %597 = vset.pattern.permute.xlu0 0
      %598 = vperm.xlu0 %597, %v560
      %v599 = vpop.permute.xlu0 %598
      %602 = vset.pattern.permute.xlu0 0
      %603 = vperm.xlu0 %602, %v561
      %v604 = vpop.permute.xlu0 %603
      %607 = vset.pattern.permute.xlu0 0
      %608 = vperm.xlu0 %607, %v562
      %v609 = vpop.permute.xlu0 %608
      %612 = vset.pattern.permute.xlu0 0
      %613 = vperm.xlu0 %612, %v563
      %v614 = vpop.permute.xlu0 %613
      %617 = vset.pattern.permute.xlu0 0
      %618 = vperm.xlu0 %617, %v564
      %v619 = vpop.permute.xlu0 %618
      %622 = vset.pattern.permute.xlu0 0
      %623 = vperm.xlu0 %622, %v565
      %v624 = vpop.permute.xlu0 %623
      %627 = vset.pattern.permute.xlu0 0
      %628 = vperm.xlu0 %627, %v566
      %v629 = vpop.permute.xlu0 %628
      %v631 = vsub.f32 %v496, %v594
      %v632 = vsub.f32 %v499, %v599
      %v633 = vsub.f32 %v504, %v604
      %v634 = vsub.f32 %v507, %v609
      %v635 = vsub.f32 %v512, %v614
      %v636 = vsub.f32 %v515, %v619
      %v637 = vsub.f32 %v520, %v624
      %v638 = vsub.f32 %v523, %v629
      %v639 = vmul.f32 %v631, 1.442695
      %v640 = vpow.pop %v639
      %v641 = vmul.f32 %v632, 1.442695
      %v642 = vpow.pop %v641
      %v643 = vmul.f32 %v633, 1.442695
      %v644 = vpow.pop %v643
      %v645 = vmul.f32 %v634, 1.442695
      %v646 = vpow.pop %v645
      %v647 = vmul.f32 %v635, 1.442695
      %v648 = vpow.pop %v647
      %v649 = vmul.f32 %v636, 1.442695
      %v650 = vpow.pop %v649
      %v651 = vmul.f32 %v637, 1.442695
      %v652 = vpow.pop %v651
      %v653 = vmul.f32 %v638, 1.442695
      %v654 = vpow.pop %v653
      %v655 = vld [vmem:[#allocation3] sm:$0xff]
      %v656 = vld [vmem:[#allocation3 + $0x8] sm:$0xff]
      %v657 = vld [vmem:[#allocation3 + $0x10] sm:$0xff]
      %v658 = vld [vmem:[#allocation3 + $0x18] sm:$0xff]
      %v659 = vld [vmem:[#allocation3 + $0x20] sm:$0xff]
      %v660 = vld [vmem:[#allocation3 + $0x28] sm:$0xff]
      %v661 = vld [vmem:[#allocation3 + $0x30] sm:$0xff]
      %v662 = vld [vmem:[#allocation3 + $0x38] sm:$0xff]
      %v663 = vmul.f32 %v576, %v655
      %v664 = vmul.f32 %v578, %v656
      %v665 = vmul.f32 %v580, %v657
      %v666 = vmul.f32 %v582, %v658
      %v667 = vmul.f32 %v584, %v659
      %v668 = vmul.f32 %v586, %v660
      %v669 = vmul.f32 %v588, %v661
      %v670 = vmul.f32 %v590, %v662
      %v671 = vsel %vm534, %v640, 0.0
      %672 = vadd.xlane.f32.xlu0 %v671
      %v673 = vpop.xlane.xlu0 %672
      %v674 = vsel %vm534, %v642, 0.0
      %675 = vadd.xlane.f32.xlu0 %v674
      %v676 = vpop.xlane.xlu0 %675
      %v677 = vsel %vm534, %v644, 0.0
      %678 = vadd.xlane.f32.xlu0 %v677
      %v679 = vpop.xlane.xlu0 %678
      %v680 = vsel %vm534, %v646, 0.0
      %681 = vadd.xlane.f32.xlu0 %v680
      %v682 = vpop.xlane.xlu0 %681
      %v683 = vsel %vm534, %v648, 0.0
      %684 = vadd.xlane.f32.xlu0 %v683
      %v685 = vpop.xlane.xlu0 %684
      %v686 = vsel %vm534, %v650, 0.0
      %687 = vadd.xlane.f32.xlu0 %v686
      %v688 = vpop.xlane.xlu0 %687
      %v689 = vsel %vm534, %v652, 0.0
      %690 = vadd.xlane.f32.xlu0 %v689
      %v691 = vpop.xlane.xlu0 %690
      %v692 = vsel %vm534, %v654, 0.0
      %693 = vadd.xlane.f32.xlu0 %v692
      %v694 = vpop.xlane.xlu0 %693
      %v695 = vadd.f32 %v663, %v673
      %v696 = vadd.f32 %v664, %v676
      %v697 = vadd.f32 %v665, %v679
      %v698 = vadd.f32 %v666, %v682
      %v699 = vadd.f32 %v667, %v685
      %v700 = vadd.f32 %v668, %v688
      %v701 = vadd.f32 %v669, %v691
      %v702 = vadd.f32 %v670, %v694
      %vm703 = vcmask 7168
      %704 = vst.msk [vmem:[#allocation3] sm:$0xff] %vm703, %v695
      %705 = vst.msk [vmem:[#allocation3 + $0x8] sm:$0xff] %vm703, %v696
      %706 = vst.msk [vmem:[#allocation3 + $0x10] sm:$0xff] %vm703, %v697
      %707 = vst.msk [vmem:[#allocation3 + $0x18] sm:$0xff] %vm703, %v698
      %708 = vst.msk [vmem:[#allocation3 + $0x20] sm:$0xff] %vm703, %v699
      %709 = vst.msk [vmem:[#allocation3 + $0x28] sm:$0xff] %vm703, %v700
      %710 = vst.msk [vmem:[#allocation3 + $0x30] sm:$0xff] %vm703, %v701
      %711 = vst.msk [vmem:[#allocation3 + $0x38] sm:$0xff] %vm703, %v702
      %v712 = vld [vmem:[#allocation4] sm:$0xff]
      %v713 = vld [vmem:[#allocation4 + $0x8] sm:$0xff]
      %v714 = vld [vmem:[#allocation4 + $0x10] sm:$0xff]
      %v715 = vld [vmem:[#allocation4 + $0x18] sm:$0xff]
      %v716 = vld [vmem:[#allocation4 + $0x20] sm:$0xff]
      %v717 = vld [vmem:[#allocation4 + $0x28] sm:$0xff]
      %v718 = vld [vmem:[#allocation4 + $0x30] sm:$0xff]
      %v719 = vld [vmem:[#allocation4 + $0x38] sm:$0xff]
      %721 = vset.pattern.permute.xlu0 0
      %722 = vperm.xlu0 %721, %v576
      %v723 = vpop.permute.xlu0 %722
      %726 = vset.pattern.permute.xlu0 0
      %727 = vperm.xlu0 %726, %v578
      %v728 = vpop.permute.xlu0 %727
      %731 = vset.pattern.permute.xlu0 0
      %732 = vperm.xlu0 %731, %v580
      %v733 = vpop.permute.xlu0 %732
      %736 = vset.pattern.permute.xlu0 0
      %737 = vperm.xlu0 %736, %v582
      %v738 = vpop.permute.xlu0 %737
      %741 = vset.pattern.permute.xlu0 0
      %742 = vperm.xlu0 %741, %v584
      %v743 = vpop.permute.xlu0 %742
      %746 = vset.pattern.permute.xlu0 0
      %747 = vperm.xlu0 %746, %v586
      %v748 = vpop.permute.xlu0 %747
      %751 = vset.pattern.permute.xlu0 0
      %752 = vperm.xlu0 %751, %v588
      %v753 = vpop.permute.xlu0 %752
      %756 = vset.pattern.permute.xlu0 0
      %757 = vperm.xlu0 %756, %v590
      %v758 = vpop.permute.xlu0 %757
      %v760 = vmul.f32 %v723, %v712
      %v761 = vmul.f32 %v728, %v713
      %v762 = vmul.f32 %v733, %v714
      %v763 = vmul.f32 %v738, %v715
      %v764 = vmul.f32 %v743, %v716
      %v765 = vmul.f32 %v748, %v717
      %v766 = vmul.f32 %v753, %v718
      %v767 = vmul.f32 %v758, %v719
      %v768 = vpack.c.bf16 %v642, %v640
      %v769 = vpack.c.bf16 %v646, %v644
      %v770 = vpack.c.bf16 %v650, %v648
      %v771 = vpack.c.bf16 %v654, %v652
      %v772 = vld [vmem:[%s359] sm:$0xff]
      %v773 = vld [vmem:[%s359 + $0x8] sm:$0xff]
      %v774 = vld [vmem:[%s359 + $0x10] sm:$0xff]
      %v775 = vld [vmem:[%s359 + $0x18] sm:$0xff]
      %v776 = vld [vmem:[%s359 + $0x20] sm:$0xff]
      %v777 = vld [vmem:[%s359 + $0x28] sm:$0xff]
      %v778 = vld [vmem:[%s359 + $0x30] sm:$0xff]
      %v779 = vld [vmem:[%s359 + $0x38] sm:$0xff]
      %v780 = vpack.c.bf16 %v773, %v772
      %v781 = vpack.c.bf16 %v775, %v774
      %v782 = vpack.c.bf16 %v777, %v776
      %v783 = vpack.c.bf16 %v779, %v778
      %v785 = vsel %vm534, %v768, 0
      %v788 = vsel %vm534, %v769, 0
      %v791 = vsel %vm534, %v770, 0
      %v794 = vsel %vm534, %v771, 0
      %796 = vmatprep.subr.bf16.mxu0 0
      %797 = vmatpush1.bf16.msra.mxu0 %v780
      %798 = vmatprep.subr.bf16.mxu0 0
      %799 = vmatpush1.bf16.msra.mxu0 %v781
      %800 = vmatprep.subr.bf16.mxu0 0
      %801 = vmatpush1.bf16.msra.mxu0 %v782
      %802 = vmatprep.subr.bf16.mxu0 0
      %803 = vmatpush1.bf16.msra.mxu0 %v783
      %804 = vmatprep.subr.bf16.mxu0 0
      %805 = vmatpush1.bf16.msra.mxu0 0
      %806 = vmatprep.subr.bf16.mxu0 0
      %807 = vmatpush1.bf16.msra.mxu0 0
      %808 = vmatprep.subr.bf16.mxu0 0
      %809 = vmatpush1.bf16.msra.mxu0 0
      %810 = vmatprep.subr.bf16.mxu0 0
      %811 = vmatpush1.bf16.msra.mxu0 0
      %812 = vmatprep.subr.bf16.mxu0 0
      %813 = vmatpush1.bf16.msra.mxu0 0
      %814 = vmatprep.subr.bf16.mxu0 0
      %815 = vmatpush1.bf16.msra.mxu0 0
      %816 = vmatprep.subr.bf16.mxu0 0
      %817 = vmatpush1.bf16.msra.mxu0 0
      %818 = vmatprep.subr.bf16.mxu0 0
      %819 = vmatpush1.bf16.msra.mxu0 0
      %820 = vmatprep.subr.bf16.mxu0 0
      %821 = vmatpush1.bf16.msra.mxu0 0
      %822 = vmatprep.subr.bf16.mxu0 0
      %823 = vmatpush1.bf16.msra.mxu0 0
      %824 = vmatprep.subr.bf16.mxu0 0
      %825 = vmatpush1.bf16.msra.mxu0 0
      %826 = vmatprep.subr.bf16.mxu0 0
      %827 = vmatpush1.bf16.msra.mxu0 0
      %828 = vmatprep.mubr.bf16.mxu0 0
      %829 = vmatmul.mubr.bf16.gmra.mrb[0].mxu0 %v785
      %v830 = vpop.f32.mrb[0].mxu0
      %v831 = vadd.f32 0.0, %v830
      %v832 = vpop.f32.mrb[0].mxu0
      %v833 = vpop.f32.mrb[0].mxu0
      %v834 = vadd.f32 0.0, %v833
      %v835 = vpop.f32.mrb[0].mxu0
      %836 = vmatprep.mubr.bf16.mxu0 0
      %837 = vmatmul.mubr.bf16.gmra.mrb[0].mxu0 %v788
      %v838 = vpop.f32.mrb[0].mxu0
      %v839 = vadd.f32 0.0, %v838
      %v840 = vpop.f32.mrb[0].mxu0
      %v841 = vpop.f32.mrb[0].mxu0
      %v842 = vadd.f32 0.0, %v841
      %v843 = vpop.f32.mrb[0].mxu0
      %844 = vmatprep.mubr.bf16.mxu0 0
      %845 = vmatmul.mubr.bf16.gmra.mrb[0].mxu0 %v791
      %v846 = vpop.f32.mrb[0].mxu0
      %v847 = vadd.f32 0.0, %v846
      %v848 = vpop.f32.mrb[0].mxu0
      %v849 = vpop.f32.mrb[0].mxu0
      %v850 = vadd.f32 0.0, %v849
      %v851 = vpop.f32.mrb[0].mxu0
      %852 = vmatprep.mubr.bf16.mxu0 0
      %853 = vmatmul.mubr.bf16.gmra.mrb[0].mxu0 %v794
      %v854 = vpop.f32.mrb[0].mxu0
      %v855 = vadd.f32 0.0, %v854
      %v856 = vpop.f32.mrb[0].mxu0
      %v857 = vpop.f32.mrb[0].mxu0
      %v858 = vadd.f32 0.0, %v857
      %v859 = vpop.f32.mrb[0].mxu0
      %860 = vdwg.mxu0
      %v861 = vadd.f32 %v760, %v831
      %v862 = vadd.f32 %v761, %v834
      %v863 = vadd.f32 %v762, %v839
      %v864 = vadd.f32 %v763, %v842
      %v865 = vadd.f32 %v764, %v847
      %v866 = vadd.f32 %v765, %v850
      %v867 = vadd.f32 %v766, %v855
      %v868 = vadd.f32 %v767, %v858
      %vm869 = vcmask 261120
      %870 = vst.msk [vmem:[#allocation4] sm:$0xff] %vm869, %v861
      %871 = vst.msk [vmem:[#allocation4 + $0x8] sm:$0xff] %vm869, %v862
      %872 = vst.msk [vmem:[#allocation4 + $0x10] sm:$0xff] %vm869, %v863
      %873 = vst.msk [vmem:[#allocation4 + $0x18] sm:$0xff] %vm869, %v864
      %874 = vst.msk [vmem:[#allocation4 + $0x20] sm:$0xff] %vm869, %v865
      %875 = vst.msk [vmem:[#allocation4 + $0x28] sm:$0xff] %vm869, %v866
      %876 = vst.msk [vmem:[#allocation4 + $0x30] sm:$0xff] %vm869, %v867
      %877 = vst.msk [vmem:[#allocation4 + $0x38] sm:$0xff] %vm869, %v868
      %878 = vst.msk [vmem:[#allocation2] sm:$0xff] %vm703, %v559
      %879 = vst.msk [vmem:[#allocation2 + $0x8] sm:$0xff] %vm703, %v560
      %880 = vst.msk [vmem:[#allocation2 + $0x10] sm:$0xff] %vm703, %v561
      %881 = vst.msk [vmem:[#allocation2 + $0x18] sm:$0xff] %vm703, %v562
      %882 = vst.msk [vmem:[#allocation2 + $0x20] sm:$0xff] %vm703, %v563
      %883 = vst.msk [vmem:[#allocation2 + $0x28] sm:$0xff] %vm703, %v564
      %884 = vst.msk [vmem:[#allocation2 + $0x30] sm:$0xff] %vm703, %v565
      %885 = vst.msk [vmem:[#allocation2 + $0x38] sm:$0xff] %vm703, %v566
      // Predicated region
      $region45: #{danet_head.4} parent=39 // pred_check
        %p886 = pneg %p382
      $region46: #{danet_head.4} parent=39 // pred_check_branch
        %888 = sbr.rel (%p886) target = $region48
      $region47: #{danet_head.4} parent=39 // pred_region
        %v889 = vld [vmem:[#allocation4] sm:$0xff]
        %v890 = vld [vmem:[#allocation4 + $0x8] sm:$0xff]
        %v891 = vld [vmem:[#allocation4 + $0x10] sm:$0xff]
        %v892 = vld [vmem:[#allocation4 + $0x18] sm:$0xff]
        %v893 = vld [vmem:[#allocation4 + $0x20] sm:$0xff]
        %v894 = vld [vmem:[#allocation4 + $0x28] sm:$0xff]
        %v895 = vld [vmem:[#allocation4 + $0x30] sm:$0xff]
        %v896 = vld [vmem:[#allocation4 + $0x38] sm:$0xff]
        %v897 = vld [vmem:[#allocation3] sm:$0xff]
        %v898 = vld [vmem:[#allocation3 + $0x8] sm:$0xff]
        %v899 = vld [vmem:[#allocation3 + $0x10] sm:$0xff]
        %v900 = vld [vmem:[#allocation3 + $0x18] sm:$0xff]
        %v901 = vld [vmem:[#allocation3 + $0x20] sm:$0xff]
        %v902 = vld [vmem:[#allocation3 + $0x28] sm:$0xff]
        %v903 = vld [vmem:[#allocation3 + $0x30] sm:$0xff]
        %v904 = vld [vmem:[#allocation3 + $0x38] sm:$0xff]
        %v905 = vrcp.pop %v897
        %v906 = vrcp.pop %v898
        %v907 = vrcp.pop %v899
        %v908 = vrcp.pop %v900
        %v909 = vrcp.pop %v901
        %v910 = vrcp.pop %v902
        %v911 = vrcp.pop %v903
        %v912 = vrcp.pop %v904
        %914 = vset.pattern.permute.xlu0 0
        %915 = vperm.xlu0 %914, %v905
        %v916 = vpop.permute.xlu0 %915
        %919 = vset.pattern.permute.xlu0 0
        %920 = vperm.xlu0 %919, %v906
        %v921 = vpop.permute.xlu0 %920
        %924 = vset.pattern.permute.xlu0 0
        %925 = vperm.xlu0 %924, %v907
        %v926 = vpop.permute.xlu0 %925
        %929 = vset.pattern.permute.xlu0 0
        %930 = vperm.xlu0 %929, %v908
        %v931 = vpop.permute.xlu0 %930
        %934 = vset.pattern.permute.xlu0 0
        %935 = vperm.xlu0 %934, %v909
        %v936 = vpop.permute.xlu0 %935
        %939 = vset.pattern.permute.xlu0 0
        %940 = vperm.xlu0 %939, %v910
        %v941 = vpop.permute.xlu0 %940
        %944 = vset.pattern.permute.xlu0 0
        %945 = vperm.xlu0 %944, %v911
        %v946 = vpop.permute.xlu0 %945
        %949 = vset.pattern.permute.xlu0 0
        %950 = vperm.xlu0 %949, %v912
        %v951 = vpop.permute.xlu0 %950
        %v953 = vmul.f32 %v889, %v916
        %v954 = vmul.f32 %v890, %v921
        %v955 = vmul.f32 %v891, %v926
        %v956 = vmul.f32 %v892, %v931
        %v957 = vmul.f32 %v893, %v936
        %v958 = vmul.f32 %v894, %v941
        %v959 = vmul.f32 %v895, %v946
        %v960 = vmul.f32 %v896, %v951
        %v961 = vld [vmem:[#allocation5] sm:$0x1]
        %s962 = vtos %v961
        %v963 = vstv %s962
        %v964 = vmul.f32 %v963, %v953
        %v965 = vmul.f32 %v963, %v954
        %v966 = vmul.f32 %v963, %v955
        %v967 = vmul.f32 %v963, %v956
        %v968 = vmul.f32 %v963, %v957
        %v969 = vmul.f32 %v963, %v958
        %v970 = vmul.f32 %v963, %v959
        %v971 = vmul.f32 %v963, %v960
        %v972 = vld [vmem:[%s369] sm:$0xff]
        %v973 = vld [vmem:[%s369 + $0x8] sm:$0xff]
        %v974 = vld [vmem:[%s369 + $0x10] sm:$0xff]
        %v975 = vld [vmem:[%s369 + $0x18] sm:$0xff]
        %v976 = vld [vmem:[%s369 + $0x20] sm:$0xff]
        %v977 = vld [vmem:[%s369 + $0x28] sm:$0xff]
        %v978 = vld [vmem:[%s369 + $0x30] sm:$0xff]
        %v979 = vld [vmem:[%s369 + $0x38] sm:$0xff]
        %v980 = vadd.f32 %v964, %v972
        %v981 = vadd.f32 %v965, %v973
        %v982 = vadd.f32 %v966, %v974
        %v983 = vadd.f32 %v967, %v975
        %v984 = vadd.f32 %v968, %v976
        %v985 = vadd.f32 %v969, %v977
        %v986 = vadd.f32 %v970, %v978
        %v987 = vadd.f32 %v971, %v979
        %988 = vst.msk [vmem:[%s379] sm:$0xff] %vm869, %v980
        %989 = vst.msk [vmem:[%s379 + $0x8] sm:$0xff] %vm869, %v981
        %990 = vst.msk [vmem:[%s379 + $0x10] sm:$0xff] %vm869, %v982
        %991 = vst.msk [vmem:[%s379 + $0x18] sm:$0xff] %vm869, %v983
        %992 = vst.msk [vmem:[%s379 + $0x20] sm:$0xff] %vm869, %v984
        %993 = vst.msk [vmem:[%s379 + $0x28] sm:$0xff] %vm869, %v985
        %994 = vst.msk [vmem:[%s379 + $0x30] sm:$0xff] %vm869, %v986
        %995 = vst.msk [vmem:[%s379 + $0x38] sm:$0xff] %vm869, %v987
      $region48: #{danet_head.4} parent=39 // pred_fallthru
        _
      %s996 = smul.u32 8, %s24
      %p997 = scmp.lt.s32.totalorder %s23, 1
      %s998 = scalar_select %p997, %s23, 1
      %p999 = scmp.lt.s32.totalorder %s996, 7
      %s1000 = scalar_select %p999, %s996, 7
      %s1001 = smul.addr %s998, 8
      %s1002 = sadd.s32 %s1000, %s1001
      %s1003 = smul.addr %s1002, 8
      %s1004 = scalar_lea.vmem %s5, %s1003
      // Predicated region
      $region49: #{danet_head.4} parent=39 // pred_check
        %p1005 = pneg %p190
      $region50: #{danet_head.4} parent=39 // pred_check_branch
        %1007 = sbr.rel (%p1005) target = $region52
      $region51: #{danet_head.4} parent=39 // pred_region
        %s1008 = smul.u32 8, %s24
      $region52: #{danet_head.4} parent=39 // pred_fallthru
        _
    $region40: #{danet_head.4} parent=5 // pred_fallthru
      _
    %p1009 = scmp.le.s32.totalorder 2, %s13
    // Predicated region
    $region53: #{danet_head.4} parent=5 // pred_check
      %p1010 = pneg %p1009
    $region54: #{danet_head.4} parent=5 // pred_check_branch
      %1012 = sbr.rel (%p1010) target = $region56
    $region55: #{danet_head.4} parent=5 // pred_region
      %s1013 = ssub.s32 %s13, 2
      // Predicated region
      $region57: #{danet_head.4} parent=55 // pred_check
        %p1014 = pneg %p196
      $region58: #{danet_head.4} parent=55 // pred_check_branch
        %1016 = sbr.rel (%p1014) target = $region60
      $region59: #{danet_head.4} parent=55 // pred_region
        %s1017 = smul.u32 8, %s27
        %p1018 = scmp.lt.s32.totalorder %s26, 1
        %s1019 = scalar_select %p1018, %s26, 1
        %p1020 = scmp.lt.s32.totalorder %s1017, 7
        %s1021 = scalar_select %p1020, %s1017, 7
        %s1022 = smul.addr %s1019, 8
        %s1023 = sadd.s32 %s1021, %s1022
        %s1024 = smul.addr %s1023, 8
        %s1025 = scalar_lea.vmem %s5, %s1024
      $region60: #{danet_head.4} parent=55 // pred_fallthru
        _
    $region56: #{danet_head.4} parent=5 // pred_fallthru
      _
  $region6: #{danet_head.4} parent=0 // loop_footer
    %s17 = sadd.s32 1, %s13
  $region7: #{danet_head.4} parent=0 // loop_footer_branch
    %12 = sbr.rel target = $region3
  $region8: #{danet_head.4} parent=0 // loop_exit
    _

// kernel: danet_head.3
$region0: #{danet_head.3}
  #allocation0 [shape = 'u32[]', space=smem, size = 0x4, offset = 0x4, fixed_abs, tag = 'smem constant byte address 0x4 - core index']
  #allocation1 [shape = 'u32[144,128]{1,0:T(1,128)}', space=vmem, size = 0x12000, scoped, tag = 'internal scratch']
  %s0 = inlined_call_operand.vmem [shape: f32[2,8,8,8], index: 0, kind: input, shape index: {}]
  %s1 = inlined_call_operand.vmem [shape: bf16[72,64], index: 1, kind: input, shape index: {}]
  %s2 = inlined_call_operand.vmem [shape: f32[1,64], index: 2, kind: input, shape index: {}]
  %s3 = inlined_call_operand.vmem [shape: f32[1,64], index: 3, kind: input, shape index: {}]
  %s4 = inlined_call_operand.vmem [shape: bf16[32,40], index: 4, kind: input, shape index: {}]
  %s5 = inlined_call_operand.vmem [shape: f32[1,40], index: 5, kind: input, shape index: {}]
  %s6 = inlined_call_operand.vmem [shape: f32[2,64,32], index: 6, kind: output, shape index: {0}]
  %s7 = inlined_call_operand.vmem [shape: f32[2,8,8,32], index: 7, kind: output, shape index: {1}]
  %s8 = inlined_call_operand.vmem [shape: f32[2,64,4], index: 8, kind: output, shape index: {2}]
  %s9 = inlined_call_operand.vmem [shape: f32[2,64,4], index: 9, kind: output, shape index: {3}]
  %s10 = inlined_call_operand.vmem [shape: f32[2,64,32], index: 10, kind: output, shape index: {4}]
  %11 = xla_tuple %s6, %s7, %s8, %s9, %s10
  %s12 = sld [smem:[#allocation0]]
  $region89: #{danet_head.3} parent=0
    _
  %s14 = ssub.s32 1, %s12
  %s15 = scalar_select 0, %s14, %s12
  loop: start=0, step=1, limit=4
  $region2: #{danet_head.3} parent=0 // loop_pre_header
    _
  $region3: #{danet_head.3} parent=0 // loop_header
    %s17 = sphi 0, %s21
    %p18 = scmp.ge.s32.totalorder %s17, 4
    %s27 = sphi 0, %s29
    %s30 = sphi 0, %s27
    %s31 = sphi 0, %s30
    %s47 = sphi 0, %s31
    %s51 = sphi 0, %s51
    %s53 = sphi 0, %s51
    %s54 = sphi 0, %s53
    %s68 = sphi 0, %s54
    %s72 = sphi 0, %s72
    %s74 = sphi 0, %s72
    %s75 = sphi 0, %s74
    %s89 = sphi 0, %s75
    %s93 = sphi 0, %s93
    %s95 = sphi 0, %s93
    %s96 = sphi 0, %s95
    %s110 = sphi 0, %s96
    %s114 = sphi 0, %s114
    %s116 = sphi 0, %s114
    %s117 = sphi 0, %s116
    %s131 = sphi 0, %s117
    %s135 = sphi 0, %s135
    %s137 = sphi 0, %s135
    %s138 = sphi 0, %s137
    %s152 = sphi 0, %s138
    %s158 = sphi 0, %s160
    %s161 = sphi 0, %s158
    %s162 = sphi 0, %s161
    %s178 = sphi 0, %s162
    %s184 = sphi 0, %s186
    %s187 = sphi 0, %s184
    %s188 = sphi 0, %s187
    %s204 = sphi 0, %s188
    %s210 = sphi 0, %s212
    %s213 = sphi 0, %s210
    %s214 = sphi 0, %s213
    %s230 = sphi 0, %s214
    %s236 = sphi 0, %s238
    %s239 = sphi 0, %s236
    %s240 = sphi 0, %s239
    %s256 = sphi 0, %s240
    %s262 = sphi 0, %s264
    %s265 = sphi 0, %s262
    %s266 = sphi 0, %s265
    %s282 = sphi 0, %s266
  $region4: #{danet_head.3} parent=0 // loop_header_branch
    %20 = sbr.rel (%p18) target = $region8
  $region5: #{danet_head.3} parent=0 // loop_body
    %s22 = ssub.s32 %s17, 1
    %s23 = ssub.s32 %s17, 2
    %s24 = sadd.s32 %s17, 1
    %s25 = ssub.s32 %s17, %s24
    %p26 = scmp.eq.s32.totalorder %s25, 0
    %s28 = sadd.s32 %s27, 1
    %s29 = scalar_select %p26, %s27, %s28
    %p32 = pneg %p26
    %p33 = scmp.eq.s32.totalorder %s17, 1
    %p34 = por %p32, %p33
    %p35 = scmp.ne.s32.totalorder %s27, %s30
    %p36 = scmp.eq.s32.totalorder %s17, 0
    %p37 = por %p35, %p36
    %p38 = scmp.ne.s32.totalorder %s27, %s30
    %p39 = scmp.eq.s32.totalorder %s22, 1
    %p40 = por %p38, %p39
    %p41 = scmp.ne.s32.totalorder %s30, %s31
    %p42 = scmp.eq.s32.totalorder %s22, 0
    %p43 = por %p41, %p42
    %p44 = scmp.ne.s32.totalorder %s30, %s31
    %p45 = scmp.eq.s32.totalorder %s23, 1
    %p46 = por %p44, %p45
    %p48 = scmp.ne.s32.totalorder %s31, %s47
    %p49 = scmp.eq.s32.totalorder %s23, 0
    %p50 = por %p48, %p49
    %s52 = sadd.s32 %s51, 1
    %p55 = scmp.eq.s32.totalorder %s17, 1
    %p56 = scmp.ne.s32.totalorder %s51, %s53
    %p57 = scmp.eq.s32.totalorder %s17, 0
    %p58 = por %p56, %p57
    %p59 = scmp.ne.s32.totalorder %s51, %s53
    %p60 = scmp.eq.s32.totalorder %s22, 1
    %p61 = por %p59, %p60
    %p62 = scmp.ne.s32.totalorder %s53, %s54
    %p63 = scmp.eq.s32.totalorder %s22, 0
    %p64 = por %p62, %p63
    %p65 = scmp.ne.s32.totalorder %s53, %s54
    %p66 = scmp.eq.s32.totalorder %s23, 1
    %p67 = por %p65, %p66
    %p69 = scmp.ne.s32.totalorder %s54, %s68
    %p70 = scmp.eq.s32.totalorder %s23, 0
    %p71 = por %p69, %p70
    %s73 = sadd.s32 %s72, 1
    %p76 = scmp.eq.s32.totalorder %s17, 1
    %p77 = scmp.ne.s32.totalorder %s72, %s74
    %p78 = scmp.eq.s32.totalorder %s17, 0
    %p79 = por %p77, %p78
    %p80 = scmp.ne.s32.totalorder %s72, %s74
    %p81 = scmp.eq.s32.totalorder %s22, 1
    %p82 = por %p80, %p81
    %p83 = scmp.ne.s32.totalorder %s74, %s75
    %p84 = scmp.eq.s32.totalorder %s22, 0
    %p85 = por %p83, %p84
    %p86 = scmp.ne.s32.totalorder %s74, %s75
    %p87 = scmp.eq.s32.totalorder %s23, 1
    %p88 = por %p86, %p87
    %p90 = scmp.ne.s32.totalorder %s75, %s89
    %p91 = scmp.eq.s32.totalorder %s23, 0
    %p92 = por %p90, %p91
    %s94 = sadd.s32 %s93, 1
    %p97 = scmp.eq.s32.totalorder %s17, 1
    %p98 = scmp.ne.s32.totalorder %s93, %s95
    %p99 = scmp.eq.s32.totalorder %s17, 0
    %p100 = por %p98, %p99
    %p101 = scmp.ne.s32.totalorder %s93, %s95
    %p102 = scmp.eq.s32.totalorder %s22, 1
    %p103 = por %p101, %p102
    %p104 = scmp.ne.s32.totalorder %s95, %s96
    %p105 = scmp.eq.s32.totalorder %s22, 0
    %p106 = por %p104, %p105
    %p107 = scmp.ne.s32.totalorder %s95, %s96
    %p108 = scmp.eq.s32.totalorder %s23, 1
    %p109 = por %p107, %p108
    %p111 = scmp.ne.s32.totalorder %s96, %s110
    %p112 = scmp.eq.s32.totalorder %s23, 0
    %p113 = por %p111, %p112
    %s115 = sadd.s32 %s114, 1
    %p118 = scmp.eq.s32.totalorder %s17, 1
    %p119 = scmp.ne.s32.totalorder %s114, %s116
    %p120 = scmp.eq.s32.totalorder %s17, 0
    %p121 = por %p119, %p120
    %p122 = scmp.ne.s32.totalorder %s114, %s116
    %p123 = scmp.eq.s32.totalorder %s22, 1
    %p124 = por %p122, %p123
    %p125 = scmp.ne.s32.totalorder %s116, %s117
    %p126 = scmp.eq.s32.totalorder %s22, 0
    %p127 = por %p125, %p126
    %p128 = scmp.ne.s32.totalorder %s116, %s117
    %p129 = scmp.eq.s32.totalorder %s23, 1
    %p130 = por %p128, %p129
    %p132 = scmp.ne.s32.totalorder %s117, %s131
    %p133 = scmp.eq.s32.totalorder %s23, 0
    %p134 = por %p132, %p133
    %s136 = sadd.s32 %s135, 1
    %p139 = scmp.eq.s32.totalorder %s17, 1
    %p140 = scmp.ne.s32.totalorder %s135, %s137
    %p141 = scmp.eq.s32.totalorder %s17, 0
    %p142 = por %p140, %p141
    %p143 = scmp.ne.s32.totalorder %s135, %s137
    %p144 = scmp.eq.s32.totalorder %s22, 1
    %p145 = por %p143, %p144
    %p146 = scmp.ne.s32.totalorder %s137, %s138
    %p147 = scmp.eq.s32.totalorder %s22, 0
    %p148 = por %p146, %p147
    %p149 = scmp.ne.s32.totalorder %s137, %s138
    %p150 = scmp.eq.s32.totalorder %s23, 1
    %p151 = por %p149, %p150
    %p153 = scmp.ne.s32.totalorder %s138, %s152
    %p154 = scmp.eq.s32.totalorder %s23, 0
    %p155 = por %p153, %p154
    %s156 = ssub.s32 %s17, %s24
    %p157 = scmp.eq.s32.totalorder %s156, 0
    %s159 = sadd.s32 %s158, 1
    %s160 = scalar_select %p157, %s158, %s159
    %p163 = pneg %p157
    %p164 = scmp.eq.s32.totalorder %s17, 1
    %p165 = por %p163, %p164
    %p166 = scmp.ne.s32.totalorder %s158, %s161
    %p167 = scmp.eq.s32.totalorder %s17, 0
    %p168 = por %p166, %p167
    %p169 = scmp.ne.s32.totalorder %s158, %s161
    %p170 = scmp.eq.s32.totalorder %s22, 1
    %p171 = por %p169, %p170
    %p172 = scmp.ne.s32.totalorder %s161, %s162
    %p173 = scmp.eq.s32.totalorder %s22, 0
    %p174 = por %p172, %p173
    %p175 = scmp.ne.s32.totalorder %s161, %s162
    %p176 = scmp.eq.s32.totalorder %s23, 1
    %p177 = por %p175, %p176
    %p179 = scmp.ne.s32.totalorder %s162, %s178
    %p180 = scmp.eq.s32.totalorder %s23, 0
    %p181 = por %p179, %p180
    %s182 = ssub.s32 %s17, %s24
    %p183 = scmp.eq.s32.totalorder %s182, 0
    %s185 = sadd.s32 %s184, 1
    %s186 = scalar_select %p183, %s184, %s185
    %p189 = pneg %p183
    %p190 = scmp.eq.s32.totalorder %s17, 1
    %p191 = por %p189, %p190
    %p192 = scmp.ne.s32.totalorder %s184, %s187
    %p193 = scmp.eq.s32.totalorder %s17, 0
    %p194 = por %p192, %p193
    %p195 = scmp.ne.s32.totalorder %s184, %s187
    %p196 = scmp.eq.s32.totalorder %s22, 1
    %p197 = por %p195, %p196
    %p198 = scmp.ne.s32.totalorder %s187, %s188
    %p199 = scmp.eq.s32.totalorder %s22, 0
    %p200 = por %p198, %p199
    %p201 = scmp.ne.s32.totalorder %s187, %s188
    %p202 = scmp.eq.s32.totalorder %s23, 1
    %p203 = por %p201, %p202
    %p205 = scmp.ne.s32.totalorder %s188, %s204
    %p206 = scmp.eq.s32.totalorder %s23, 0
    %p207 = por %p205, %p206
    %s208 = ssub.s32 %s17, %s24
    %p209 = scmp.eq.s32.totalorder %s208, 0
    %s211 = sadd.s32 %s210, 1
    %s212 = scalar_select %p209, %s210, %s211
    %p215 = pneg %p209
    %p216 = scmp.eq.s32.totalorder %s17, 1
    %p217 = por %p215, %p216
    %p218 = scmp.ne.s32.totalorder %s210, %s213
    %p219 = scmp.eq.s32.totalorder %s17, 0
    %p220 = por %p218, %p219
    %p221 = scmp.ne.s32.totalorder %s210, %s213
    %p222 = scmp.eq.s32.totalorder %s22, 1
    %p223 = por %p221, %p222
    %p224 = scmp.ne.s32.totalorder %s213, %s214
    %p225 = scmp.eq.s32.totalorder %s22, 0
    %p226 = por %p224, %p225
    %p227 = scmp.ne.s32.totalorder %s213, %s214
    %p228 = scmp.eq.s32.totalorder %s23, 1
    %p229 = por %p227, %p228
    %p231 = scmp.ne.s32.totalorder %s214, %s230
    %p232 = scmp.eq.s32.totalorder %s23, 0
    %p233 = por %p231, %p232
    %s234 = ssub.s32 %s17, %s24
    %p235 = scmp.eq.s32.totalorder %s234, 0
    %s237 = sadd.s32 %s236, 1
    %s238 = scalar_select %p235, %s236, %s237
    %p241 = pneg %p235
    %p242 = scmp.eq.s32.totalorder %s17, 1
    %p243 = por %p241, %p242
    %p244 = scmp.ne.s32.totalorder %s236, %s239
    %p245 = scmp.eq.s32.totalorder %s17, 0
    %p246 = por %p244, %p245
    %p247 = scmp.ne.s32.totalorder %s236, %s239
    %p248 = scmp.eq.s32.totalorder %s22, 1
    %p249 = por %p247, %p248
    %p250 = scmp.ne.s32.totalorder %s239, %s240
    %p251 = scmp.eq.s32.totalorder %s22, 0
    %p252 = por %p250, %p251
    %p253 = scmp.ne.s32.totalorder %s239, %s240
    %p254 = scmp.eq.s32.totalorder %s23, 1
    %p255 = por %p253, %p254
    %p257 = scmp.ne.s32.totalorder %s240, %s256
    %p258 = scmp.eq.s32.totalorder %s23, 0
    %p259 = por %p257, %p258
    %s260 = ssub.s32 %s17, %s24
    %p261 = scmp.eq.s32.totalorder %s260, 0
    %s263 = sadd.s32 %s262, 1
    %s264 = scalar_select %p261, %s262, %s263
    %p267 = pneg %p261
    %p268 = scmp.eq.s32.totalorder %s17, 1
    %p269 = por %p267, %p268
    %p270 = scmp.ne.s32.totalorder %s262, %s265
    %p271 = scmp.eq.s32.totalorder %s17, 0
    %p272 = por %p270, %p271
    %p273 = scmp.ne.s32.totalorder %s262, %s265
    %p274 = scmp.eq.s32.totalorder %s22, 1
    %p275 = por %p273, %p274
    %p276 = scmp.ne.s32.totalorder %s265, %s266
    %p277 = scmp.eq.s32.totalorder %s22, 0
    %p278 = por %p276, %p277
    %p279 = scmp.ne.s32.totalorder %s265, %s266
    %p280 = scmp.eq.s32.totalorder %s23, 1
    %p281 = por %p279, %p280
    %p283 = scmp.ne.s32.totalorder %s266, %s282
    %p284 = scmp.eq.s32.totalorder %s23, 0
    %p285 = por %p283, %p284
    %p286 = scmp.le.s32.totalorder 1, %s17
    %p287 = scmp.lt.s32.totalorder %s17, 3
    %p288 = pnand %p286, %p287
    %p289 = pneg %p288
    // Predicated region
    $region9: #{danet_head.3} parent=5 // pred_check
      _
    $region10: #{danet_head.3} parent=5 // pred_check_branch
      %291 = sbr.rel (%p288) target = $region12
    $region11: #{danet_head.3} parent=5 // pred_region
      %s292 = ssub.s32 %s17, 1
      // Predicated region
      $region13: #{danet_head.3} parent=11 // pred_check
        %p293 = pneg %p64
      $region14: #{danet_head.3} parent=11 // pred_check_branch
        %295 = sbr.rel (%p293) target = $region16
      $region15: #{danet_head.3} parent=11 // pred_region
        _
      $region16: #{danet_head.3} parent=11 // pred_fallthru
        _
      // Predicated region
      $region17: #{danet_head.3} parent=11 // pred_check
        %p296 = pneg %p85
      $region18: #{danet_head.3} parent=11 // pred_check_branch
        %298 = sbr.rel (%p296) target = $region20
      $region19: #{danet_head.3} parent=11 // pred_region
        _
      $region20: #{danet_head.3} parent=11 // pred_fallthru
        _
      // Predicated region
      $region21: #{danet_head.3} parent=11 // pred_check
        %p299 = pneg %p106
      $region22: #{danet_head.3} parent=11 // pred_check_branch
        %301 = sbr.rel (%p299) target = $region24
      $region23: #{danet_head.3} parent=11 // pred_region
        _
      $region24: #{danet_head.3} parent=11 // pred_fallthru
        _
      // Predicated region
      $region25: #{danet_head.3} parent=11 // pred_check
        %p302 = pneg %p127
      $region26: #{danet_head.3} parent=11 // pred_check_branch
        %304 = sbr.rel (%p302) target = $region28
      $region27: #{danet_head.3} parent=11 // pred_region
        _
      $region28: #{danet_head.3} parent=11 // pred_fallthru
        _
      // Predicated region
      $region29: #{danet_head.3} parent=11 // pred_check
        %p305 = pneg %p148
      $region30: #{danet_head.3} parent=11 // pred_check_branch
        %307 = sbr.rel (%p305) target = $region32
      $region31: #{danet_head.3} parent=11 // pred_region
        _
      $region32: #{danet_head.3} parent=11 // pred_fallthru
        _
    $region12: #{danet_head.3} parent=5 // pred_fallthru
      _
    %p308 = scmp.lt.s32.totalorder %s17, 2
    // Predicated region
    $region33: #{danet_head.3} parent=5 // pred_check
      %p309 = pneg %p308
    $region34: #{danet_head.3} parent=5 // pred_check_branch
      %311 = sbr.rel (%p309) target = $region36
    $region35: #{danet_head.3} parent=5 // pred_region
      // Predicated region
      $region37: #{danet_head.3} parent=35 // pred_check
        %p312 = pneg %p37
      $region38: #{danet_head.3} parent=35 // pred_check_branch
        %314 = sbr.rel (%p312) target = $region40
      $region39: #{danet_head.3} parent=35 // pred_region
        %p315 = scmp.lt.s32.totalorder %s17, 1
        %s316 = scalar_select %p315, %s17, 1
        %s317 = smul.addr %s316, 8
        %s318 = smul.addr %s317, 8
        %s319 = scalar_lea.vmem %s0, %s318
      $region40: #{danet_head.3} parent=35 // pred_fallthru
        _
    $region36: #{danet_head.3} parent=5 // pred_fallthru
      _
    %p320 = scmp.le.s32.totalorder 1, %s17
    %p321 = scmp.lt.s32.totalorder %s17, 3
    %p322 = pnand %p320, %p321
    %p323 = pneg %p322
    // Predicated region
    $region41: #{danet_head.3} parent=5 // pred_check
      _
    $region42: #{danet_head.3} parent=5 // pred_check_branch
      %325 = sbr.rel (%p322) target = $region44
    $region43: #{danet_head.3} parent=5 // pred_region
      %s326 = ssub.s32 %s17, 1
      %p327 = scmp.lt.s32.totalorder %s22, 1
      %s328 = scalar_select %p327, %s22, 1
      %s329 = smul.addr %s328, 8
      %s330 = smul.addr %s329, 8
      %s331 = scalar_lea.vmem %s0, %s330
      %p332 = pneg %p43
      %p333 = pneg %p40
      %p334 = pneg %p64
      %p335 = pneg %p61
      %p336 = pneg %p85
      %p337 = pneg %p82
      %p338 = pneg %p106
      %p339 = pneg %p103
      %p340 = pneg %p127
      %p341 = pneg %p124
      %p342 = pneg %p148
      %p343 = pneg %p145
      %p344 = pneg %p174
      %p345 = pneg %p171
      %p346 = scmp.lt.s32.totalorder %s22, 1
      %s347 = scalar_select %p346, %s22, 1
      %s348 = smul.addr %s347, 8
      %s349 = smul.addr %s348, 8
      %s350 = scalar_lea.vmem %s6, %s349
      %p351 = pneg %p200
      %p352 = pneg %p197
      %p353 = scmp.lt.s32.totalorder %s22, 1
      %s354 = scalar_select %p353, %s22, 1
      %s355 = smul.addr %s354, 8
      %s356 = smul.addr %s355, 8
      %s357 = scalar_lea.vmem %s7, %s356
      %p358 = pneg %p226
      %p359 = pneg %p223
      %p360 = scmp.lt.s32.totalorder %s22, 1
      %s361 = scalar_select %p360, %s22, 1
      %s362 = smul.addr %s361, 8
      %s363 = smul.addr %s362, 8
      %s364 = scalar_lea.vmem %s8, %s363
      %p365 = pneg %p252
      %p366 = pneg %p249
      %p367 = scmp.lt.s32.totalorder %s22, 1
      %s368 = scalar_select %p367, %s22, 1
      %s369 = smul.addr %s368, 8
      %s370 = smul.addr %s369, 8
      %s371 = scalar_lea.vmem %s9, %s370
      %p372 = pneg %p278
      %p373 = pneg %p275
      %p374 = scmp.lt.s32.totalorder %s22, 1
      %s375 = scalar_select %p374, %s22, 1
      %s376 = smul.addr %s375, 8
      %s377 = smul.addr %s376, 8
      %s378 = scalar_lea.vmem %s10, %s377
      %p379 = scmp.lt.s32.totalorder %s22, 1
      %s380 = scalar_select %p379, %s22, 1
      %s381 = smul.addr %s380, 8
      %s382 = smul.addr %s381, 8
      %s383 = scalar_lea.vmem %s0, %s382
      %p384 = scmp.lt.s32.totalorder %s22, 1
      %s385 = scalar_select %p384, %s22, 1
      %s386 = smul.addr %s385, 8
      %s387 = smul.addr %s386, 8
      %s388 = scalar_lea.vmem %s6, %s387
      %p389 = scmp.lt.s32.totalorder %s22, 1
      %s390 = scalar_select %p389, %s22, 1
      %s391 = smul.addr %s390, 8
      %s392 = smul.addr %s391, 8
      %s393 = scalar_lea.vmem %s7, %s392
      %p394 = scmp.lt.s32.totalorder %s22, 1
      %s395 = scalar_select %p394, %s22, 1
      %s396 = smul.addr %s395, 8
      %s397 = smul.addr %s396, 8
      %s398 = scalar_lea.vmem %s8, %s397
      %p399 = scmp.lt.s32.totalorder %s22, 1
      %s400 = scalar_select %p399, %s22, 1
      %s401 = smul.addr %s400, 8
      %s402 = smul.addr %s401, 8
      %s403 = scalar_lea.vmem %s9, %s402
      %p404 = scmp.lt.s32.totalorder %s22, 1
      %s405 = scalar_select %p404, %s22, 1
      %s406 = smul.addr %s405, 8
      %s407 = smul.addr %s406, 8
      %s408 = scalar_lea.vmem %s10, %s407
      %v410 = vld [vmem:[%s383] sm:$0xff]
      %v411 = vld [vmem:[%s383 + $0x8] sm:$0xff]
      %v412 = vld [vmem:[%s383 + $0x10] sm:$0xff]
      %v413 = vld [vmem:[%s383 + $0x18] sm:$0xff]
      %v414 = vld [vmem:[%s383 + $0x20] sm:$0xff]
      %v415 = vld [vmem:[%s383 + $0x28] sm:$0xff]
      %v416 = vld [vmem:[%s383 + $0x30] sm:$0xff]
      %v417 = vld [vmem:[%s383 + $0x38] sm:$0xff]
      %v418 = vld [vmem:[%s1] sm:$0xf]
      %v419 = vld [vmem:[%s1 + $0x4] sm:$0xf]
      %v420 = vld [vmem:[%s1 + $0x8] sm:$0xf]
      %v421 = vld [vmem:[%s1 + $0xc] sm:$0xf]
      %v422 = vld [vmem:[%s1 + $0x10] sm:$0xf]
      %v423 = vld [vmem:[%s1 + $0x14] sm:$0xf]
      %v424 = vld [vmem:[%s1 + $0x18] sm:$0xf]
      %v425 = vld [vmem:[%s1 + $0x1c] sm:$0xf]
      %v426 = vld [vmem:[%s1 + $0x20] sm:$0xf]
      %v427 = vld [vmem:[%s2] sm:$0x1]
      %v428 = vld [vmem:[%s3] sm:$0x1]
      %v429 = vlaneseq
      %v430 = vshrl.u32 %v429, 7
      %v431 = vadd.s32 %v430, 8
      %v432 = vadd.s32 %v430, 16
      %v433 = vadd.s32 %v430, 24
      %v434 = vadd.s32 %v430, 32
      %v435 = vadd.s32 %v430, 40
      %v436 = vadd.s32 %v430, 48
      %v437 = vadd.s32 %v430, 56
      %vm438 = vcmp.lt.s32.totalorder %v430, 0
      %v439 = vsub.s32 0, %v430
      %v440 = vsel %vm438, %v439, %v430
      %v441 = vshrl.u32 %v440, 3
      %v442 = vand.u32 %v440, 7
      %v443 = vsub.s32 0, %v442
      %v444 = vsel %vm438, %v443, %v442
      %vm445 = vcmp.lt.s32.totalorder %v431, 0
      %v446 = vsub.s32 0, %v431
      %v447 = vsel %vm445, %v446, %v431
      %v448 = vshrl.u32 %v447, 3
      %v449 = vand.u32 %v447, 7
      %v450 = vsub.s32 0, %v449
      %v451 = vsel %vm445, %v450, %v449
      %vm452 = vcmp.lt.s32.totalorder %v432, 0
      %v453 = vsub.s32 0, %v432
      %v454 = vsel %vm452, %v453, %v432
      %v455 = vshrl.u32 %v454, 3
      %v456 = vand.u32 %v454, 7
      %v457 = vsub.s32 0, %v456
      %v458 = vsel %vm452, %v457, %v456
      %vm459 = vcmp.lt.s32.totalorder %v433, 0
      %v460 = vsub.s32 0, %v433
      %v461 = vsel %vm459, %v460, %v433
      %v462 = vshrl.u32 %v461, 3
      %v463 = vand.u32 %v461, 7
      %v464 = vsub.s32 0, %v463
      %v465 = vsel %vm459, %v464, %v463
      %vm466 = vcmp.lt.s32.totalorder %v434, 0
      %v467 = vsub.s32 0, %v434
      %v468 = vsel %vm466, %v467, %v434
      %v469 = vshrl.u32 %v468, 3
      %v470 = vand.u32 %v468, 7
      %v471 = vsub.s32 0, %v470
      %v472 = vsel %vm466, %v471, %v470
      %vm473 = vcmp.lt.s32.totalorder %v435, 0
      %v474 = vsub.s32 0, %v435
      %v475 = vsel %vm473, %v474, %v435
      %v476 = vshrl.u32 %v475, 3
      %v477 = vand.u32 %v475, 7
      %v478 = vsub.s32 0, %v477
      %v479 = vsel %vm473, %v478, %v477
      %vm480 = vcmp.lt.s32.totalorder %v436, 0
      %v481 = vsub.s32 0, %v436
      %v482 = vsel %vm480, %v481, %v436
      %v483 = vshrl.u32 %v482, 3
      %v484 = vand.u32 %v482, 7
      %v485 = vsub.s32 0, %v484
      %v486 = vsel %vm480, %v485, %v484
      %vm487 = vcmp.lt.s32.totalorder %v437, 0
      %v488 = vsub.s32 0, %v437
      %v489 = vsel %vm487, %v488, %v437
      %v490 = vshrl.u32 %v489, 3
      %v491 = vand.u32 %v489, 7
      %v492 = vsub.s32 0, %v491
      %v493 = vsel %vm487, %v492, %v491
      %vm494 = vcmp.ne.s32.totalorder %v444, 0
      %vm495 = vcmp.ne.s32.totalorder %v451, 0
      %vm496 = vcmp.ne.s32.totalorder %v458, 0
      %vm497 = vcmp.ne.s32.totalorder %v465, 0
      %vm498 = vcmp.ne.s32.totalorder %v472, 0
      %vm499 = vcmp.ne.s32.totalorder %v479, 0
      %vm500 = vcmp.ne.s32.totalorder %v486, 0
      %vm501 = vcmp.ne.s32.totalorder %v493, 0
      %vm502 = vcmp.lt.s32.totalorder %v444, 0
      %vm503 = vcmp.lt.s32.totalorder %v451, 0
      %vm504 = vcmp.lt.s32.totalorder %v458, 0
      %vm505 = vcmp.lt.s32.totalorder %v465, 0
      %vm506 = vcmp.lt.s32.totalorder %v472, 0
      %vm507 = vcmp.lt.s32.totalorder %v479, 0
      %vm508 = vcmp.lt.s32.totalorder %v486, 0
      %vm509 = vcmp.lt.s32.totalorder %v493, 0
      %vm510 = vmand %vm502, %vm494
      %vm511 = vmand %vm503, %vm495
      %vm512 = vmand %vm504, %vm496
      %vm513 = vmand %vm505, %vm497
      %vm514 = vmand %vm506, %vm498
      %vm515 = vmand %vm507, %vm499
      %vm516 = vmand %vm508, %vm500
      %vm517 = vmand %vm509, %vm501
      %v518 = vadd.s32 %v444, 8
      %v519 = vadd.s32 %v451, 8
      %v520 = vadd.s32 %v458, 8
      %v521 = vadd.s32 %v465, 8
      %v522 = vadd.s32 %v472, 8
      %v523 = vadd.s32 %v479, 8
      %v524 = vadd.s32 %v486, 8
      %v525 = vadd.s32 %v493, 8
      %v526 = vsel %vm510, %v518, %v444
      %v527 = vsel %vm511, %v519, %v451
      %v528 = vsel %vm512, %v520, %v458
      %v529 = vsel %vm513, %v521, %v465
      %v530 = vsel %vm514, %v522, %v472
      %v531 = vsel %vm515, %v523, %v479
      %v532 = vsel %vm516, %v524, %v486
      %v533 = vsel %vm517, %v525, %v493
      %vm534 = vcmp.ge.s32.totalorder %v526, 1
      %vm535 = vcmp.ge.s32.totalorder %v527, 1
      %vm536 = vcmp.ge.s32.totalorder %v528, 1
      %vm537 = vcmp.ge.s32.totalorder %v529, 1
      %vm538 = vcmp.ge.s32.totalorder %v530, 1
      %vm539 = vcmp.ge.s32.totalorder %v531, 1
      %vm540 = vcmp.ge.s32.totalorder %v532, 1
      %vm541 = vcmp.ge.s32.totalorder %v533, 1
      %vm542 = vcmp.le.s32.totalorder %v526, 6
      %vm543 = vcmp.le.s32.totalorder %v527, 6
      %vm544 = vcmp.le.s32.totalorder %v528, 6
      %vm545 = vcmp.le.s32.totalorder %v529, 6
      %vm546 = vcmp.le.s32.totalorder %v530, 6
      %vm547 = vcmp.le.s32.totalorder %v531, 6
      %vm548 = vcmp.le.s32.totalorder %v532, 6
      %vm549 = vcmp.le.s32.totalorder %v533, 6
      %v550 = vsel %vm534, 1, 0
      %v551 = vsel %vm535, 1, 0
      %v552 = vsel %vm536, 1, 0
      %v553 = vsel %vm537, 1, 0
      %v554 = vsel %vm538, 1, 0
      %v555 = vsel %vm539, 1, 0
      %v556 = vsel %vm540, 1, 0
      %v557 = vsel %vm541, 1, 0
      %vm558 = vcmp.eq.s32.totalorder %v550, 1
      %vm559 = vcmp.eq.s32.totalorder %v551, 1
      %vm560 = vcmp.eq.s32.totalorder %v552, 1
      %vm561 = vcmp.eq.s32.totalorder %v553, 1
      %vm562 = vcmp.eq.s32.totalorder %v554, 1
      %vm563 = vcmp.eq.s32.totalorder %v555, 1
      %vm564 = vcmp.eq.s32.totalorder %v556, 1
      %vm565 = vcmp.eq.s32.totalorder %v557, 1
      %vm574 = vcmask 1040384
      %v575 = vrot.slane 0.0, 7
      %v576 = vsel %vm574, %v575, %v575
      %v577 = vrot.slane %v410, 7
      %v578 = vsel %vm574, %v575, %v577
      %v579 = vrot.slane %v411, 7
      %v580 = vsel %vm574, %v577, %v579
      %v581 = vrot.slane %v412, 7
      %v582 = vsel %vm574, %v579, %v581
      %v583 = vrot.slane %v413, 7
      %v584 = vsel %vm574, %v581, %v583
      %v585 = vrot.slane %v414, 7
      %v586 = vsel %vm574, %v583, %v585
      %v587 = vrot.slane %v415, 7
      %v588 = vsel %vm574, %v585, %v587
      %v589 = vrot.slane %v416, 7
      %v590 = vsel %vm574, %v587, %v589
      %v599 = vsel %vm558, %v576, 0.0
      %v600 = vsel %vm559, %v578, 0.0
      %v601 = vsel %vm560, %v580, 0.0
      %v602 = vsel %vm561, %v582, 0.0
      %v603 = vsel %vm562, %v584, 0.0
      %v604 = vsel %vm563, %v586, 0.0
      %v605 = vsel %vm564, %v588, 0.0
      %v606 = vsel %vm565, %v590, 0.0
      %v607 = vsel %vm542, 1, 0
      %v608 = vsel %vm543, 1, 0
      %v609 = vsel %vm544, 1, 0
      %v610 = vsel %vm545, 1, 0
      %v611 = vsel %vm546, 1, 0
      %v612 = vsel %vm547, 1, 0
      %v613 = vsel %vm548, 1, 0
      %v614 = vsel %vm549, 1, 0
      %vm615 = vcmp.eq.s32.totalorder %v607, 1
      %vm616 = vcmp.eq.s32.totalorder %v608, 1
      %vm617 = vcmp.eq.s32.totalorder %v609, 1
      %vm618 = vcmp.eq.s32.totalorder %v610, 1
      %vm619 = vcmp.eq.s32.totalorder %v611, 1
      %vm620 = vcmp.eq.s32.totalorder %v612, 1
      %vm621 = vcmp.eq.s32.totalorder %v613, 1
      %vm622 = vcmp.eq.s32.totalorder %v614, 1
      %vm624 = vcmask 1046528
      %v625 = vrot.slane 0.0, 1
      %v626 = vrot.slane %v410, 1
      %v627 = vsel %vm624, %v625, %v626
      %v628 = vrot.slane %v411, 1
      %v629 = vsel %vm624, %v626, %v628
      %v630 = vrot.slane %v412, 1
      %v631 = vsel %vm624, %v628, %v630
      %v632 = vrot.slane %v413, 1
      %v633 = vsel %vm624, %v630, %v632
      %v634 = vrot.slane %v414, 1
      %v635 = vsel %vm624, %v632, %v634
      %v636 = vrot.slane %v415, 1
      %v637 = vsel %vm624, %v634, %v636
      %v638 = vrot.slane %v416, 1
      %v639 = vsel %vm624, %v636, %v638
      %v640 = vrot.slane %v417, 1
      %v641 = vsel %vm624, %v638, %v640
      %v650 = vsel %vm615, %v627, 0.0
      %v651 = vsel %vm616, %v629, 0.0
      %v652 = vsel %vm617, %v631, 0.0
      %v653 = vsel %vm618, %v633, 0.0
      %v654 = vsel %vm619, %v635, 0.0
      %v655 = vsel %vm620, %v637, 0.0
      %v656 = vsel %vm621, %v639, 0.0
      %v657 = vsel %vm622, %v641, 0.0
      %v658 = vrot.slane %v417, 7
      %v659 = vsel %vm574, %v589, %v658
      %v661 = vsel %vm558, %v578, 0.0
      %v662 = vsel %vm559, %v580, 0.0
      %v663 = vsel %vm560, %v582, 0.0
      %v664 = vsel %vm561, %v584, 0.0
      %v665 = vsel %vm562, %v586, 0.0
      %v666 = vsel %vm563, %v588, 0.0
      %v667 = vsel %vm564, %v590, 0.0
      %v668 = vsel %vm565, %v659, 0.0
      %v669 = vsel %vm624, %v640, %v625
      %v671 = vsel %vm615, %v629, 0.0
      %v672 = vsel %vm616, %v631, 0.0
      %v673 = vsel %vm617, %v633, 0.0
      %v674 = vsel %vm618, %v635, 0.0
      %v675 = vsel %vm619, %v637, 0.0
      %v676 = vsel %vm620, %v639, 0.0
      %v677 = vsel %vm621, %v641, 0.0
      %v678 = vsel %vm622, %v669, 0.0
      %v679 = vsel %vm574, %v658, %v575
      %v681 = vsel %vm558, %v580, 0.0
      %v682 = vsel %vm559, %v582, 0.0
      %v683 = vsel %vm560, %v584, 0.0
      %v684 = vsel %vm561, %v586, 0.0
      %v685 = vsel %vm562, %v588, 0.0
      %v686 = vsel %vm563, %v590, 0.0
      %v687 = vsel %vm564, %v659, 0.0
      %v688 = vsel %vm565, %v679, 0.0
      %v689 = vsel %vm624, %v625, %v625
      %v691 = vsel %vm615, %v631, 0.0
      %v692 = vsel %vm616, %v633, 0.0
      %v693 = vsel %vm617, %v635, 0.0
      %v694 = vsel %vm618, %v637, 0.0
      %v695 = vsel %vm619, %v639, 0.0
      %v696 = vsel %vm620, %v641, 0.0
      %v697 = vsel %vm621, %v669, 0.0
      %v698 = vsel %vm622, %v689, 0.0
      %699 = vrot.lane.b32.xlu0 0.0, 8
      %v700 = vpop.permute.xlu0 %699
      %701 = vrot.lane.b32.xlu0 %v410, 8
      %v702 = vpop.permute.xlu0 %701
      %703 = vrot.lane.b32.xlu0 %v411, 8
      %v704 = vpop.permute.xlu0 %703
      %705 = vrot.lane.b32.xlu0 %v412, 8
      %v706 = vpop.permute.xlu0 %705
      %707 = vrot.lane.b32.xlu0 %v413, 8
      %v708 = vpop.permute.xlu0 %707
      %709 = vrot.lane.b32.xlu0 %v414, 8
      %v710 = vpop.permute.xlu0 %709
      %711 = vrot.lane.b32.xlu0 %v415, 8
      %v712 = vpop.permute.xlu0 %711
      %713 = vrot.lane.b32.xlu0 %v416, 8
      %v714 = vpop.permute.xlu0 %713
      %731 = vrot.lane.b32.xlu0 %v650, 16
      %v732 = vpop.permute.xlu0 %731
      %733 = vrot.lane.b32.xlu0 %v651, 16
      %v734 = vpop.permute.xlu0 %733
      %735 = vrot.lane.b32.xlu0 %v652, 16
      %v736 = vpop.permute.xlu0 %735
      %737 = vrot.lane.b32.xlu0 %v653, 16
      %v738 = vpop.permute.xlu0 %737
      %739 = vrot.lane.b32.xlu0 %v654, 16
      %v740 = vpop.permute.xlu0 %739
      %741 = vrot.lane.b32.xlu0 %v655, 16
      %v742 = vpop.permute.xlu0 %741
      %743 = vrot.lane.b32.xlu0 %v656, 16
      %v744 = vpop.permute.xlu0 %743
      %745 = vrot.lane.b32.xlu0 %v657, 16
      %v746 = vpop.permute.xlu0 %745
      %763 = vrot.lane.b32.xlu0 %v661, 24
      %v764 = vpop.permute.xlu0 %763
      %765 = vrot.lane.b32.xlu0 %v662, 24
      %v766 = vpop.permute.xlu0 %765
      %767 = vrot.lane.b32.xlu0 %v663, 24
      %v768 = vpop.permute.xlu0 %767
      %769 = vrot.lane.b32.xlu0 %v664, 24
      %v770 = vpop.permute.xlu0 %769
      %771 = vrot.lane.b32.xlu0 %v665, 24
      %v772 = vpop.permute.xlu0 %771
      %773 = vrot.lane.b32.xlu0 %v666, 24
      %v774 = vpop.permute.xlu0 %773
      %775 = vrot.lane.b32.xlu0 %v667, 24
      %v776 = vpop.permute.xlu0 %775
      %777 = vrot.lane.b32.xlu0 %v668, 24
      %v778 = vpop.permute.xlu0 %777
      %787 = vrot.lane.b32.xlu0 %v410, 32
      %v788 = vpop.permute.xlu0 %787
      %789 = vrot.lane.b32.xlu0 %v411, 32
      %v790 = vpop.permute.xlu0 %789
      %791 = vrot.lane.b32.xlu0 %v412, 32
      %v792 = vpop.permute.xlu0 %791
      %793 = vrot.lane.b32.xlu0 %v413, 32
      %v794 = vpop.permute.xlu0 %793
      %795 = vrot.lane.b32.xlu0 %v414, 32
      %v796 = vpop.permute.xlu0 %795
      %797 = vrot.lane.b32.xlu0 %v415, 32
      %v798 = vpop.permute.xlu0 %797
      %799 = vrot.lane.b32.xlu0 %v416, 32
      %v800 = vpop.permute.xlu0 %799
      %801 = vrot.lane.b32.xlu0 %v417, 32
      %v802 = vpop.permute.xlu0 %801
      %819 = vrot.lane.b32.xlu0 %v671, 40
      %v820 = vpop.permute.xlu0 %819
      %821 = vrot.lane.b32.xlu0 %v672, 40
      %v822 = vpop.permute.xlu0 %821
      %823 = vrot.lane.b32.xlu0 %v673, 40
      %v824 = vpop.permute.xlu0 %823
      %825 = vrot.lane.b32.xlu0 %v674, 40
      %v826 = vpop.permute.xlu0 %825
      %827 = vrot.lane.b32.xlu0 %v675, 40
      %v828 = vpop.permute.xlu0 %827
      %829 = vrot.lane.b32.xlu0 %v676, 40
      %v830 = vpop.permute.xlu0 %829
      %831 = vrot.lane.b32.xlu0 %v677, 40
      %v832 = vpop.permute.xlu0 %831
      %833 = vrot.lane.b32.xlu0 %v678, 40
      %v834 = vpop.permute.xlu0 %833
      %851 = vrot.lane.b32.xlu0 %v681, 48
      %v852 = vpop.permute.xlu0 %851
      %853 = vrot.lane.b32.xlu0 %v682, 48
      %v854 = vpop.permute.xlu0 %853
      %855 = vrot.lane.b32.xlu0 %v683, 48
      %v856 = vpop.permute.xlu0 %855
      %857 = vrot.lane.b32.xlu0 %v684, 48
      %v858 = vpop.permute.xlu0 %857
      %859 = vrot.lane.b32.xlu0 %v685, 48
      %v860 = vpop.permute.xlu0 %859
      %861 = vrot.lane.b32.xlu0 %v686, 48
      %v862 = vpop.permute.xlu0 %861
      %863 = vrot.lane.b32.xlu0 %v687, 48
      %v864 = vpop.permute.xlu0 %863
      %865 = vrot.lane.b32.xlu0 %v688, 48
      %v866 = vpop.permute.xlu0 %865
      %875 = vrot.lane.b32.xlu0 %v411, 56
      %v876 = vpop.permute.xlu0 %875
      %877 = vrot.lane.b32.xlu0 %v412, 56
      %v878 = vpop.permute.xlu0 %877
      %879 = vrot.lane.b32.xlu0 %v413, 56
      %v880 = vpop.permute.xlu0 %879
      %881 = vrot.lane.b32.xlu0 %v414, 56
      %v882 = vpop.permute.xlu0 %881
      %883 = vrot.lane.b32.xlu0 %v415, 56
      %v884 = vpop.permute.xlu0 %883
      %885 = vrot.lane.b32.xlu0 %v416, 56
      %v886 = vpop.permute.xlu0 %885
      %887 = vrot.lane.b32.xlu0 %v417, 56
      %v888 = vpop.permute.xlu0 %887
      %889 = vrot.lane.b32.xlu0 0.0, 56
      %v890 = vpop.permute.xlu0 %889
      %907 = vrot.lane.b32.xlu0 %v691, 64
      %v908 = vpop.permute.xlu0 %907
      %909 = vrot.lane.b32.xlu0 %v692, 64
      %v910 = vpop.permute.xlu0 %909
      %911 = vrot.lane.b32.xlu0 %v693, 64
      %v912 = vpop.permute.xlu0 %911
      %913 = vrot.lane.b32.xlu0 %v694, 64
      %v914 = vpop.permute.xlu0 %913
      %915 = vrot.lane.b32.xlu0 %v695, 64
      %v916 = vpop.permute.xlu0 %915
      %917 = vrot.lane.b32.xlu0 %v696, 64
      %v918 = vpop.permute.xlu0 %917
      %919 = vrot.lane.b32.xlu0 %v697, 64
      %v920 = vpop.permute.xlu0 %919
      %921 = vrot.lane.b32.xlu0 %v698, 64
      %v922 = vpop.permute.xlu0 %921
      %vm931 = vcmask 64512
      %v932 = vsel %vm931, %v599, %v700
      %v933 = vsel %vm931, %v600, %v702
      %v934 = vsel %vm931, %v601, %v704
      %v935 = vsel %vm931, %v602, %v706
      %v936 = vsel %vm931, %v603, %v708
      %v937 = vsel %vm931, %v604, %v710
      %v938 = vsel %vm931, %v605, %v712
      %v939 = vsel %vm931, %v606, %v714
      %vm940 = vcmask 130048
      %v941 = vsel %vm940, %v932, %v732
      %v942 = vsel %vm940, %v933, %v734
      %v943 = vsel %vm940, %v934, %v736
      %v944 = vsel %vm940, %v935, %v738
      %v945 = vsel %vm940, %v936, %v740
      %v946 = vsel %vm940, %v937, %v742
      %v947 = vsel %vm940, %v938, %v744
      %v948 = vsel %vm940, %v939, %v746
      %vm949 = vcmask 195584
      %v950 = vsel %vm949, %v941, %v764
      %v951 = vsel %vm949, %v942, %v766
      %v952 = vsel %vm949, %v943, %v768
      %v953 = vsel %vm949, %v944, %v770
      %v954 = vsel %vm949, %v945, %v772
      %v955 = vsel %vm949, %v946, %v774
      %v956 = vsel %vm949, %v947, %v776
      %v957 = vsel %vm949, %v948, %v778
      %vm958 = vcmask 261120
      %v959 = vsel %vm958, %v950, %v788
      %v960 = vsel %vm958, %v951, %v790
      %v961 = vsel %vm958, %v952, %v792
      %v962 = vsel %vm958, %v953, %v794
      %v963 = vsel %vm958, %v954, %v796
      %v964 = vsel %vm958, %v955, %v798
      %v965 = vsel %vm958, %v956, %v800
      %v966 = vsel %vm958, %v957, %v802
      %vm967 = vcmask 326656
      %v968 = vsel %vm967, %v959, %v820
      %v969 = vsel %vm967, %v960, %v822
      %v970 = vsel %vm967, %v961, %v824
      %v971 = vsel %vm967, %v962, %v826
      %v972 = vsel %vm967, %v963, %v828
      %v973 = vsel %vm967, %v964, %v830
      %v974 = vsel %vm967, %v965, %v832
      %v975 = vsel %vm967, %v966, %v834
      %vm976 = vcmask 392192
      %v977 = vsel %vm976, %v968, %v852
      %v978 = vsel %vm976, %v969, %v854
      %v979 = vsel %vm976, %v970, %v856
      %v980 = vsel %vm976, %v971, %v858
      %v981 = vsel %vm976, %v972, %v860
      %v982 = vsel %vm976, %v973, %v862
      %v983 = vsel %vm976, %v974, %v864
      %v984 = vsel %vm976, %v975, %v866
      %vm985 = vcmask 457728
      %v986 = vsel %vm985, %v977, %v876
      %v987 = vsel %vm985, %v978, %v878
      %v988 = vsel %vm985, %v979, %v880
      %v989 = vsel %vm985, %v980, %v882
      %v990 = vsel %vm985, %v981, %v884
      %v991 = vsel %vm985, %v982, %v886
      %v992 = vsel %vm985, %v983, %v888
      %v993 = vsel %vm985, %v984, %v890
      %vm994 = vcmask 523264
      %v995 = vsel %vm994, %v986, %v908
      %v996 = vsel %vm994, %v987, %v910
      %v997 = vsel %vm994, %v988, %v912
      %v998 = vsel %vm994, %v989, %v914
      %v999 = vsel %vm994, %v990, %v916
      %v1000 = vsel %vm994, %v991, %v918
      %v1001 = vsel %vm994, %v992, %v920
      %v1002 = vsel %vm994, %v993, %v922
      %v1003 = vpack.c.bf16 %v996, %v995
      %v1004 = vpack.c.bf16 %v998, %v997
      %v1005 = vpack.c.bf16 %v1000, %v999
      %v1006 = vpack.c.bf16 %v1002, %v1001
      %v1016 = vunpack.c.l.b16 %v418
      %v1017 = vunpack.c.l.b16 %v419
      %v1018 = vunpack.c.l.b16 %v420
      %v1019 = vunpack.c.l.b16 %v421
      %v1020 = vunpack.c.l.b16 %v422
      %v1021 = vunpack.c.l.b16 %v423
      %v1022 = vunpack.c.l.b16 %v424
      %v1023 = vunpack.c.l.b16 %v425
      %v1024 = vunpack.c.l.b16 %v426
      %v1025 = vpack.c.b16 %v1017, %v1016
      %v1026 = vpack.c.b16 %v1019, %v1018
      %v1027 = vpack.c.b16 %v1021, %v1020
      %v1028 = vpack.c.b16 %v1023, %v1022
      %v1029 = vpack.c.b16 %v1024, %v1024
      %vm1034 = vcmask 588800
      %v1036 = vsel %vm1034, %v1003, 0
      %v1039 = vsel %vm1034, %v1004, 0
      %v1042 = vsel %vm1034, %v1005, 0
      %v1045 = vsel %vm1034, %v1006, 0
      %vm1047 = vcmask 1043456
      %v1049 = vsel %vm1047, %v1029, 0
      %1051 = vmatprep.subr.bf16.mxu0 0
      %1052 = vmatpush1.bf16.msra.mxu0 %v1025
      %1053 = vmatprep.subr.bf16.mxu0 0
      %1054 = vmatpush1.bf16.msra.mxu0 %v1026
      %1055 = vmatprep.subr.bf16.mxu0 0
      %1056 = vmatpush1.bf16.msra.mxu0 %v1027
      %1057 = vmatprep.subr.bf16.mxu0 0
      %1058 = vmatpush1.bf16.msra.mxu0 %v1028
      %1059 = vmatprep.subr.bf16.mxu0 0
      %1060 = vmatpush1.bf16.msra.mxu0 %v1049
      %1061 = vmatprep.subr.bf16.mxu0 0
      %1062 = vmatpush1.bf16.msra.mxu0 0
      %1063 = vmatprep.subr.bf16.mxu0 0
      %1064 = vmatpush1.bf16.msra.mxu0 0
      %1065 = vmatprep.subr.bf16.mxu0 0
      %1066 = vmatpush1.bf16.msra.mxu0 0
      %1067 = vmatprep.subr.bf16.mxu0 0
      %1068 = vmatpush1.bf16.msra.mxu0 0
      %1069 = vmatprep.subr.bf16.mxu0 0
      %1070 = vmatpush1.bf16.msra.mxu0 0
      %1071 = vmatprep.subr.bf16.mxu0 0
      %1072 = vmatpush1.bf16.msra.mxu0 0
      %1073 = vmatprep.subr.bf16.mxu0 0
      %1074 = vmatpush1.bf16.msra.mxu0 0
      %1075 = vmatprep.subr.bf16.mxu0 0
      %1076 = vmatpush1.bf16.msra.mxu0 0
      %1077 = vmatprep.subr.bf16.mxu0 0
      %1078 = vmatpush1.bf16.msra.mxu0 0
      %1079 = vmatprep.subr.bf16.mxu0 0
      %1080 = vmatpush1.bf16.msra.mxu0 0
      %1081 = vmatprep.subr.bf16.mxu0 0
      %1082 = vmatpush1.bf16.msra.mxu0 0
      %1083 = vmatprep.mubr.bf16.mxu0 0
      %1084 = vmatmul.mubr.bf16.gmra.mrb[0].mxu0 %v1036
      %v1085 = vpop.f32.mrb[0].mxu0
      %v1086 = vadd.f32 0.0, %v1085
      %v1087 = vpop.f32.mrb[0].mxu0
      %v1088 = vpop.f32.mrb[0].mxu0
      %v1089 = vadd.f32 0.0, %v1088
      %v1090 = vpop.f32.mrb[0].mxu0
      %1091 = vmatprep.mubr.bf16.mxu0 0
      %1092 = vmatmul.mubr.bf16.gmra.mrb[0].mxu0 %v1039
      %v1093 = vpop.f32.mrb[0].mxu0
      %v1094 = vadd.f32 0.0, %v1093
      %v1095 = vpop.f32.mrb[0].mxu0
      %v1096 = vpop.f32.mrb[0].mxu0
      %v1097 = vadd.f32 0.0, %v1096
      %v1098 = vpop.f32.mrb[0].mxu0
      %1099 = vmatprep.mubr.bf16.mxu0 0
      %1100 = vmatmul.mubr.bf16.gmra.mrb[0].mxu0 %v1042
      %v1101 = vpop.f32.mrb[0].mxu0
      %v1102 = vadd.f32 0.0, %v1101
      %v1103 = vpop.f32.mrb[0].mxu0
      %v1104 = vpop.f32.mrb[0].mxu0
      %v1105 = vadd.f32 0.0, %v1104
      %v1106 = vpop.f32.mrb[0].mxu0
      %1107 = vmatprep.mubr.bf16.mxu0 0
      %1108 = vmatmul.mubr.bf16.gmra.mrb[0].mxu0 %v1045
      %v1109 = vpop.f32.mrb[0].mxu0
      %v1110 = vadd.f32 0.0, %v1109
      %v1111 = vpop.f32.mrb[0].mxu0
      %v1112 = vpop.f32.mrb[0].mxu0
      %v1113 = vadd.f32 0.0, %v1112
      %v1114 = vpop.f32.mrb[0].mxu0
      %1115 = vdwg.mxu0
      %v1117 = vlaneseq
      %v1118 = vshrl.u32 %v1117, 7
      %v1119 = vsub.s32 0, %v1118
      %v1120 = vrot.slane %v427, %v1119
      %v1122 = vmul.f32 %v1086, %v1120
      %v1123 = vmul.f32 %v1089, %v1120
      %v1124 = vmul.f32 %v1094, %v1120
      %v1125 = vmul.f32 %v1097, %v1120
      %v1126 = vmul.f32 %v1102, %v1120
      %v1127 = vmul.f32 %v1105, %v1120
      %v1128 = vmul.f32 %v1110, %v1120
      %v1129 = vmul.f32 %v1113, %v1120
      %v1131 = vlaneseq
      %v1132 = vshrl.u32 %v1131, 7
      %v1133 = vsub.s32 0, %v1132
      %v1134 = vrot.slane %v428, %v1133
      %v1136 = vadd.f32 %v1122, %v1134
      %v1137 = vadd.f32 %v1123, %v1134
      %v1138 = vadd.f32 %v1124, %v1134
      %v1139 = vadd.f32 %v1125, %v1134
      %v1140 = vadd.f32 %v1126, %v1134
      %v1141 = vadd.f32 %v1127, %v1134
      %v1142 = vadd.f32 %v1128, %v1134
      %v1143 = vadd.f32 %v1129, %v1134
      %v1144 = vmax.f32 %v1136, 0.0
      %v1145 = vmax.f32 %v1137, 0.0
      %v1146 = vmax.f32 %v1138, 0.0
      %v1147 = vmax.f32 %v1139, 0.0
      %v1148 = vmax.f32 %v1140, 0.0
      %v1149 = vmax.f32 %v1141, 0.0
      %v1150 = vmax.f32 %v1142, 0.0
      %v1151 = vmax.f32 %v1143, 0.0
      %1152 = vst.msk [vmem:[%s388] sm:$0xff] %vm958, %v1144
      %1153 = vst.msk [vmem:[%s388 + $0x8] sm:$0xff] %vm958, %v1145
      %1154 = vst.msk [vmem:[%s388 + $0x10] sm:$0xff] %vm958, %v1146
      %1155 = vst.msk [vmem:[%s388 + $0x18] sm:$0xff] %vm958, %v1147
      %1156 = vst.msk [vmem:[%s388 + $0x20] sm:$0xff] %vm958, %v1148
      %1157 = vst.msk [vmem:[%s388 + $0x28] sm:$0xff] %vm958, %v1149
      %1158 = vst.msk [vmem:[%s388 + $0x30] sm:$0xff] %vm958, %v1150
      %1159 = vst.msk [vmem:[%s388 + $0x38] sm:$0xff] %vm958, %v1151
      %1168 = vrot.lane.b32.xlu0 %v1144, 96
      %v1169 = vpop.permute.xlu0 %1168
      %1170 = vrot.lane.b32.xlu0 %v1145, 96
      %v1171 = vpop.permute.xlu0 %1170
      %1172 = vrot.lane.b32.xlu0 %v1146, 96
      %v1173 = vpop.permute.xlu0 %1172
      %1174 = vrot.lane.b32.xlu0 %v1147, 96
      %v1175 = vpop.permute.xlu0 %1174
      %1176 = vrot.lane.b32.xlu0 %v1148, 96
      %v1177 = vpop.permute.xlu0 %1176
      %1178 = vrot.lane.b32.xlu0 %v1149, 96
      %v1179 = vpop.permute.xlu0 %1178
      %1180 = vrot.lane.b32.xlu0 %v1150, 96
      %v1181 = vpop.permute.xlu0 %1180
      %1182 = vrot.lane.b32.xlu0 %v1151, 96
      %v1183 = vpop.permute.xlu0 %1182
      %1192 = vst.msk [vmem:[%s393] sm:$0xff] %vm958, %v1169
      %1193 = vst.msk [vmem:[%s393 + $0x8] sm:$0xff] %vm958, %v1171
      %1194 = vst.msk [vmem:[%s393 + $0x10] sm:$0xff] %vm958, %v1173
      %1195 = vst.msk [vmem:[%s393 + $0x18] sm:$0xff] %vm958, %v1175
      %1196 = vst.msk [vmem:[%s393 + $0x20] sm:$0xff] %vm958, %v1177
      %1197 = vst.msk [vmem:[%s393 + $0x28] sm:$0xff] %vm958, %v1179
      %1198 = vst.msk [vmem:[%s393 + $0x30] sm:$0xff] %vm958, %v1181
      %1199 = vst.msk [vmem:[%s393 + $0x38] sm:$0xff] %vm958, %v1183
      %v1200 = vpack.c.bf16 %v1145, %v1144
      %v1201 = vpack.c.bf16 %v1147, %v1146
      %v1202 = vpack.c.bf16 %v1149, %v1148
      %v1203 = vpack.c.bf16 %v1151, %v1150
      %v1204 = vld [vmem:[%s4] sm:$0xf]
      %v1205 = vld [vmem:[%s4 + $0x4] sm:$0xf]
      %v1206 = vld [vmem:[%s4 + $0x8] sm:$0xf]
      %v1207 = vld [vmem:[%s4 + $0xc] sm:$0xf]
      %v1208 = vld [vmem:[%s5] sm:$0x1]
      %v1210 = vlaneseq
      %v1211 = vshrl.u32 %v1210, 7
      %v1212 = vsub.s32 0, %v1211
      %v1213 = vrot.slane %v1208, %v1212
      %v1219 = vunpack.c.l.b16 %v1204
      %v1220 = vunpack.c.l.b16 %v1205
      %v1221 = vunpack.c.l.b16 %v1206
      %v1222 = vunpack.c.l.b16 %v1207
      %v1223 = vpack.c.b16 %v1220, %v1219
      %v1224 = vpack.c.b16 %v1222, %v1221
      %v1228 = vsel %vm958, %v1200, 0
      %v1231 = vsel %vm958, %v1201, 0
      %v1234 = vsel %vm958, %v1202, 0
      %v1237 = vsel %vm958, %v1203, 0
      %1239 = vmatprep.subr.bf16.mxu0 0
      %1240 = vmatpush1.bf16.msra.mxu0 %v1223
      %1241 = vmatprep.subr.bf16.mxu0 0
      %1242 = vmatpush1.bf16.msra.mxu0 %v1224
      %1243 = vmatprep.subr.bf16.mxu0 0
      %1244 = vmatpush1.bf16.msra.mxu0 0
      %1245 = vmatprep.subr.bf16.mxu0 0
      %1246 = vmatpush1.bf16.msra.mxu0 0
      %1247 = vmatprep.subr.bf16.mxu0 0
      %1248 = vmatpush1.bf16.msra.mxu0 0
      %1249 = vmatprep.subr.bf16.mxu0 0
      %1250 = vmatpush1.bf16.msra.mxu0 0
      %1251 = vmatprep.subr.bf16.mxu0 0
      %1252 = vmatpush1.bf16.msra.mxu0 0
      %1253 = vmatprep.subr.bf16.mxu0 0
      %1254 = vmatpush1.bf16.msra.mxu0 0
      %1255 = vmatprep.subr.bf16.mxu0 0
      %1256 = vmatpush1.bf16.msra.mxu0 0
      %1257 = vmatprep.subr.bf16.mxu0 0
      %1258 = vmatpush1.bf16.msra.mxu0 0
      %1259 = vmatprep.subr.bf16.mxu0 0
      %1260 = vmatpush1.bf16.msra.mxu0 0
      %1261 = vmatprep.subr.bf16.mxu0 0
      %1262 = vmatpush1.bf16.msra.mxu0 0
      %1263 = vmatprep.subr.bf16.mxu0 0
      %1264 = vmatpush1.bf16.msra.mxu0 0
      %1265 = vmatprep.subr.bf16.mxu0 0
      %1266 = vmatpush1.bf16.msra.mxu0 0
      %1267 = vmatprep.subr.bf16.mxu0 0
      %1268 = vmatpush1.bf16.msra.mxu0 0
      %1269 = vmatprep.subr.bf16.mxu0 0
      %1270 = vmatpush1.bf16.msra.mxu0 0
      %1271 = vmatprep.mubr.bf16.mxu0 0
      %1272 = vmatmul.mubr.bf16.gmra.mrb[0].mxu0 %v1228
      %v1273 = vpop.f32.mrb[0].mxu0
      %v1274 = vadd.f32 %v1213, %v1273
      %v1275 = vpop.f32.mrb[0].mxu0
      %v1276 = vpop.f32.mrb[0].mxu0
      %v1277 = vadd.f32 %v1213, %v1276
      %v1278 = vpop.f32.mrb[0].mxu0
      %1279 = vmatprep.mubr.bf16.mxu0 0
      %1280 = vmatmul.mubr.bf16.gmra.mrb[0].mxu0 %v1231
      %v1281 = vpop.f32.mrb[0].mxu0
      %v1282 = vadd.f32 %v1213, %v1281
      %v1283 = vpop.f32.mrb[0].mxu0
      %v1284 = vpop.f32.mrb[0].mxu0
      %v1285 = vadd.f32 %v1213, %v1284
      %v1286 = vpop.f32.mrb[0].mxu0
      %1287 = vmatprep.mubr.bf16.mxu0 0
      %1288 = vmatmul.mubr.bf16.gmra.mrb[0].mxu0 %v1234
      %v1289 = vpop.f32.mrb[0].mxu0
      %v1290 = vadd.f32 %v1213, %v1289
      %v1291 = vpop.f32.mrb[0].mxu0
      %v1292 = vpop.f32.mrb[0].mxu0
      %v1293 = vadd.f32 %v1213, %v1292
      %v1294 = vpop.f32.mrb[0].mxu0
      %1295 = vmatprep.mubr.bf16.mxu0 0
      %1296 = vmatmul.mubr.bf16.gmra.mrb[0].mxu0 %v1237
      %v1297 = vpop.f32.mrb[0].mxu0
      %v1298 = vadd.f32 %v1213, %v1297
      %v1299 = vpop.f32.mrb[0].mxu0
      %v1300 = vpop.f32.mrb[0].mxu0
      %v1301 = vadd.f32 %v1213, %v1300
      %v1302 = vpop.f32.mrb[0].mxu0
      %1303 = vdwg.mxu0
      %vm1304 = vcmask 31744
      %1305 = vst.msk [vmem:[%s398] sm:$0xff] %vm1304, %v1274
      %1306 = vst.msk [vmem:[%s398 + $0x8] sm:$0xff] %vm1304, %v1277
      %1307 = vst.msk [vmem:[%s398 + $0x10] sm:$0xff] %vm1304, %v1282
      %1308 = vst.msk [vmem:[%s398 + $0x18] sm:$0xff] %vm1304, %v1285
      %1309 = vst.msk [vmem:[%s398 + $0x20] sm:$0xff] %vm1304, %v1290
      %1310 = vst.msk [vmem:[%s398 + $0x28] sm:$0xff] %vm1304, %v1293
      %1311 = vst.msk [vmem:[%s398 + $0x30] sm:$0xff] %vm1304, %v1298
      %1312 = vst.msk [vmem:[%s398 + $0x38] sm:$0xff] %vm1304, %v1301
      %1321 = vrot.lane.b32.xlu0 %v1274, 124
      %v1322 = vpop.permute.xlu0 %1321
      %1323 = vrot.lane.b32.xlu0 %v1277, 124
      %v1324 = vpop.permute.xlu0 %1323
      %1325 = vrot.lane.b32.xlu0 %v1282, 124
      %v1326 = vpop.permute.xlu0 %1325
      %1327 = vrot.lane.b32.xlu0 %v1285, 124
      %v1328 = vpop.permute.xlu0 %1327
      %1329 = vrot.lane.b32.xlu0 %v1290, 124
      %v1330 = vpop.permute.xlu0 %1329
      %1331 = vrot.lane.b32.xlu0 %v1293, 124
      %v1332 = vpop.permute.xlu0 %1331
      %1333 = vrot.lane.b32.xlu0 %v1298, 124
      %v1334 = vpop.permute.xlu0 %1333
      %1335 = vrot.lane.b32.xlu0 %v1301, 124
      %v1336 = vpop.permute.xlu0 %1335
      %1345 = vst.msk [vmem:[%s403] sm:$0xff] %vm1304, %v1322
      %1346 = vst.msk [vmem:[%s403 + $0x8] sm:$0xff] %vm1304, %v1324
      %1347 = vst.msk [vmem:[%s403 + $0x10] sm:$0xff] %vm1304, %v1326
      %1348 = vst.msk [vmem:[%s403 + $0x18] sm:$0xff] %vm1304, %v1328
      %1349 = vst.msk [vmem:[%s403 + $0x20] sm:$0xff] %vm1304, %v1330
      %1350 = vst.msk [vmem:[%s403 + $0x28] sm:$0xff] %vm1304, %v1332
      %1351 = vst.msk [vmem:[%s403 + $0x30] sm:$0xff] %vm1304, %v1334
      %1352 = vst.msk [vmem:[%s403 + $0x38] sm:$0xff] %vm1304, %v1336
      %1353 = vrot.lane.b32.xlu0 %v1274, 120
      %v1354 = vpop.permute.xlu0 %1353
      %1355 = vrot.lane.b32.xlu0 %v1277, 120
      %v1356 = vpop.permute.xlu0 %1355
      %1357 = vrot.lane.b32.xlu0 %v1282, 120
      %v1358 = vpop.permute.xlu0 %1357
      %1359 = vrot.lane.b32.xlu0 %v1285, 120
      %v1360 = vpop.permute.xlu0 %1359
      %1361 = vrot.lane.b32.xlu0 %v1290, 120
      %v1362 = vpop.permute.xlu0 %1361
      %1363 = vrot.lane.b32.xlu0 %v1293, 120
      %v1364 = vpop.permute.xlu0 %1363
      %1365 = vrot.lane.b32.xlu0 %v1298, 120
      %v1366 = vpop.permute.xlu0 %1365
      %1367 = vrot.lane.b32.xlu0 %v1301, 120
      %v1368 = vpop.permute.xlu0 %1367
      %1377 = vst.msk [vmem:[%s408] sm:$0xff] %vm958, %v1354
      %1378 = vst.msk [vmem:[%s408 + $0x8] sm:$0xff] %vm958, %v1356
      %1379 = vst.msk [vmem:[%s408 + $0x10] sm:$0xff] %vm958, %v1358
      %1380 = vst.msk [vmem:[%s408 + $0x18] sm:$0xff] %vm958, %v1360
      %1381 = vst.msk [vmem:[%s408 + $0x20] sm:$0xff] %vm958, %v1362
      %1382 = vst.msk [vmem:[%s408 + $0x28] sm:$0xff] %vm958, %v1364
      %1383 = vst.msk [vmem:[%s408 + $0x30] sm:$0xff] %vm958, %v1366
      %1384 = vst.msk [vmem:[%s408 + $0x38] sm:$0xff] %vm958, %v1368
      %p1385 = scmp.lt.s32.totalorder %s22, 1
      %s1386 = scalar_select %p1385, %s22, 1
      %s1387 = smul.addr %s1386, 8
      %s1388 = smul.addr %s1387, 8
      %s1389 = scalar_lea.vmem %s6, %s1388
      %p1390 = scmp.lt.s32.totalorder %s22, 1
      %s1391 = scalar_select %p1390, %s22, 1
      %s1392 = smul.addr %s1391, 8
      %s1393 = smul.addr %s1392, 8
      %s1394 = scalar_lea.vmem %s7, %s1393
      %p1395 = scmp.lt.s32.totalorder %s22, 1
      %s1396 = scalar_select %p1395, %s22, 1
      %s1397 = smul.addr %s1396, 8
      %s1398 = smul.addr %s1397, 8
      %s1399 = scalar_lea.vmem %s8, %s1398
      %p1400 = scmp.lt.s32.totalorder %s22, 1
      %s1401 = scalar_select %p1400, %s22, 1
      %s1402 = smul.addr %s1401, 8
      %s1403 = smul.addr %s1402, 8
      %s1404 = scalar_lea.vmem %s9, %s1403
      %p1405 = scmp.lt.s32.totalorder %s22, 1
      %s1406 = scalar_select %p1405, %s22, 1
      %s1407 = smul.addr %s1406, 8
      %s1408 = smul.addr %s1407, 8
      %s1409 = scalar_lea.vmem %s10, %s1408
      // Predicated region
      $region45: #{danet_head.3} parent=43 // pred_check
        %p1410 = pneg %p171
      $region46: #{danet_head.3} parent=43 // pred_check_branch
        %1412 = sbr.rel (%p1410) target = $region48
      $region47: #{danet_head.3} parent=43 // pred_region
        _
      $region48: #{danet_head.3} parent=43 // pred_fallthru
        _
      // Predicated region
      $region49: #{danet_head.3} parent=43 // pred_check
        %p1413 = pneg %p197
      $region50: #{danet_head.3} parent=43 // pred_check_branch
        %1415 = sbr.rel (%p1413) target = $region52
      $region51: #{danet_head.3} parent=43 // pred_region
        _
      $region52: #{danet_head.3} parent=43 // pred_fallthru
        _
      // Predicated region
      $region53: #{danet_head.3} parent=43 // pred_check
        %p1416 = pneg %p223
      $region54: #{danet_head.3} parent=43 // pred_check_branch
        %1418 = sbr.rel (%p1416) target = $region56
      $region55: #{danet_head.3} parent=43 // pred_region
        _
      $region56: #{danet_head.3} parent=43 // pred_fallthru
        _
      // Predicated region
      $region57: #{danet_head.3} parent=43 // pred_check
        %p1419 = pneg %p249
      $region58: #{danet_head.3} parent=43 // pred_check_branch
        %1421 = sbr.rel (%p1419) target = $region60
      $region59: #{danet_head.3} parent=43 // pred_region
        _
      $region60: #{danet_head.3} parent=43 // pred_fallthru
        _
      // Predicated region
      $region61: #{danet_head.3} parent=43 // pred_check
        %p1422 = pneg %p275
      $region62: #{danet_head.3} parent=43 // pred_check_branch
        %1424 = sbr.rel (%p1422) target = $region64
      $region63: #{danet_head.3} parent=43 // pred_region
        _
      $region64: #{danet_head.3} parent=43 // pred_fallthru
        _
    $region44: #{danet_head.3} parent=5 // pred_fallthru
      _
    %p1425 = scmp.le.s32.totalorder 2, %s17
    // Predicated region
    $region65: #{danet_head.3} parent=5 // pred_check
      %p1426 = pneg %p1425
    $region66: #{danet_head.3} parent=5 // pred_check_branch
      %1428 = sbr.rel (%p1426) target = $region68
    $region67: #{danet_head.3} parent=5 // pred_region
      %s1429 = ssub.s32 %s17, 2
      // Predicated region
      $region69: #{danet_head.3} parent=67 // pred_check
        %p1430 = pneg %p177
      $region70: #{danet_head.3} parent=67 // pred_check_branch
        %1432 = sbr.rel (%p1430) target = $region72
      $region71: #{danet_head.3} parent=67 // pred_region
        %p1433 = scmp.lt.s32.totalorder %s23, 1
        %s1434 = scalar_select %p1433, %s23, 1
        %s1435 = smul.addr %s1434, 8
        %s1436 = smul.addr %s1435, 8
        %s1437 = scalar_lea.vmem %s6, %s1436
      $region72: #{danet_head.3} parent=67 // pred_fallthru
        _
      // Predicated region
      $region73: #{danet_head.3} parent=67 // pred_check
        %p1438 = pneg %p203
      $region74: #{danet_head.3} parent=67 // pred_check_branch
        %1440 = sbr.rel (%p1438) target = $region76
      $region75: #{danet_head.3} parent=67 // pred_region
        %p1441 = scmp.lt.s32.totalorder %s23, 1
        %s1442 = scalar_select %p1441, %s23, 1
        %s1443 = smul.addr %s1442, 8
        %s1444 = smul.addr %s1443, 8
        %s1445 = scalar_lea.vmem %s7, %s1444
      $region76: #{danet_head.3} parent=67 // pred_fallthru
        _
      // Predicated region
      $region77: #{danet_head.3} parent=67 // pred_check
        %p1446 = pneg %p229
      $region78: #{danet_head.3} parent=67 // pred_check_branch
        %1448 = sbr.rel (%p1446) target = $region80
      $region79: #{danet_head.3} parent=67 // pred_region
        %p1449 = scmp.lt.s32.totalorder %s23, 1
        %s1450 = scalar_select %p1449, %s23, 1
        %s1451 = smul.addr %s1450, 8
        %s1452 = smul.addr %s1451, 8
        %s1453 = scalar_lea.vmem %s8, %s1452
      $region80: #{danet_head.3} parent=67 // pred_fallthru
        _
      // Predicated region
      $region81: #{danet_head.3} parent=67 // pred_check
        %p1454 = pneg %p255
      $region82: #{danet_head.3} parent=67 // pred_check_branch
        %1456 = sbr.rel (%p1454) target = $region84
      $region83: #{danet_head.3} parent=67 // pred_region
        %p1457 = scmp.lt.s32.totalorder %s23, 1
        %s1458 = scalar_select %p1457, %s23, 1
        %s1459 = smul.addr %s1458, 8
        %s1460 = smul.addr %s1459, 8
        %s1461 = scalar_lea.vmem %s9, %s1460
      $region84: #{danet_head.3} parent=67 // pred_fallthru
        _
      // Predicated region
      $region85: #{danet_head.3} parent=67 // pred_check
        %p1462 = pneg %p281
      $region86: #{danet_head.3} parent=67 // pred_check_branch
        %1464 = sbr.rel (%p1462) target = $region88
      $region87: #{danet_head.3} parent=67 // pred_region
        %p1465 = scmp.lt.s32.totalorder %s23, 1
        %s1466 = scalar_select %p1465, %s23, 1
        %s1467 = smul.addr %s1466, 8
        %s1468 = smul.addr %s1467, 8
        %s1469 = scalar_lea.vmem %s10, %s1468
      $region88: #{danet_head.3} parent=67 // pred_fallthru
        _
    $region68: #{danet_head.3} parent=5 // pred_fallthru
      _
  $region6: #{danet_head.3} parent=0 // loop_footer
    %s21 = sadd.s32 1, %s17
  $region7: #{danet_head.3} parent=0 // loop_footer_branch
    %16 = sbr.rel target = $region3
  $region8: #{danet_head.3} parent=0 // loop_exit
    _

// kernel: danet_head.5
$region0: #{danet_head.5}
  #allocation0 [shape = 'u32[]', space=smem, size = 0x4, offset = 0x4, fixed_abs, tag = 'smem constant byte address 0x4 - core index']
  #allocation1 [shape = 'u32[144,128]{1,0:T(1,128)}', space=vmem, size = 0x12000, scoped, tag = 'internal scratch']
  #allocation2 [shape = 'f32[1,1]{1,0:T(1,128)S(1)}', space=vmem, size = 0x200, scoped, tag = 'scoped memory for danet_head.5']
  %s0 = inlined_call_operand.vmem [shape: f32[2,8,8,32], index: 0, kind: input, shape index: {}]
  %s1 = inlined_call_operand.vmem [shape: f32[2,8,8,32], index: 1, kind: input, shape index: {}]
  %s2 = inlined_call_operand.vmem [shape: f32[2,8,8,32], index: 2, kind: input, shape index: {}]
  %s3 = inlined_call_operand.<no memory space> [shape: f32[1,1], index: 3, kind: input, shape index: {}]
  %s4 = inlined_call_operand.vmem [shape: bf16[288,32], index: 4, kind: input, shape index: {}]
  %s5 = inlined_call_operand.vmem [shape: f32[1,32], index: 5, kind: input, shape index: {}]
  %s6 = inlined_call_operand.vmem [shape: f32[1,32], index: 6, kind: input, shape index: {}]
  %s7 = inlined_call_operand.vmem [shape: bf16[288,32], index: 7, kind: input, shape index: {}]
  %s8 = inlined_call_operand.vmem [shape: f32[1,32], index: 8, kind: input, shape index: {}]
  %s9 = inlined_call_operand.vmem [shape: f32[1,32], index: 9, kind: input, shape index: {}]
  %s10 = inlined_call_operand.vmem [shape: bf16[32,32], index: 10, kind: input, shape index: {}]
  %s11 = inlined_call_operand.vmem [shape: f32[1,32], index: 11, kind: input, shape index: {}]
  %s12 = inlined_call_operand.hbm [shape: f32[2,8,8,32], index: 12, kind: output, shape index: {}]
  %s13 = sld [smem:[#allocation0]]
  $region81: #{danet_head.5} parent=0
    _
  %s15 = ssub.s32 1, %s13
  %s16 = scalar_select 0, %s15, %s13
  %v17 = vstv %s3
  %18 = vst [vmem:[#allocation2] sm:$0x1] %v17
  $region1: #{danet_head.5} parent=0
    #allocation3 [shape = 'u8[65536]{0}', space=vmem, size = 0x10000, scoped, tag = 'output window, operand 0']
    #allocation4 [shape = 's32[2]{0}', space=sflag, size = 0x8, scoped, tag = 'scoped memory for danet_head.5']
    %19 = vsyncpa [#allocation4], 0
    %s20 = scalar_lea.sflag [#allocation4], 1
    %21 = vsyncpa %s20, 0
    loop: start=0, step=1, limit=4
    $region2: #{danet_head.5} parent=1 // loop_pre_header
      _
    $region3: #{danet_head.5} parent=1 // loop_header
      %s23 = sphi 0, %s27
      %p24 = scmp.ge.s32.totalorder %s23, 4
      %s33 = sphi 0, %s35
      %s36 = sphi 0, %s33
      %s37 = sphi 0, %s36
      %s53 = sphi 0, %s37
      %s59 = sphi 0, %s61
      %s62 = sphi 0, %s59
      %s63 = sphi 0, %s62
      %s79 = sphi 0, %s63
      %s85 = sphi 0, %s87
      %s88 = sphi 0, %s85
      %s89 = sphi 0, %s88
      %s105 = sphi 0, %s89
      %s109 = sphi 0, %s109
      %s111 = sphi 0, %s109
      %s112 = sphi 0, %s111
      %s126 = sphi 0, %s112
      %s130 = sphi 0, %s130
      %s132 = sphi 0, %s130
      %s133 = sphi 0, %s132
      %s147 = sphi 0, %s133
      %s151 = sphi 0, %s151
      %s153 = sphi 0, %s151
      %s154 = sphi 0, %s153
      %s168 = sphi 0, %s154
      %s172 = sphi 0, %s172
      %s174 = sphi 0, %s172
      %s175 = sphi 0, %s174
      %s189 = sphi 0, %s175
      %s193 = sphi 0, %s193
      %s195 = sphi 0, %s193
      %s196 = sphi 0, %s195
      %s210 = sphi 0, %s196
      %s214 = sphi 0, %s214
      %s216 = sphi 0, %s214
      %s217 = sphi 0, %s216
      %s231 = sphi 0, %s217
      %s235 = sphi 0, %s235
      %s237 = sphi 0, %s235
      %s238 = sphi 0, %s237
      %s252 = sphi 0, %s238
      %s256 = sphi 0, %s256
      %s258 = sphi 0, %s256
      %s259 = sphi 0, %s258
      %s273 = sphi 0, %s259
      %s277 = sphi 0, %s277
      %s279 = sphi 0, %s277
      %s280 = sphi 0, %s279
      %s294 = sphi 0, %s280
      %s300 = sphi 0, %s302
      %s303 = sphi 0, %s300
      %s304 = sphi 0, %s303
      %s320 = sphi 0, %s304
    $region4: #{danet_head.5} parent=1 // loop_header_branch
      %26 = sbr.rel (%p24) target = $region8
    $region5: #{danet_head.5} parent=1 // loop_body
      %s28 = ssub.s32 %s23, 1
      %s29 = ssub.s32 %s23, 2
      %s30 = sadd.s32 %s23, 1
      %s31 = ssub.s32 %s23, %s30
      %p32 = scmp.eq.s32.totalorder %s31, 0
      %s34 = sadd.s32 %s33, 1
      %s35 = scalar_select %p32, %s33, %s34
      %p38 = pneg %p32
      %p39 = scmp.eq.s32.totalorder %s23, 1
      %p40 = por %p38, %p39
      %p41 = scmp.ne.s32.totalorder %s33, %s36
      %p42 = scmp.eq.s32.totalorder %s23, 0
      %p43 = por %p41, %p42
      %p44 = scmp.ne.s32.totalorder %s33, %s36
      %p45 = scmp.eq.s32.totalorder %s28, 1
      %p46 = por %p44, %p45
      %p47 = scmp.ne.s32.totalorder %s36, %s37
      %p48 = scmp.eq.s32.totalorder %s28, 0
      %p49 = por %p47, %p48
      %p50 = scmp.ne.s32.totalorder %s36, %s37
      %p51 = scmp.eq.s32.totalorder %s29, 1
      %p52 = por %p50, %p51
      %p54 = scmp.ne.s32.totalorder %s37, %s53
      %p55 = scmp.eq.s32.totalorder %s29, 0
      %p56 = por %p54, %p55
      %s57 = ssub.s32 %s23, %s30
      %p58 = scmp.eq.s32.totalorder %s57, 0
      %s60 = sadd.s32 %s59, 1
      %s61 = scalar_select %p58, %s59, %s60
      %p64 = pneg %p58
      %p65 = scmp.eq.s32.totalorder %s23, 1
      %p66 = por %p64, %p65
      %p67 = scmp.ne.s32.totalorder %s59, %s62
      %p68 = scmp.eq.s32.totalorder %s23, 0
      %p69 = por %p67, %p68
      %p70 = scmp.ne.s32.totalorder %s59, %s62
      %p71 = scmp.eq.s32.totalorder %s28, 1
      %p72 = por %p70, %p71
      %p73 = scmp.ne.s32.totalorder %s62, %s63
      %p74 = scmp.eq.s32.totalorder %s28, 0
      %p75 = por %p73, %p74
      %p76 = scmp.ne.s32.totalorder %s62, %s63
      %p77 = scmp.eq.s32.totalorder %s29, 1
      %p78 = por %p76, %p77
      %p80 = scmp.ne.s32.totalorder %s63, %s79
      %p81 = scmp.eq.s32.totalorder %s29, 0
      %p82 = por %p80, %p81
      %s83 = ssub.s32 %s23, %s30
      %p84 = scmp.eq.s32.totalorder %s83, 0
      %s86 = sadd.s32 %s85, 1
      %s87 = scalar_select %p84, %s85, %s86
      %p90 = pneg %p84
      %p91 = scmp.eq.s32.totalorder %s23, 1
      %p92 = por %p90, %p91
      %p93 = scmp.ne.s32.totalorder %s85, %s88
      %p94 = scmp.eq.s32.totalorder %s23, 0
      %p95 = por %p93, %p94
      %p96 = scmp.ne.s32.totalorder %s85, %s88
      %p97 = scmp.eq.s32.totalorder %s28, 1
      %p98 = por %p96, %p97
      %p99 = scmp.ne.s32.totalorder %s88, %s89
      %p100 = scmp.eq.s32.totalorder %s28, 0
      %p101 = por %p99, %p100
      %p102 = scmp.ne.s32.totalorder %s88, %s89
      %p103 = scmp.eq.s32.totalorder %s29, 1
      %p104 = por %p102, %p103
      %p106 = scmp.ne.s32.totalorder %s89, %s105
      %p107 = scmp.eq.s32.totalorder %s29, 0
      %p108 = por %p106, %p107
      %s110 = sadd.s32 %s109, 1
      %p113 = scmp.eq.s32.totalorder %s23, 1
      %p114 = scmp.ne.s32.totalorder %s109, %s111
      %p115 = scmp.eq.s32.totalorder %s23, 0
      %p116 = por %p114, %p115
      %p117 = scmp.ne.s32.totalorder %s109, %s111
      %p118 = scmp.eq.s32.totalorder %s28, 1
      %p119 = por %p117, %p118
      %p120 = scmp.ne.s32.totalorder %s111, %s112
      %p121 = scmp.eq.s32.totalorder %s28, 0
      %p122 = por %p120, %p121
      %p123 = scmp.ne.s32.totalorder %s111, %s112
      %p124 = scmp.eq.s32.totalorder %s29, 1
      %p125 = por %p123, %p124
      %p127 = scmp.ne.s32.totalorder %s112, %s126
      %p128 = scmp.eq.s32.totalorder %s29, 0
      %p129 = por %p127, %p128
      %s131 = sadd.s32 %s130, 1
      %p134 = scmp.eq.s32.totalorder %s23, 1
      %p135 = scmp.ne.s32.totalorder %s130, %s132
      %p136 = scmp.eq.s32.totalorder %s23, 0
      %p137 = por %p135, %p136
      %p138 = scmp.ne.s32.totalorder %s130, %s132
      %p139 = scmp.eq.s32.totalorder %s28, 1
      %p140 = por %p138, %p139
      %p141 = scmp.ne.s32.totalorder %s132, %s133
      %p142 = scmp.eq.s32.totalorder %s28, 0
      %p143 = por %p141, %p142
      %p144 = scmp.ne.s32.totalorder %s132, %s133
      %p145 = scmp.eq.s32.totalorder %s29, 1
      %p146 = por %p144, %p145
      %p148 = scmp.ne.s32.totalorder %s133, %s147
      %p149 = scmp.eq.s32.totalorder %s29, 0
      %p150 = por %p148, %p149
      %s152 = sadd.s32 %s151, 1
      %p155 = scmp.eq.s32.totalorder %s23, 1
      %p156 = scmp.ne.s32.totalorder %s151, %s153
      %p157 = scmp.eq.s32.totalorder %s23, 0
      %p158 = por %p156, %p157
      %p159 = scmp.ne.s32.totalorder %s151, %s153
      %p160 = scmp.eq.s32.totalorder %s28, 1
      %p161 = por %p159, %p160
      %p162 = scmp.ne.s32.totalorder %s153, %s154
      %p163 = scmp.eq.s32.totalorder %s28, 0
      %p164 = por %p162, %p163
      %p165 = scmp.ne.s32.totalorder %s153, %s154
      %p166 = scmp.eq.s32.totalorder %s29, 1
      %p167 = por %p165, %p166
      %p169 = scmp.ne.s32.totalorder %s154, %s168
      %p170 = scmp.eq.s32.totalorder %s29, 0
      %p171 = por %p169, %p170
      %s173 = sadd.s32 %s172, 1
      %p176 = scmp.eq.s32.totalorder %s23, 1
      %p177 = scmp.ne.s32.totalorder %s172, %s174
      %p178 = scmp.eq.s32.totalorder %s23, 0
      %p179 = por %p177, %p178
      %p180 = scmp.ne.s32.totalorder %s172, %s174
      %p181 = scmp.eq.s32.totalorder %s28, 1
      %p182 = por %p180, %p181
      %p183 = scmp.ne.s32.totalorder %s174, %s175
      %p184 = scmp.eq.s32.totalorder %s28, 0
      %p185 = por %p183, %p184
      %p186 = scmp.ne.s32.totalorder %s174, %s175
      %p187 = scmp.eq.s32.totalorder %s29, 1
      %p188 = por %p186, %p187
      %p190 = scmp.ne.s32.totalorder %s175, %s189
      %p191 = scmp.eq.s32.totalorder %s29, 0
      %p192 = por %p190, %p191
      %s194 = sadd.s32 %s193, 1
      %p197 = scmp.eq.s32.totalorder %s23, 1
      %p198 = scmp.ne.s32.totalorder %s193, %s195
      %p199 = scmp.eq.s32.totalorder %s23, 0
      %p200 = por %p198, %p199
      %p201 = scmp.ne.s32.totalorder %s193, %s195
      %p202 = scmp.eq.s32.totalorder %s28, 1
      %p203 = por %p201, %p202
      %p204 = scmp.ne.s32.totalorder %s195, %s196
      %p205 = scmp.eq.s32.totalorder %s28, 0
      %p206 = por %p204, %p205
      %p207 = scmp.ne.s32.totalorder %s195, %s196
      %p208 = scmp.eq.s32.totalorder %s29, 1
      %p209 = por %p207, %p208
      %p211 = scmp.ne.s32.totalorder %s196, %s210
      %p212 = scmp.eq.s32.totalorder %s29, 0
      %p213 = por %p211, %p212
      %s215 = sadd.s32 %s214, 1
      %p218 = scmp.eq.s32.totalorder %s23, 1
      %p219 = scmp.ne.s32.totalorder %s214, %s216
      %p220 = scmp.eq.s32.totalorder %s23, 0
      %p221 = por %p219, %p220
      %p222 = scmp.ne.s32.totalorder %s214, %s216
      %p223 = scmp.eq.s32.totalorder %s28, 1
      %p224 = por %p222, %p223
      %p225 = scmp.ne.s32.totalorder %s216, %s217
      %p226 = scmp.eq.s32.totalorder %s28, 0
      %p227 = por %p225, %p226
      %p228 = scmp.ne.s32.totalorder %s216, %s217
      %p229 = scmp.eq.s32.totalorder %s29, 1
      %p230 = por %p228, %p229
      %p232 = scmp.ne.s32.totalorder %s217, %s231
      %p233 = scmp.eq.s32.totalorder %s29, 0
      %p234 = por %p232, %p233
      %s236 = sadd.s32 %s235, 1
      %p239 = scmp.eq.s32.totalorder %s23, 1
      %p240 = scmp.ne.s32.totalorder %s235, %s237
      %p241 = scmp.eq.s32.totalorder %s23, 0
      %p242 = por %p240, %p241
      %p243 = scmp.ne.s32.totalorder %s235, %s237
      %p244 = scmp.eq.s32.totalorder %s28, 1
      %p245 = por %p243, %p244
      %p246 = scmp.ne.s32.totalorder %s237, %s238
      %p247 = scmp.eq.s32.totalorder %s28, 0
      %p248 = por %p246, %p247
      %p249 = scmp.ne.s32.totalorder %s237, %s238
      %p250 = scmp.eq.s32.totalorder %s29, 1
      %p251 = por %p249, %p250
      %p253 = scmp.ne.s32.totalorder %s238, %s252
      %p254 = scmp.eq.s32.totalorder %s29, 0
      %p255 = por %p253, %p254
      %s257 = sadd.s32 %s256, 1
      %p260 = scmp.eq.s32.totalorder %s23, 1
      %p261 = scmp.ne.s32.totalorder %s256, %s258
      %p262 = scmp.eq.s32.totalorder %s23, 0
      %p263 = por %p261, %p262
      %p264 = scmp.ne.s32.totalorder %s256, %s258
      %p265 = scmp.eq.s32.totalorder %s28, 1
      %p266 = por %p264, %p265
      %p267 = scmp.ne.s32.totalorder %s258, %s259
      %p268 = scmp.eq.s32.totalorder %s28, 0
      %p269 = por %p267, %p268
      %p270 = scmp.ne.s32.totalorder %s258, %s259
      %p271 = scmp.eq.s32.totalorder %s29, 1
      %p272 = por %p270, %p271
      %p274 = scmp.ne.s32.totalorder %s259, %s273
      %p275 = scmp.eq.s32.totalorder %s29, 0
      %p276 = por %p274, %p275
      %s278 = sadd.s32 %s277, 1
      %p281 = scmp.eq.s32.totalorder %s23, 1
      %p282 = scmp.ne.s32.totalorder %s277, %s279
      %p283 = scmp.eq.s32.totalorder %s23, 0
      %p284 = por %p282, %p283
      %p285 = scmp.ne.s32.totalorder %s277, %s279
      %p286 = scmp.eq.s32.totalorder %s28, 1
      %p287 = por %p285, %p286
      %p288 = scmp.ne.s32.totalorder %s279, %s280
      %p289 = scmp.eq.s32.totalorder %s28, 0
      %p290 = por %p288, %p289
      %p291 = scmp.ne.s32.totalorder %s279, %s280
      %p292 = scmp.eq.s32.totalorder %s29, 1
      %p293 = por %p291, %p292
      %p295 = scmp.ne.s32.totalorder %s280, %s294
      %p296 = scmp.eq.s32.totalorder %s29, 0
      %p297 = por %p295, %p296
      %s298 = ssub.s32 %s23, %s30
      %p299 = scmp.eq.s32.totalorder %s298, 0
      %s301 = sadd.s32 %s300, 1
      %s302 = scalar_select %p299, %s300, %s301
      %p305 = pneg %p299
      %p306 = scmp.eq.s32.totalorder %s23, 1
      %p307 = por %p305, %p306
      %p308 = scmp.ne.s32.totalorder %s300, %s303
      %p309 = scmp.eq.s32.totalorder %s23, 0
      %p310 = por %p308, %p309
      %p311 = scmp.ne.s32.totalorder %s300, %s303
      %p312 = scmp.eq.s32.totalorder %s28, 1
      %p313 = por %p311, %p312
      %p314 = scmp.ne.s32.totalorder %s303, %s304
      %p315 = scmp.eq.s32.totalorder %s28, 0
      %p316 = por %p314, %p315
      %p317 = scmp.ne.s32.totalorder %s303, %s304
      %p318 = scmp.eq.s32.totalorder %s29, 1
      %p319 = por %p317, %p318
      %p321 = scmp.ne.s32.totalorder %s304, %s320
      %p322 = scmp.eq.s32.totalorder %s29, 0
      %p323 = por %p321, %p322
      %p324 = scmp.le.s32.totalorder 1, %s23
      %p325 = scmp.lt.s32.totalorder %s23, 3
      %p326 = pnand %p324, %p325
      %p327 = pneg %p326
      // Predicated region
      $region9: #{danet_head.5} parent=5 // pred_check
        _
      $region10: #{danet_head.5} parent=5 // pred_check_branch
        %329 = sbr.rel (%p326) target = $region12
      $region11: #{danet_head.5} parent=5 // pred_region
        %s330 = ssub.s32 %s23, 1
        // Predicated region
        $region13: #{danet_head.5} parent=11 // pred_check
          %p331 = pneg %p122
        $region14: #{danet_head.5} parent=11 // pred_check_branch
          %333 = sbr.rel (%p331) target = $region16
        $region15: #{danet_head.5} parent=11 // pred_region
          _
        $region16: #{danet_head.5} parent=11 // pred_fallthru
          _
        // Predicated region
        $region17: #{danet_head.5} parent=11 // pred_check
          %p334 = pneg %p143
        $region18: #{danet_head.5} parent=11 // pred_check_branch
          %336 = sbr.rel (%p334) target = $region20
        $region19: #{danet_head.5} parent=11 // pred_region
          _
        $region20: #{danet_head.5} parent=11 // pred_fallthru
          _
        // Predicated region
        $region21: #{danet_head.5} parent=11 // pred_check
          %p337 = pneg %p164
        $region22: #{danet_head.5} parent=11 // pred_check_branch
          %339 = sbr.rel (%p337) target = $region24
        $region23: #{danet_head.5} parent=11 // pred_region
          _
        $region24: #{danet_head.5} parent=11 // pred_fallthru
          _
        // Predicated region
        $region25: #{danet_head.5} parent=11 // pred_check
          %p340 = pneg %p185
        $region26: #{danet_head.5} parent=11 // pred_check_branch
          %342 = sbr.rel (%p340) target = $region28
        $region27: #{danet_head.5} parent=11 // pred_region
          _
        $region28: #{danet_head.5} parent=11 // pred_fallthru
          _
        // Predicated region
        $region29: #{danet_head.5} parent=11 // pred_check
          %p343 = pneg %p206
        $region30: #{danet_head.5} parent=11 // pred_check_branch
          %345 = sbr.rel (%p343) target = $region32
        $region31: #{danet_head.5} parent=11 // pred_region
          _
        $region32: #{danet_head.5} parent=11 // pred_fallthru
          _
        // Predicated region
        $region33: #{danet_head.5} parent=11 // pred_check
          %p346 = pneg %p227
        $region34: #{danet_head.5} parent=11 // pred_check_branch
          %348 = sbr.rel (%p346) target = $region36
        $region35: #{danet_head.5} parent=11 // pred_region
          _
        $region36: #{danet_head.5} parent=11 // pred_fallthru
          _
        // Predicated region
        $region37: #{danet_head.5} parent=11 // pred_check
          %p349 = pneg %p248
        $region38: #{danet_head.5} parent=11 // pred_check_branch
          %351 = sbr.rel (%p349) target = $region40
        $region39: #{danet_head.5} parent=11 // pred_region
          _
        $region40: #{danet_head.5} parent=11 // pred_fallthru
          _
        // Predicated region
        $region41: #{danet_head.5} parent=11 // pred_check
          %p352 = pneg %p269
        $region42: #{danet_head.5} parent=11 // pred_check_branch
          %354 = sbr.rel (%p352) target = $region44
        $region43: #{danet_head.5} parent=11 // pred_region
          _
        $region44: #{danet_head.5} parent=11 // pred_fallthru
          _
        // Predicated region
        $region45: #{danet_head.5} parent=11 // pred_check
          %p355 = pneg %p290
        $region46: #{danet_head.5} parent=11 // pred_check_branch
          %357 = sbr.rel (%p355) target = $region48
        $region47: #{danet_head.5} parent=11 // pred_region
          _
        $region48: #{danet_head.5} parent=11 // pred_fallthru
          _
      $region12: #{danet_head.5} parent=5 // pred_fallthru
        _
      %p358 = scmp.lt.s32.totalorder %s23, 2
      // Predicated region
      $region49: #{danet_head.5} parent=5 // pred_check
        %p359 = pneg %p358
      $region50: #{danet_head.5} parent=5 // pred_check_branch
        %361 = sbr.rel (%p359) target = $region52
      $region51: #{danet_head.5} parent=5 // pred_region
        // Predicated region
        $region53: #{danet_head.5} parent=51 // pred_check
          %p362 = pneg %p43
        $region54: #{danet_head.5} parent=51 // pred_check_branch
          %364 = sbr.rel (%p362) target = $region56
        $region55: #{danet_head.5} parent=51 // pred_region
          %p365 = scmp.lt.s32.totalorder %s23, 1
          %s366 = scalar_select %p365, %s23, 1
          %s367 = smul.addr %s366, 8
          %s368 = smul.addr %s367, 8
          %s369 = scalar_lea.vmem %s0, %s368
        $region56: #{danet_head.5} parent=51 // pred_fallthru
          _
        // Predicated region
        $region57: #{danet_head.5} parent=51 // pred_check
          %p370 = pneg %p69
        $region58: #{danet_head.5} parent=51 // pred_check_branch
          %372 = sbr.rel (%p370) target = $region60
        $region59: #{danet_head.5} parent=51 // pred_region
          %p373 = scmp.lt.s32.totalorder %s23, 1
          %s374 = scalar_select %p373, %s23, 1
          %s375 = smul.addr %s374, 8
          %s376 = smul.addr %s375, 8
          %s377 = scalar_lea.vmem %s1, %s376
        $region60: #{danet_head.5} parent=51 // pred_fallthru
          _
        // Predicated region
        $region61: #{danet_head.5} parent=51 // pred_check
          %p378 = pneg %p95
        $region62: #{danet_head.5} parent=51 // pred_check_branch
          %380 = sbr.rel (%p378) target = $region64
        $region63: #{danet_head.5} parent=51 // pred_region
          %p381 = scmp.lt.s32.totalorder %s23, 1
          %s382 = scalar_select %p381, %s23, 1
          %s383 = smul.addr %s382, 8
          %s384 = smul.addr %s383, 8
          %s385 = scalar_lea.vmem %s2, %s384
        $region64: #{danet_head.5} parent=51 // pred_fallthru
          _
      $region52: #{danet_head.5} parent=5 // pred_fallthru
        _
      %p386 = scmp.le.s32.totalorder 1, %s23
      %p387 = scmp.lt.s32.totalorder %s23, 3
      %p388 = pnand %p386, %p387
      %p389 = pneg %p388
      // Predicated region
      $region65: #{danet_head.5} parent=5 // pred_check
        _
      $region66: #{danet_head.5} parent=5 // pred_check_branch
        %391 = sbr.rel (%p388) target = $region68
      $region67: #{danet_head.5} parent=5 // pred_region
        %s392 = ssub.s32 %s23, 1
        %p393 = scmp.lt.s32.totalorder %s28, 1
        %s394 = scalar_select %p393, %s28, 1
        %s395 = smul.addr %s394, 8
        %s396 = smul.addr %s395, 8
        %s397 = scalar_lea.vmem %s0, %s396
        %p398 = pneg %p49
        %p399 = pneg %p46
        %p400 = scmp.lt.s32.totalorder %s28, 1
        %s401 = scalar_select %p400, %s28, 1
        %s402 = smul.addr %s401, 8
        %s403 = smul.addr %s402, 8
        %s404 = scalar_lea.vmem %s1, %s403
        %p405 = pneg %p75
        %p406 = pneg %p72
        %p407 = scmp.lt.s32.totalorder %s28, 1
        %s408 = scalar_select %p407, %s28, 1
        %s409 = smul.addr %s408, 8
        %s410 = smul.addr %s409, 8
        %s411 = scalar_lea.vmem %s2, %s410
        %p412 = pneg %p101
        %p413 = pneg %p98
        %p414 = pneg %p122
        %p415 = pneg %p119
        %p416 = pneg %p143
        %p417 = pneg %p140
        %p418 = pneg %p164
        %p419 = pneg %p161
        %p420 = pneg %p185
        %p421 = pneg %p182
        %p422 = pneg %p206
        %p423 = pneg %p203
        %p424 = pneg %p227
        %p425 = pneg %p224
        %p426 = pneg %p248
        %p427 = pneg %p245
        %p428 = pneg %p269
        %p429 = pneg %p266
        %p430 = pneg %p290
        %p431 = pneg %p287
        %p432 = pneg %p316
        %p433 = pneg %p313
        %s434 = sand.u32 %s303, 1
        %s435 = scalar_lea.sflag [#allocation4], %s434
        %s436 = sand.u32 %s303, 1
        %s437 = smul.addr %s436, 64
        %s438 = scalar_lea.vmem [#allocation3], %s437
        %p439 = scmp.lt.s32.totalorder %s28, 1
        %s440 = scalar_select %p439, %s28, 1
        %s441 = smul.addr %s440, 8
        %s442 = smul.addr %s441, 8
        %s443 = scalar_lea.vmem %s0, %s442
        %p444 = scmp.lt.s32.totalorder %s28, 1
        %s445 = scalar_select %p444, %s28, 1
        %s446 = smul.addr %s445, 8
        %s447 = smul.addr %s446, 8
        %s448 = scalar_lea.vmem %s1, %s447
        %p449 = scmp.lt.s32.totalorder %s28, 1
        %s450 = scalar_select %p449, %s28, 1
        %s451 = smul.addr %s450, 8
        %s452 = smul.addr %s451, 8
        %s453 = scalar_lea.vmem %s2, %s452
        %v455 = vld [vmem:[%s448] sm:$0xff]
        %v456 = vld [vmem:[%s448 + $0x8] sm:$0xff]
        %v457 = vld [vmem:[%s448 + $0x10] sm:$0xff]
        %v458 = vld [vmem:[%s448 + $0x18] sm:$0xff]
        %v459 = vld [vmem:[%s448 + $0x20] sm:$0xff]
        %v460 = vld [vmem:[%s448 + $0x28] sm:$0xff]
        %v461 = vld [vmem:[%s448 + $0x30] sm:$0xff]
        %v462 = vld [vmem:[%s448 + $0x38] sm:$0xff]
        %v463 = vpack.c.bf16 %v456, %v455
        %v464 = vpack.c.bf16 %v458, %v457
        %v465 = vpack.c.bf16 %v460, %v459
        %v466 = vpack.c.bf16 %v462, %v461
        %467 = vxpose.xlu0.c.b16.start [1/8] %v463, 128
        %468 = vxpose.xlu0.c.b16.cont [2/8] %v464, 128
        %469 = vxpose.xlu0.c.b16.cont [3/8] %v465, 128
        %470 = vxpose.xlu0.c.b16.cont [4/8] %v466, 128
        %471 = vxpose.xlu0.c.b16.cont [5/8] 0, 128
        %472 = vxpose.xlu0.c.b16.cont [6/8] 0, 128
        %473 = vxpose.xlu0.c.b16.cont [7/8] 0, 128
        %474 = vxpose.xlu0.c.b16.end [8/8] 0, 128
        %v475 = vpop.trf.xlu0
        %v476 = vpop.trf.xlu0
        %v477 = vpop.trf.xlu0
        %v478 = vpop.trf.xlu0
        %v479 = vpop.trf.xlu0
        %v480 = vpop.trf.xlu0
        %v481 = vpop.trf.xlu0
        %v482 = vpop.trf.xlu0
        %vm483 = vcmask 523264
        %v485 = vsel %vm483, %v475, 0
        %v488 = vsel %vm483, %v476, 0
        %490 = vmatprep.subr.bf16.mxu0 0
        %491 = vmatpush1.bf16.msra.mxu0 %v463
        %492 = vmatprep.subr.bf16.mxu0 0
        %493 = vmatpush1.bf16.msra.mxu0 %v464
        %494 = vmatprep.subr.bf16.mxu0 0
        %495 = vmatpush1.bf16.msra.mxu0 %v465
        %496 = vmatprep.subr.bf16.mxu0 0
        %497 = vmatpush1.bf16.msra.mxu0 %v466
        %498 = vmatprep.subr.bf16.mxu0 0
        %499 = vmatpush1.bf16.msra.mxu0 0
        %500 = vmatprep.subr.bf16.mxu0 0
        %501 = vmatpush1.bf16.msra.mxu0 0
        %502 = vmatprep.subr.bf16.mxu0 0
        %503 = vmatpush1.bf16.msra.mxu0 0
        %504 = vmatprep.subr.bf16.mxu0 0
        %505 = vmatpush1.bf16.msra.mxu0 0
        %506 = vmatprep.subr.bf16.mxu0 0
        %507 = vmatpush1.bf16.msra.mxu0 0
        %508 = vmatprep.subr.bf16.mxu0 0
        %509 = vmatpush1.bf16.msra.mxu0 0
        %510 = vmatprep.subr.bf16.mxu0 0
        %511 = vmatpush1.bf16.msra.mxu0 0
        %512 = vmatprep.subr.bf16.mxu0 0
        %513 = vmatpush1.bf16.msra.mxu0 0
        %514 = vmatprep.subr.bf16.mxu0 0
        %515 = vmatpush1.bf16.msra.mxu0 0
        %516 = vmatprep.subr.bf16.mxu0 0
        %517 = vmatpush1.bf16.msra.mxu0 0
        %518 = vmatprep.subr.bf16.mxu0 0
        %519 = vmatpush1.bf16.msra.mxu0 0
        %520 = vmatprep.subr.bf16.mxu0 0
        %521 = vmatpush1.bf16.msra.mxu0 0
        %522 = vmatprep.mubr.bf16.mxu0 0
        %523 = vmatmul.mubr.bf16.gmra.mrb[0].mxu0 %v485
        %v524 = vpop.f32.mrb[0].mxu0
        %v525 = vadd.f32 0.0, %v524
        %v526 = vpop.f32.mrb[0].mxu0
        %v527 = vpop.f32.mrb[0].mxu0
        %v528 = vadd.f32 0.0, %v527
        %v529 = vpop.f32.mrb[0].mxu0
        %530 = vmatprep.mubr.bf16.mxu0 0
        %531 = vmatmul.mubr.bf16.gmra.mrb[0].mxu0 %v488
        %v532 = vpop.f32.mrb[0].mxu0
        %v533 = vadd.f32 0.0, %v532
        %v534 = vpop.f32.mrb[0].mxu0
        %v535 = vpop.f32.mrb[0].mxu0
        %v536 = vadd.f32 0.0, %v535
        %v537 = vpop.f32.mrb[0].mxu0
        %538 = vdwg.mxu0
        %vm539 = vcmask 261120
        %v540 = vsel %vm539, %v525, -inf
        %541 = vmax.xlane.f32.xlu0 %v540
        %v542 = vpop.xlane.xlu0 %541
        %v543 = vsel %vm539, %v528, -inf
        %544 = vmax.xlane.f32.xlu0 %v543
        %v545 = vpop.xlane.xlu0 %544
        %v546 = vsel %vm539, %v533, -inf
        %547 = vmax.xlane.f32.xlu0 %v546
        %v548 = vpop.xlane.xlu0 %547
        %v549 = vsel %vm539, %v536, -inf
        %550 = vmax.xlane.f32.xlu0 %v549
        %v551 = vpop.xlane.xlu0 %550
        %v552 = vsub.f32 %v542, %v525
        %v553 = vsub.f32 %v545, %v528
        %v554 = vsub.f32 %v548, %v533
        %v555 = vsub.f32 %v551, %v536
        %v556 = vsel %vm539, %v552, -inf
        %557 = vmax.xlane.f32.xlu0 %v556
        %v558 = vpop.xlane.xlu0 %557
        %v559 = vsel %vm539, %v553, -inf
        %560 = vmax.xlane.f32.xlu0 %v559
        %v561 = vpop.xlane.xlu0 %560
        %v562 = vsel %vm539, %v554, -inf
        %563 = vmax.xlane.f32.xlu0 %v562
        %v564 = vpop.xlane.xlu0 %563
        %v565 = vsel %vm539, %v555, -inf
        %566 = vmax.xlane.f32.xlu0 %v565
        %v567 = vpop.xlane.xlu0 %566
        %v568 = vsub.f32 %v552, %v558
        %v569 = vsub.f32 %v553, %v561
        %v570 = vsub.f32 %v554, %v564
        %v571 = vsub.f32 %v555, %v567
        %v572 = vmul.f32 %v568, 1.442695
        %v573 = vpow.pop %v572
        %v574 = vmul.f32 %v569, 1.442695
        %v575 = vpow.pop %v574
        %v576 = vmul.f32 %v570, 1.442695
        %v577 = vpow.pop %v576
        %v578 = vmul.f32 %v571, 1.442695
        %v579 = vpow.pop %v578
        %v580 = vsel %vm539, %v573, 0.0
        %581 = vadd.xlane.f32.xlu0 %v580
        %v582 = vpop.xlane.xlu0 %581
        %v583 = vsel %vm539, %v575, 0.0
        %584 = vadd.xlane.f32.xlu0 %v583
        %v585 = vpop.xlane.xlu0 %584
        %v586 = vsel %vm539, %v577, 0.0
        %587 = vadd.xlane.f32.xlu0 %v586
        %v588 = vpop.xlane.xlu0 %587
        %v589 = vsel %vm539, %v579, 0.0
        %590 = vadd.xlane.f32.xlu0 %v589
        %v591 = vpop.xlane.xlu0 %590
        %v592 = vrcp.pop %v582
        %v593 = vmul.f32 %v573, %v592
        %v594 = vrcp.pop %v585
        %v595 = vmul.f32 %v575, %v594
        %v596 = vrcp.pop %v588
        %v597 = vmul.f32 %v577, %v596
        %v598 = vrcp.pop %v591
        %v599 = vmul.f32 %v579, %v598
        %v600 = vpack.c.bf16 %v595, %v593
        %v601 = vpack.c.bf16 %v599, %v597
        %v603 = vsel %vm539, %v463, 0
        %v606 = vsel %vm539, %v464, 0
        %v609 = vsel %vm539, %v465, 0
        %v612 = vsel %vm539, %v466, 0
        %v615 = vsel %vm539, %v600, 0
        %v618 = vsel %vm539, %v601, 0
        %620 = vmatprep.subr.bf16.mxu0 0
        %621 = vmatpush1.bf16.xpose.msra.mxu0 %v615
        %622 = vmatprep.subr.bf16.mxu0 0
        %623 = vmatpush1.bf16.xpose.msra.mxu0 %v618
        %624 = vmatprep.subr.bf16.mxu0 0
        %625 = vmatpush1.bf16.xpose.msra.mxu0 0
        %626 = vmatprep.subr.bf16.mxu0 0
        %627 = vmatpush1.bf16.xpose.msra.mxu0 0
        %628 = vmatprep.subr.bf16.mxu0 0
        %629 = vmatpush1.bf16.xpose.msra.mxu0 0
        %630 = vmatprep.subr.bf16.mxu0 0
        %631 = vmatpush1.bf16.xpose.msra.mxu0 0
        %632 = vmatprep.subr.bf16.mxu0 0
        %633 = vmatpush1.bf16.xpose.msra.mxu0 0
        %634 = vmatprep.subr.bf16.mxu0 0
        %635 = vmatpush1.bf16.xpose.msra.mxu0 0
        %636 = vmatprep.subr.bf16.mxu0 0
        %637 = vmatpush1.bf16.xpose.msra.mxu0 0
        %638 = vmatprep.subr.bf16.mxu0 0
        %639 = vmatpush1.bf16.xpose.msra.mxu0 0
        %640 = vmatprep.subr.bf16.mxu0 0
        %641 = vmatpush1.bf16.xpose.msra.mxu0 0
        %642 = vmatprep.subr.bf16.mxu0 0
        %643 = vmatpush1.bf16.xpose.msra.mxu0 0
        %644 = vmatprep.subr.bf16.mxu0 0
        %645 = vmatpush1.bf16.xpose.msra.mxu0 0
        %646 = vmatprep.subr.bf16.mxu0 0
        %647 = vmatpush1.bf16.xpose.msra.mxu0 0
        %648 = vmatprep.subr.bf16.mxu0 0
        %649 = vmatpush1.bf16.xpose.msra.mxu0 0
        %650 = vmatprep.subr.bf16.mxu0 0
        %651 = vmatpush1.bf16.xpose.msra.mxu0 0
        %652 = vmatprep.mubr.bf16.mxu0 0
        %653 = vmatmul.mubr.bf16.gmra.mrb[0].mxu0 %v603
        %v654 = vpop.f32.mrb[0].mxu0
        %v655 = vadd.f32 0.0, %v654
        %v656 = vpop.f32.mrb[0].mxu0
        %v657 = vpop.f32.mrb[0].mxu0
        %v658 = vadd.f32 0.0, %v657
        %v659 = vpop.f32.mrb[0].mxu0
        %660 = vmatprep.mubr.bf16.mxu0 0
        %661 = vmatmul.mubr.bf16.gmra.mrb[0].mxu0 %v606
        %v662 = vpop.f32.mrb[0].mxu0
        %v663 = vadd.f32 0.0, %v662
        %v664 = vpop.f32.mrb[0].mxu0
        %v665 = vpop.f32.mrb[0].mxu0
        %v666 = vadd.f32 0.0, %v665
        %v667 = vpop.f32.mrb[0].mxu0
        %668 = vmatprep.mubr.bf16.mxu0 0
        %669 = vmatmul.mubr.bf16.gmra.mrb[0].mxu0 %v609
        %v670 = vpop.f32.mrb[0].mxu0
        %v671 = vadd.f32 0.0, %v670
        %v672 = vpop.f32.mrb[0].mxu0
        %v673 = vpop.f32.mrb[0].mxu0
        %v674 = vadd.f32 0.0, %v673
        %v675 = vpop.f32.mrb[0].mxu0
        %676 = vmatprep.mubr.bf16.mxu0 0
        %677 = vmatmul.mubr.bf16.gmra.mrb[0].mxu0 %v612
        %v678 = vpop.f32.mrb[0].mxu0
        %v679 = vadd.f32 0.0, %v678
        %v680 = vpop.f32.mrb[0].mxu0
        %v681 = vpop.f32.mrb[0].mxu0
        %v682 = vadd.f32 0.0, %v681
        %v683 = vpop.f32.mrb[0].mxu0
        %684 = vdwg.mxu0
        %v685 = vld [vmem:[#allocation2] sm:$0x1]
        %s686 = vtos %v685
        %v687 = vstv %s686
        %v688 = vmul.f32 %v687, %v655
        %v689 = vmul.f32 %v687, %v658
        %v690 = vmul.f32 %v687, %v663
        %v691 = vmul.f32 %v687, %v666
        %v692 = vmul.f32 %v687, %v671
        %v693 = vmul.f32 %v687, %v674
        %v694 = vmul.f32 %v687, %v679
        %v695 = vmul.f32 %v687, %v682
        %v696 = vadd.f32 %v688, %v455
        %v697 = vadd.f32 %v689, %v456
        %v698 = vadd.f32 %v690, %v457
        %v699 = vadd.f32 %v691, %v458
        %v700 = vadd.f32 %v692, %v459
        %v701 = vadd.f32 %v693, %v460
        %v702 = vadd.f32 %v694, %v461
        %v703 = vadd.f32 %v695, %v462
        %v704 = vld [vmem:[%s443] sm:$0xff]
        %v705 = vld [vmem:[%s443 + $0x8] sm:$0xff]
        %v706 = vld [vmem:[%s443 + $0x10] sm:$0xff]
        %v707 = vld [vmem:[%s443 + $0x18] sm:$0xff]
        %v708 = vld [vmem:[%s443 + $0x20] sm:$0xff]
        %v709 = vld [vmem:[%s443 + $0x28] sm:$0xff]
        %v710 = vld [vmem:[%s443 + $0x30] sm:$0xff]
        %v711 = vld [vmem:[%s443 + $0x38] sm:$0xff]
        %v712 = vld [vmem:[%s4] sm:$0xf]
        %v713 = vld [vmem:[%s4 + $0x4] sm:$0xf]
        %v714 = vld [vmem:[%s4 + $0x8] sm:$0xf]
        %v715 = vld [vmem:[%s4 + $0xc] sm:$0xf]
        %v716 = vld [vmem:[%s4 + $0x10] sm:$0xf]
        %v717 = vld [vmem:[%s4 + $0x14] sm:$0xf]
        %v718 = vld [vmem:[%s4 + $0x18] sm:$0xf]
        %v719 = vld [vmem:[%s4 + $0x1c] sm:$0xf]
        %v720 = vld [vmem:[%s4 + $0x20] sm:$0xf]
        %v721 = vld [vmem:[%s4 + $0x24] sm:$0xf]
        %v722 = vld [vmem:[%s4 + $0x28] sm:$0xf]
        %v723 = vld [vmem:[%s4 + $0x2c] sm:$0xf]
        %v724 = vld [vmem:[%s4 + $0x30] sm:$0xf]
        %v725 = vld [vmem:[%s4 + $0x34] sm:$0xf]
        %v726 = vld [vmem:[%s4 + $0x38] sm:$0xf]
        %v727 = vld [vmem:[%s4 + $0x3c] sm:$0xf]
        %v728 = vld [vmem:[%s4 + $0x40] sm:$0xf]
        %v729 = vld [vmem:[%s4 + $0x44] sm:$0xf]
        %v730 = vld [vmem:[%s4 + $0x48] sm:$0xf]
        %v731 = vld [vmem:[%s4 + $0x4c] sm:$0xf]
        %v732 = vld [vmem:[%s4 + $0x50] sm:$0xf]
        %v733 = vld [vmem:[%s4 + $0x54] sm:$0xf]
        %v734 = vld [vmem:[%s4 + $0x58] sm:$0xf]
        %v735 = vld [vmem:[%s4 + $0x5c] sm:$0xf]
        %v736 = vld [vmem:[%s4 + $0x60] sm:$0xf]
        %v737 = vld [vmem:[%s4 + $0x64] sm:$0xf]
        %v738 = vld [vmem:[%s4 + $0x68] sm:$0xf]
        %v739 = vld [vmem:[%s4 + $0x6c] sm:$0xf]
        %v740 = vld [vmem:[%s4 + $0x70] sm:$0xf]
        %v741 = vld [vmem:[%s4 + $0x74] sm:$0xf]
        %v742 = vld [vmem:[%s4 + $0x78] sm:$0xf]
        %v743 = vld [vmem:[%s4 + $0x7c] sm:$0xf]
        %v744 = vld [vmem:[%s4 + $0x80] sm:$0xf]
        %v745 = vld [vmem:[%s4 + $0x84] sm:$0xf]
        %v746 = vld [vmem:[%s4 + $0x88] sm:$0xf]
        %v747 = vld [vmem:[%s4 + $0x8c] sm:$0xf]
        %v748 = vld [vmem:[%s5] sm:$0x1]
        %v749 = vld [vmem:[%s6] sm:$0x1]
        %v750 = vlaneseq
        %v751 = vshrl.u32 %v750, 7
        %v752 = vadd.s32 %v751, 8
        %v753 = vadd.s32 %v751, 16
        %v754 = vadd.s32 %v751, 24
        %v755 = vadd.s32 %v751, 32
        %v756 = vadd.s32 %v751, 40
        %v757 = vadd.s32 %v751, 48
        %v758 = vadd.s32 %v751, 56
        %vm759 = vcmp.lt.s32.totalorder %v751, 0
        %v760 = vsub.s32 0, %v751
        %v761 = vsel %vm759, %v760, %v751
        %v762 = vshrl.u32 %v761, 3
        %v763 = vand.u32 %v761, 7
        %v764 = vsub.s32 0, %v763
        %v765 = vsel %vm759, %v764, %v763
        %vm766 = vcmp.lt.s32.totalorder %v752, 0
        %v767 = vsub.s32 0, %v752
        %v768 = vsel %vm766, %v767, %v752
        %v769 = vshrl.u32 %v768, 3
        %v770 = vand.u32 %v768, 7
        %v771 = vsub.s32 0, %v770
        %v772 = vsel %vm766, %v771, %v770
        %vm773 = vcmp.lt.s32.totalorder %v753, 0
        %v774 = vsub.s32 0, %v753
        %v775 = vsel %vm773, %v774, %v753
        %v776 = vshrl.u32 %v775, 3
        %v777 = vand.u32 %v775, 7
        %v778 = vsub.s32 0, %v777
        %v779 = vsel %vm773, %v778, %v777
        %vm780 = vcmp.lt.s32.totalorder %v754, 0
        %v781 = vsub.s32 0, %v754
        %v782 = vsel %vm780, %v781, %v754
        %v783 = vshrl.u32 %v782, 3
        %v784 = vand.u32 %v782, 7
        %v785 = vsub.s32 0, %v784
        %v786 = vsel %vm780, %v785, %v784
        %vm787 = vcmp.lt.s32.totalorder %v755, 0
        %v788 = vsub.s32 0, %v755
        %v789 = vsel %vm787, %v788, %v755
        %v790 = vshrl.u32 %v789, 3
        %v791 = vand.u32 %v789, 7
        %v792 = vsub.s32 0, %v791
        %v793 = vsel %vm787, %v792, %v791
        %vm794 = vcmp.lt.s32.totalorder %v756, 0
        %v795 = vsub.s32 0, %v756
        %v796 = vsel %vm794, %v795, %v756
        %v797 = vshrl.u32 %v796, 3
        %v798 = vand.u32 %v796, 7
        %v799 = vsub.s32 0, %v798
        %v800 = vsel %vm794, %v799, %v798
        %vm801 = vcmp.lt.s32.totalorder %v757, 0
        %v802 = vsub.s32 0, %v757
        %v803 = vsel %vm801, %v802, %v757
        %v804 = vshrl.u32 %v803, 3
        %v805 = vand.u32 %v803, 7
        %v806 = vsub.s32 0, %v805
        %v807 = vsel %vm801, %v806, %v805
        %vm808 = vcmp.lt.s32.totalorder %v758, 0
        %v809 = vsub.s32 0, %v758
        %v810 = vsel %vm808, %v809, %v758
        %v811 = vshrl.u32 %v810, 3
        %v812 = vand.u32 %v810, 7
        %v813 = vsub.s32 0, %v812
        %v814 = vsel %vm808, %v813, %v812
        %vm815 = vcmp.ne.s32.totalorder %v765, 0
        %vm816 = vcmp.ne.s32.totalorder %v772, 0
        %vm817 = vcmp.ne.s32.totalorder %v779, 0
        %vm818 = vcmp.ne.s32.totalorder %v786, 0
        %vm819 = vcmp.ne.s32.totalorder %v793, 0
        %vm820 = vcmp.ne.s32.totalorder %v800, 0
        %vm821 = vcmp.ne.s32.totalorder %v807, 0
        %vm822 = vcmp.ne.s32.totalorder %v814, 0
        %vm823 = vcmp.lt.s32.totalorder %v765, 0
        %vm824 = vcmp.lt.s32.totalorder %v772, 0
        %vm825 = vcmp.lt.s32.totalorder %v779, 0
        %vm826 = vcmp.lt.s32.totalorder %v786, 0
        %vm827 = vcmp.lt.s32.totalorder %v793, 0
        %vm828 = vcmp.lt.s32.totalorder %v800, 0
        %vm829 = vcmp.lt.s32.totalorder %v807, 0
        %vm830 = vcmp.lt.s32.totalorder %v814, 0
        %vm831 = vmand %vm823, %vm815
        %vm832 = vmand %vm824, %vm816
        %vm833 = vmand %vm825, %vm817
        %vm834 = vmand %vm826, %vm818
        %vm835 = vmand %vm827, %vm819
        %vm836 = vmand %vm828, %vm820
        %vm837 = vmand %vm829, %vm821
        %vm838 = vmand %vm830, %vm822
        %v839 = vadd.s32 %v765, 8
        %v840 = vadd.s32 %v772, 8
        %v841 = vadd.s32 %v779, 8
        %v842 = vadd.s32 %v786, 8
        %v843 = vadd.s32 %v793, 8
        %v844 = vadd.s32 %v800, 8
        %v845 = vadd.s32 %v807, 8
        %v846 = vadd.s32 %v814, 8
        %v847 = vsel %vm831, %v839, %v765
        %v848 = vsel %vm832, %v840, %v772
        %v849 = vsel %vm833, %v841, %v779
        %v850 = vsel %vm834, %v842, %v786
        %v851 = vsel %vm835, %v843, %v793
        %v852 = vsel %vm836, %v844, %v800
        %v853 = vsel %vm837, %v845, %v807
        %v854 = vsel %vm838, %v846, %v814
        %vm855 = vcmp.ge.s32.totalorder %v847, 1
        %vm856 = vcmp.ge.s32.totalorder %v848, 1
        %vm857 = vcmp.ge.s32.totalorder %v849, 1
        %vm858 = vcmp.ge.s32.totalorder %v850, 1
        %vm859 = vcmp.ge.s32.totalorder %v851, 1
        %vm860 = vcmp.ge.s32.totalorder %v852, 1
        %vm861 = vcmp.ge.s32.totalorder %v853, 1
        %vm862 = vcmp.ge.s32.totalorder %v854, 1
        %vm863 = vcmp.le.s32.totalorder %v847, 6
        %vm864 = vcmp.le.s32.totalorder %v848, 6
        %vm865 = vcmp.le.s32.totalorder %v849, 6
        %vm866 = vcmp.le.s32.totalorder %v850, 6
        %vm867 = vcmp.le.s32.totalorder %v851, 6
        %vm868 = vcmp.le.s32.totalorder %v852, 6
        %vm869 = vcmp.le.s32.totalorder %v853, 6
        %vm870 = vcmp.le.s32.totalorder %v854, 6
        %v871 = vsel %vm855, 1, 0
        %v872 = vsel %vm856, 1, 0
        %v873 = vsel %vm857, 1, 0
        %v874 = vsel %vm858, 1, 0
        %v875 = vsel %vm859, 1, 0
        %v876 = vsel %vm860, 1, 0
        %v877 = vsel %vm861, 1, 0
        %v878 = vsel %vm862, 1, 0
        %vm879 = vcmp.eq.s32.totalorder %v871, 1
        %vm880 = vcmp.eq.s32.totalorder %v872, 1
        %vm881 = vcmp.eq.s32.totalorder %v873, 1
        %vm882 = vcmp.eq.s32.totalorder %v874, 1
        %vm883 = vcmp.eq.s32.totalorder %v875, 1
        %vm884 = vcmp.eq.s32.totalorder %v876, 1
        %vm885 = vcmp.eq.s32.totalorder %v877, 1
        %vm886 = vcmp.eq.s32.totalorder %v878, 1
        %vm895 = vcmask 1040384
        %v896 = vrot.slane 0.0, 7
        %v897 = vsel %vm895, %v896, %v896
        %v898 = vrot.slane %v704, 7
        %v899 = vsel %vm895, %v896, %v898
        %v900 = vrot.slane %v705, 7
        %v901 = vsel %vm895, %v898, %v900
        %v902 = vrot.slane %v706, 7
        %v903 = vsel %vm895, %v900, %v902
        %v904 = vrot.slane %v707, 7
        %v905 = vsel %vm895, %v902, %v904
        %v906 = vrot.slane %v708, 7
        %v907 = vsel %vm895, %v904, %v906
        %v908 = vrot.slane %v709, 7
        %v909 = vsel %vm895, %v906, %v908
        %v910 = vrot.slane %v710, 7
        %v911 = vsel %vm895, %v908, %v910
        %v920 = vsel %vm879, %v897, 0.0
        %v921 = vsel %vm880, %v899, 0.0
        %v922 = vsel %vm881, %v901, 0.0
        %v923 = vsel %vm882, %v903, 0.0
        %v924 = vsel %vm883, %v905, 0.0
        %v925 = vsel %vm884, %v907, 0.0
        %v926 = vsel %vm885, %v909, 0.0
        %v927 = vsel %vm886, %v911, 0.0
        %v928 = vsel %vm863, 1, 0
        %v929 = vsel %vm864, 1, 0
        %v930 = vsel %vm865, 1, 0
        %v931 = vsel %vm866, 1, 0
        %v932 = vsel %vm867, 1, 0
        %v933 = vsel %vm868, 1, 0
        %v934 = vsel %vm869, 1, 0
        %v935 = vsel %vm870, 1, 0
        %vm936 = vcmp.eq.s32.totalorder %v928, 1
        %vm937 = vcmp.eq.s32.totalorder %v929, 1
        %vm938 = vcmp.eq.s32.totalorder %v930, 1
        %vm939 = vcmp.eq.s32.totalorder %v931, 1
        %vm940 = vcmp.eq.s32.totalorder %v932, 1
        %vm941 = vcmp.eq.s32.totalorder %v933, 1
        %vm942 = vcmp.eq.s32.totalorder %v934, 1
        %vm943 = vcmp.eq.s32.totalorder %v935, 1
        %vm945 = vcmask 1046528
        %v946 = vrot.slane 0.0, 1
        %v947 = vrot.slane %v704, 1
        %v948 = vsel %vm945, %v946, %v947
        %v949 = vrot.slane %v705, 1
        %v950 = vsel %vm945, %v947, %v949
        %v951 = vrot.slane %v706, 1
        %v952 = vsel %vm945, %v949, %v951
        %v953 = vrot.slane %v707, 1
        %v954 = vsel %vm945, %v951, %v953
        %v955 = vrot.slane %v708, 1
        %v956 = vsel %vm945, %v953, %v955
        %v957 = vrot.slane %v709, 1
        %v958 = vsel %vm945, %v955, %v957
        %v959 = vrot.slane %v710, 1
        %v960 = vsel %vm945, %v957, %v959
        %v961 = vrot.slane %v711, 1
        %v962 = vsel %vm945, %v959, %v961
        %v971 = vsel %vm936, %v948, 0.0
        %v972 = vsel %vm937, %v950, 0.0
        %v973 = vsel %vm938, %v952, 0.0
        %v974 = vsel %vm939, %v954, 0.0
        %v975 = vsel %vm940, %v956, 0.0
        %v976 = vsel %vm941, %v958, 0.0
        %v977 = vsel %vm942, %v960, 0.0
        %v978 = vsel %vm943, %v962, 0.0
        %v979 = vrot.slane %v711, 7
        %v980 = vsel %vm895, %v910, %v979
        %v982 = vsel %vm879, %v899, 0.0
        %v983 = vsel %vm880, %v901, 0.0
        %v984 = vsel %vm881, %v903, 0.0
        %v985 = vsel %vm882, %v905, 0.0
        %v986 = vsel %vm883, %v907, 0.0
        %v987 = vsel %vm884, %v909, 0.0
        %v988 = vsel %vm885, %v911, 0.0
        %v989 = vsel %vm886, %v980, 0.0
        %v990 = vsel %vm945, %v961, %v946
        %v992 = vsel %vm936, %v950, 0.0
        %v993 = vsel %vm937, %v952, 0.0
        %v994 = vsel %vm938, %v954, 0.0
        %v995 = vsel %vm939, %v956, 0.0
        %v996 = vsel %vm940, %v958, 0.0
        %v997 = vsel %vm941, %v960, 0.0
        %v998 = vsel %vm942, %v962, 0.0
        %v999 = vsel %vm943, %v990, 0.0
        %v1000 = vsel %vm895, %v979, %v896
        %v1002 = vsel %vm879, %v901, 0.0
        %v1003 = vsel %vm880, %v903, 0.0
        %v1004 = vsel %vm881, %v905, 0.0
        %v1005 = vsel %vm882, %v907, 0.0
        %v1006 = vsel %vm883, %v909, 0.0
        %v1007 = vsel %vm884, %v911, 0.0
        %v1008 = vsel %vm885, %v980, 0.0
        %v1009 = vsel %vm886, %v1000, 0.0
        %v1010 = vsel %vm945, %v946, %v946
        %v1012 = vsel %vm936, %v952, 0.0
        %v1013 = vsel %vm937, %v954, 0.0
        %v1014 = vsel %vm938, %v956, 0.0
        %v1015 = vsel %vm939, %v958, 0.0
        %v1016 = vsel %vm940, %v960, 0.0
        %v1017 = vsel %vm941, %v962, 0.0
        %v1018 = vsel %vm942, %v990, 0.0
        %v1019 = vsel %vm943, %v1010, 0.0
        %1020 = vrot.lane.b32.xlu0 0.0, 32
        %v1021 = vpop.permute.xlu0 %1020
        %1022 = vrot.lane.b32.xlu0 %v704, 32
        %v1023 = vpop.permute.xlu0 %1022
        %1024 = vrot.lane.b32.xlu0 %v705, 32
        %v1025 = vpop.permute.xlu0 %1024
        %1026 = vrot.lane.b32.xlu0 %v706, 32
        %v1027 = vpop.permute.xlu0 %1026
        %1028 = vrot.lane.b32.xlu0 %v707, 32
        %v1029 = vpop.permute.xlu0 %1028
        %1030 = vrot.lane.b32.xlu0 %v708, 32
        %v1031 = vpop.permute.xlu0 %1030
        %1032 = vrot.lane.b32.xlu0 %v709, 32
        %v1033 = vpop.permute.xlu0 %1032
        %1034 = vrot.lane.b32.xlu0 %v710, 32
        %v1035 = vpop.permute.xlu0 %1034
        %1052 = vrot.lane.b32.xlu0 %v971, 64
        %v1053 = vpop.permute.xlu0 %1052
        %1054 = vrot.lane.b32.xlu0 %v972, 64
        %v1055 = vpop.permute.xlu0 %1054
        %1056 = vrot.lane.b32.xlu0 %v973, 64
        %v1057 = vpop.permute.xlu0 %1056
        %1058 = vrot.lane.b32.xlu0 %v974, 64
        %v1059 = vpop.permute.xlu0 %1058
        %1060 = vrot.lane.b32.xlu0 %v975, 64
        %v1061 = vpop.permute.xlu0 %1060
        %1062 = vrot.lane.b32.xlu0 %v976, 64
        %v1063 = vpop.permute.xlu0 %1062
        %1064 = vrot.lane.b32.xlu0 %v977, 64
        %v1065 = vpop.permute.xlu0 %1064
        %1066 = vrot.lane.b32.xlu0 %v978, 64
        %v1067 = vpop.permute.xlu0 %1066
        %1084 = vrot.lane.b32.xlu0 %v982, 96
        %v1085 = vpop.permute.xlu0 %1084
        %1086 = vrot.lane.b32.xlu0 %v983, 96
        %v1087 = vpop.permute.xlu0 %1086
        %1088 = vrot.lane.b32.xlu0 %v984, 96
        %v1089 = vpop.permute.xlu0 %1088
        %1090 = vrot.lane.b32.xlu0 %v985, 96
        %v1091 = vpop.permute.xlu0 %1090
        %1092 = vrot.lane.b32.xlu0 %v986, 96
        %v1093 = vpop.permute.xlu0 %1092
        %1094 = vrot.lane.b32.xlu0 %v987, 96
        %v1095 = vpop.permute.xlu0 %1094
        %1096 = vrot.lane.b32.xlu0 %v988, 96
        %v1097 = vpop.permute.xlu0 %1096
        %1098 = vrot.lane.b32.xlu0 %v989, 96
        %v1099 = vpop.permute.xlu0 %1098
        %1116 = vrot.lane.b32.xlu0 %v992, 32
        %v1117 = vpop.permute.xlu0 %1116
        %1118 = vrot.lane.b32.xlu0 %v993, 32
        %v1119 = vpop.permute.xlu0 %1118
        %1120 = vrot.lane.b32.xlu0 %v994, 32
        %v1121 = vpop.permute.xlu0 %1120
        %1122 = vrot.lane.b32.xlu0 %v995, 32
        %v1123 = vpop.permute.xlu0 %1122
        %1124 = vrot.lane.b32.xlu0 %v996, 32
        %v1125 = vpop.permute.xlu0 %1124
        %1126 = vrot.lane.b32.xlu0 %v997, 32
        %v1127 = vpop.permute.xlu0 %1126
        %1128 = vrot.lane.b32.xlu0 %v998, 32
        %v1129 = vpop.permute.xlu0 %1128
        %1130 = vrot.lane.b32.xlu0 %v999, 32
        %v1131 = vpop.permute.xlu0 %1130
        %1148 = vrot.lane.b32.xlu0 %v1002, 64
        %v1149 = vpop.permute.xlu0 %1148
        %1150 = vrot.lane.b32.xlu0 %v1003, 64
        %v1151 = vpop.permute.xlu0 %1150
        %1152 = vrot.lane.b32.xlu0 %v1004, 64
        %v1153 = vpop.permute.xlu0 %1152
        %1154 = vrot.lane.b32.xlu0 %v1005, 64
        %v1155 = vpop.permute.xlu0 %1154
        %1156 = vrot.lane.b32.xlu0 %v1006, 64
        %v1157 = vpop.permute.xlu0 %1156
        %1158 = vrot.lane.b32.xlu0 %v1007, 64
        %v1159 = vpop.permute.xlu0 %1158
        %1160 = vrot.lane.b32.xlu0 %v1008, 64
        %v1161 = vpop.permute.xlu0 %1160
        %1162 = vrot.lane.b32.xlu0 %v1009, 64
        %v1163 = vpop.permute.xlu0 %1162
        %1172 = vrot.lane.b32.xlu0 %v705, 96
        %v1173 = vpop.permute.xlu0 %1172
        %1174 = vrot.lane.b32.xlu0 %v706, 96
        %v1175 = vpop.permute.xlu0 %1174
        %1176 = vrot.lane.b32.xlu0 %v707, 96
        %v1177 = vpop.permute.xlu0 %1176
        %1178 = vrot.lane.b32.xlu0 %v708, 96
        %v1179 = vpop.permute.xlu0 %1178
        %1180 = vrot.lane.b32.xlu0 %v709, 96
        %v1181 = vpop.permute.xlu0 %1180
        %1182 = vrot.lane.b32.xlu0 %v710, 96
        %v1183 = vpop.permute.xlu0 %1182
        %1184 = vrot.lane.b32.xlu0 %v711, 96
        %v1185 = vpop.permute.xlu0 %1184
        %1186 = vrot.lane.b32.xlu0 0.0, 96
        %v1187 = vpop.permute.xlu0 %1186
        %v1196 = vsel %vm539, %v920, %v1021
        %v1197 = vsel %vm539, %v921, %v1023
        %v1198 = vsel %vm539, %v922, %v1025
        %v1199 = vsel %vm539, %v923, %v1027
        %v1200 = vsel %vm539, %v924, %v1029
        %v1201 = vsel %vm539, %v925, %v1031
        %v1202 = vsel %vm539, %v926, %v1033
        %v1203 = vsel %vm539, %v927, %v1035
        %v1204 = vsel %vm483, %v1196, %v1053
        %v1205 = vsel %vm483, %v1197, %v1055
        %v1206 = vsel %vm483, %v1198, %v1057
        %v1207 = vsel %vm483, %v1199, %v1059
        %v1208 = vsel %vm483, %v1200, %v1061
        %v1209 = vsel %vm483, %v1201, %v1063
        %v1210 = vsel %vm483, %v1202, %v1065
        %v1211 = vsel %vm483, %v1203, %v1067
        %vm1212 = vcmask 785408
        %v1213 = vsel %vm1212, %v1204, %v1085
        %v1214 = vsel %vm1212, %v1205, %v1087
        %v1215 = vsel %vm1212, %v1206, %v1089
        %v1216 = vsel %vm1212, %v1207, %v1091
        %v1217 = vsel %vm1212, %v1208, %v1093
        %v1218 = vsel %vm1212, %v1209, %v1095
        %v1219 = vsel %vm1212, %v1210, %v1097
        %v1220 = vsel %vm1212, %v1211, %v1099
        %v1221 = vsel %vm539, %v704, %v1117
        %v1222 = vsel %vm539, %v705, %v1119
        %v1223 = vsel %vm539, %v706, %v1121
        %v1224 = vsel %vm539, %v707, %v1123
        %v1225 = vsel %vm539, %v708, %v1125
        %v1226 = vsel %vm539, %v709, %v1127
        %v1227 = vsel %vm539, %v710, %v1129
        %v1228 = vsel %vm539, %v711, %v1131
        %v1229 = vsel %vm483, %v1221, %v1149
        %v1230 = vsel %vm483, %v1222, %v1151
        %v1231 = vsel %vm483, %v1223, %v1153
        %v1232 = vsel %vm483, %v1224, %v1155
        %v1233 = vsel %vm483, %v1225, %v1157
        %v1234 = vsel %vm483, %v1226, %v1159
        %v1235 = vsel %vm483, %v1227, %v1161
        %v1236 = vsel %vm483, %v1228, %v1163
        %v1237 = vsel %vm1212, %v1229, %v1173
        %v1238 = vsel %vm1212, %v1230, %v1175
        %v1239 = vsel %vm1212, %v1231, %v1177
        %v1240 = vsel %vm1212, %v1232, %v1179
        %v1241 = vsel %vm1212, %v1233, %v1181
        %v1242 = vsel %vm1212, %v1234, %v1183
        %v1243 = vsel %vm1212, %v1235, %v1185
        %v1244 = vsel %vm1212, %v1236, %v1187
        %v1245 = vpack.c.bf16 %v1214, %v1213
        %v1246 = vpack.c.bf16 %v1238, %v1237
        %v1247 = vpack.c.bf16 %v1013, %v1012
        %v1248 = vpack.c.bf16 %v1216, %v1215
        %v1249 = vpack.c.bf16 %v1240, %v1239
        %v1250 = vpack.c.bf16 %v1015, %v1014
        %v1251 = vpack.c.bf16 %v1218, %v1217
        %v1252 = vpack.c.bf16 %v1242, %v1241
        %v1253 = vpack.c.bf16 %v1017, %v1016
        %v1254 = vpack.c.bf16 %v1220, %v1219
        %v1255 = vpack.c.bf16 %v1244, %v1243
        %v1256 = vpack.c.bf16 %v1019, %v1018
        %v1293 = vunpack.c.l.b16 %v712
        %v1294 = vunpack.c.l.b16 %v713
        %v1295 = vunpack.c.l.b16 %v714
        %v1296 = vunpack.c.l.b16 %v715
        %v1297 = vunpack.c.l.b16 %v716
        %v1298 = vunpack.c.l.b16 %v717
        %v1299 = vunpack.c.l.b16 %v718
        %v1300 = vunpack.c.l.b16 %v719
        %v1301 = vunpack.c.l.b16 %v720
        %v1302 = vunpack.c.l.b16 %v721
        %v1303 = vunpack.c.l.b16 %v722
        %v1304 = vunpack.c.l.b16 %v723
        %v1305 = vunpack.c.l.b16 %v724
        %v1306 = vunpack.c.l.b16 %v725
        %v1307 = vunpack.c.l.b16 %v726
        %v1308 = vunpack.c.l.b16 %v727
        %v1309 = vunpack.c.l.b16 %v728
        %v1310 = vunpack.c.l.b16 %v729
        %v1311 = vunpack.c.l.b16 %v730
        %v1312 = vunpack.c.l.b16 %v731
        %v1313 = vunpack.c.l.b16 %v732
        %v1314 = vunpack.c.l.b16 %v733
        %v1315 = vunpack.c.l.b16 %v734
        %v1316 = vunpack.c.l.b16 %v735
        %v1317 = vunpack.c.l.b16 %v736
        %v1318 = vunpack.c.l.b16 %v737
        %v1319 = vunpack.c.l.b16 %v738
        %v1320 = vunpack.c.l.b16 %v739
        %v1321 = vunpack.c.l.b16 %v740
        %v1322 = vunpack.c.l.b16 %v741
        %v1323 = vunpack.c.l.b16 %v742
        %v1324 = vunpack.c.l.b16 %v743
        %v1325 = vunpack.c.l.b16 %v744
        %v1326 = vunpack.c.l.b16 %v745
        %v1327 = vunpack.c.l.b16 %v746
        %v1328 = vunpack.c.l.b16 %v747
        %v1329 = vpack.c.b16 %v1294, %v1293
        %v1330 = vpack.c.b16 %v1296, %v1295
        %v1331 = vpack.c.b16 %v1298, %v1297
        %v1332 = vpack.c.b16 %v1300, %v1299
        %v1333 = vpack.c.b16 %v1302, %v1301
        %v1334 = vpack.c.b16 %v1304, %v1303
        %v1335 = vpack.c.b16 %v1306, %v1305
        %v1336 = vpack.c.b16 %v1308, %v1307
        %v1337 = vpack.c.b16 %v1310, %v1309
        %v1338 = vpack.c.b16 %v1312, %v1311
        %v1339 = vpack.c.b16 %v1314, %v1313
        %v1340 = vpack.c.b16 %v1316, %v1315
        %v1341 = vpack.c.b16 %v1318, %v1317
        %v1342 = vpack.c.b16 %v1320, %v1319
        %v1343 = vpack.c.b16 %v1322, %v1321
        %v1344 = vpack.c.b16 %v1324, %v1323
        %v1345 = vpack.c.b16 %v1326, %v1325
        %v1346 = vpack.c.b16 %v1328, %v1327
        %v1366 = vsel %vm539, %v1247, 0
        %v1369 = vsel %vm539, %v1250, 0
        %v1372 = vsel %vm539, %v1253, 0
        %v1375 = vsel %vm539, %v1256, 0
        %1377 = vmatprep.subr.bf16.mxu0 0
        %1378 = vmatpush1.bf16.msra.mxu0 %v1329
        %1379 = vmatprep.subr.bf16.mxu0 0
        %1380 = vmatpush1.bf16.msra.mxu0 %v1330
        %1381 = vmatprep.subr.bf16.mxu0 0
        %1382 = vmatpush1.bf16.msra.mxu0 %v1331
        %1383 = vmatprep.subr.bf16.mxu0 0
        %1384 = vmatpush1.bf16.msra.mxu0 %v1332
        %1385 = vmatprep.subr.bf16.mxu0 0
        %1386 = vmatpush1.bf16.msra.mxu0 %v1333
        %1387 = vmatprep.subr.bf16.mxu0 0
        %1388 = vmatpush1.bf16.msra.mxu0 %v1334
        %1389 = vmatprep.subr.bf16.mxu0 0
        %1390 = vmatpush1.bf16.msra.mxu0 %v1335
        %1391 = vmatprep.subr.bf16.mxu0 0
        %1392 = vmatpush1.bf16.msra.mxu0 %v1336
        %1393 = vmatprep.subr.bf16.mxu0 0
        %1394 = vmatpush1.bf16.msra.mxu0 %v1337
        %1395 = vmatprep.subr.bf16.mxu0 0
        %1396 = vmatpush1.bf16.msra.mxu0 %v1338
        %1397 = vmatprep.subr.bf16.mxu0 0
        %1398 = vmatpush1.bf16.msra.mxu0 %v1339
        %1399 = vmatprep.subr.bf16.mxu0 0
        %1400 = vmatpush1.bf16.msra.mxu0 %v1340
        %1401 = vmatprep.subr.bf16.mxu0 0
        %1402 = vmatpush1.bf16.msra.mxu0 %v1341
        %1403 = vmatprep.subr.bf16.mxu0 0
        %1404 = vmatpush1.bf16.msra.mxu0 %v1342
        %1405 = vmatprep.subr.bf16.mxu0 0
        %1406 = vmatpush1.bf16.msra.mxu0 %v1343
        %1407 = vmatprep.subr.bf16.mxu0 0
        %1408 = vmatpush1.bf16.msra.mxu0 %v1344
        %1409 = vmatprep.mubr.bf16.mxu0 %v1246
        %1410 = vmatmul.mubr.bf16.gmra.mrb[0].mxu0 %v1245
        %v1411 = vpop.f32.mrb[0].mxu0
        %v1412 = vadd.f32 0.0, %v1411
        %v1413 = vpop.f32.mrb[0].mxu0
        %v1414 = vpop.f32.mrb[0].mxu0
        %v1415 = vadd.f32 0.0, %v1414
        %v1416 = vpop.f32.mrb[0].mxu0
        %1417 = vmatprep.mubr.bf16.mxu0 %v1249
        %1418 = vmatmul.mubr.bf16.gmra.mrb[0].mxu0 %v1248
        %v1419 = vpop.f32.mrb[0].mxu0
        %v1420 = vadd.f32 0.0, %v1419
        %v1421 = vpop.f32.mrb[0].mxu0
        %v1422 = vpop.f32.mrb[0].mxu0
        %v1423 = vadd.f32 0.0, %v1422
        %v1424 = vpop.f32.mrb[0].mxu0
        %1425 = vmatprep.mubr.bf16.mxu0 %v1252
        %1426 = vmatmul.mubr.bf16.gmra.mrb[0].mxu0 %v1251
        %v1427 = vpop.f32.mrb[0].mxu0
        %v1428 = vadd.f32 0.0, %v1427
        %v1429 = vpop.f32.mrb[0].mxu0
        %v1430 = vpop.f32.mrb[0].mxu0
        %v1431 = vadd.f32 0.0, %v1430
        %v1432 = vpop.f32.mrb[0].mxu0
        %1433 = vmatprep.mubr.bf16.mxu0 %v1255
        %1434 = vmatmul.mubr.bf16.gmra.mrb[0].mxu0 %v1254
        %v1435 = vpop.f32.mrb[0].mxu0
        %v1436 = vadd.f32 0.0, %v1435
        %v1437 = vpop.f32.mrb[0].mxu0
        %v1438 = vpop.f32.mrb[0].mxu0
        %v1439 = vadd.f32 0.0, %v1438
        %v1440 = vpop.f32.mrb[0].mxu0
        %1441 = vdwg.mxu0
        %1442 = vmatprep.subr.bf16.mxu0 0
        %1443 = vmatpush1.bf16.msra.mxu0 %v1345
        %1444 = vmatprep.subr.bf16.mxu0 0
        %1445 = vmatpush1.bf16.msra.mxu0 %v1346
        %1446 = vmatprep.subr.bf16.mxu0 0
        %1447 = vmatpush1.bf16.msra.mxu0 0
        %1448 = vmatprep.subr.bf16.mxu0 0
        %1449 = vmatpush1.bf16.msra.mxu0 0
        %1450 = vmatprep.subr.bf16.mxu0 0
        %1451 = vmatpush1.bf16.msra.mxu0 0
        %1452 = vmatprep.subr.bf16.mxu0 0
        %1453 = vmatpush1.bf16.msra.mxu0 0
        %1454 = vmatprep.subr.bf16.mxu0 0
        %1455 = vmatpush1.bf16.msra.mxu0 0
        %1456 = vmatprep.subr.bf16.mxu0 0
        %1457 = vmatpush1.bf16.msra.mxu0 0
        %1458 = vmatprep.subr.bf16.mxu0 0
        %1459 = vmatpush1.bf16.msra.mxu0 0
        %1460 = vmatprep.subr.bf16.mxu0 0
        %1461 = vmatpush1.bf16.msra.mxu0 0
        %1462 = vmatprep.subr.bf16.mxu0 0
        %1463 = vmatpush1.bf16.msra.mxu0 0
        %1464 = vmatprep.subr.bf16.mxu0 0
        %1465 = vmatpush1.bf16.msra.mxu0 0
        %1466 = vmatprep.subr.bf16.mxu0 0
        %1467 = vmatpush1.bf16.msra.mxu0 0
        %1468 = vmatprep.subr.bf16.mxu0 0
        %1469 = vmatpush1.bf16.msra.mxu0 0
        %1470 = vmatprep.subr.bf16.mxu0 0
        %1471 = vmatpush1.bf16.msra.mxu0 0
        %1472 = vmatprep.subr.bf16.mxu0 0
        %1473 = vmatpush1.bf16.msra.mxu0 0
        %1474 = vmatprep.mubr.bf16.mxu0 0
        %1475 = vmatmul.mubr.bf16.gmra.mrb[0].mxu0 %v1366
        %v1476 = vpop.f32.mrb[0].mxu0
        %v1477 = vadd.f32 %v1412, %v1476
        %v1478 = vpop.f32.mrb[0].mxu0
        %v1479 = vpop.f32.mrb[0].mxu0
        %v1480 = vadd.f32 %v1415, %v1479
        %v1481 = vpop.f32.mrb[0].mxu0
        %1482 = vmatprep.mubr.bf16.mxu0 0
        %1483 = vmatmul.mubr.bf16.gmra.mrb[0].mxu0 %v1369
        %v1484 = vpop.f32.mrb[0].mxu0
        %v1485 = vadd.f32 %v1420, %v1484
        %v1486 = vpop.f32.mrb[0].mxu0
        %v1487 = vpop.f32.mrb[0].mxu0
        %v1488 = vadd.f32 %v1423, %v1487
        %v1489 = vpop.f32.mrb[0].mxu0
        %1490 = vmatprep.mubr.bf16.mxu0 0
        %1491 = vmatmul.mubr.bf16.gmra.mrb[0].mxu0 %v1372
        %v1492 = vpop.f32.mrb[0].mxu0
        %v1493 = vadd.f32 %v1428, %v1492
        %v1494 = vpop.f32.mrb[0].mxu0
        %v1495 = vpop.f32.mrb[0].mxu0
        %v1496 = vadd.f32 %v1431, %v1495
        %v1497 = vpop.f32.mrb[0].mxu0
        %1498 = vmatprep.mubr.bf16.mxu0 0
        %1499 = vmatmul.mubr.bf16.gmra.mrb[0].mxu0 %v1375
        %v1500 = vpop.f32.mrb[0].mxu0
        %v1501 = vadd.f32 %v1436, %v1500
        %v1502 = vpop.f32.mrb[0].mxu0
        %v1503 = vpop.f32.mrb[0].mxu0
        %v1504 = vadd.f32 %v1439, %v1503
        %v1505 = vpop.f32.mrb[0].mxu0
        %1506 = vdwg.mxu0
        %v1508 = vlaneseq
        %v1509 = vshrl.u32 %v1508, 7
        %v1510 = vsub.s32 0, %v1509
        %v1511 = vrot.slane %v748, %v1510
        %v1513 = vmul.f32 %v1477, %v1511
        %v1514 = vmul.f32 %v1480, %v1511
        %v1515 = vmul.f32 %v1485, %v1511
        %v1516 = vmul.f32 %v1488, %v1511
        %v1517 = vmul.f32 %v1493, %v1511
        %v1518 = vmul.f32 %v1496, %v1511
        %v1519 = vmul.f32 %v1501, %v1511
        %v1520 = vmul.f32 %v1504, %v1511
        %v1522 = vlaneseq
        %v1523 = vshrl.u32 %v1522, 7
        %v1524 = vsub.s32 0, %v1523
        %v1525 = vrot.slane %v749, %v1524
        %v1527 = vadd.f32 %v1513, %v1525
        %v1528 = vadd.f32 %v1514, %v1525
        %v1529 = vadd.f32 %v1515, %v1525
        %v1530 = vadd.f32 %v1516, %v1525
        %v1531 = vadd.f32 %v1517, %v1525
        %v1532 = vadd.f32 %v1518, %v1525
        %v1533 = vadd.f32 %v1519, %v1525
        %v1534 = vadd.f32 %v1520, %v1525
        %v1535 = vmax.f32 %v1527, 0.0
        %v1536 = vmax.f32 %v1528, 0.0
        %v1537 = vmax.f32 %v1529, 0.0
        %v1538 = vmax.f32 %v1530, 0.0
        %v1539 = vmax.f32 %v1531, 0.0
        %v1540 = vmax.f32 %v1532, 0.0
        %v1541 = vmax.f32 %v1533, 0.0
        %v1542 = vmax.f32 %v1534, 0.0
        %v1543 = vld [vmem:[%s7] sm:$0xf]
        %v1544 = vld [vmem:[%s7 + $0x4] sm:$0xf]
        %v1545 = vld [vmem:[%s7 + $0x8] sm:$0xf]
        %v1546 = vld [vmem:[%s7 + $0xc] sm:$0xf]
        %v1547 = vld [vmem:[%s7 + $0x10] sm:$0xf]
        %v1548 = vld [vmem:[%s7 + $0x14] sm:$0xf]
        %v1549 = vld [vmem:[%s7 + $0x18] sm:$0xf]
        %v1550 = vld [vmem:[%s7 + $0x1c] sm:$0xf]
        %v1551 = vld [vmem:[%s7 + $0x20] sm:$0xf]
        %v1552 = vld [vmem:[%s7 + $0x24] sm:$0xf]
        %v1553 = vld [vmem:[%s7 + $0x28] sm:$0xf]
        %v1554 = vld [vmem:[%s7 + $0x2c] sm:$0xf]
        %v1555 = vld [vmem:[%s7 + $0x30] sm:$0xf]
        %v1556 = vld [vmem:[%s7 + $0x34] sm:$0xf]
        %v1557 = vld [vmem:[%s7 + $0x38] sm:$0xf]
        %v1558 = vld [vmem:[%s7 + $0x3c] sm:$0xf]
        %v1559 = vld [vmem:[%s7 + $0x40] sm:$0xf]
        %v1560 = vld [vmem:[%s7 + $0x44] sm:$0xf]
        %v1561 = vld [vmem:[%s7 + $0x48] sm:$0xf]
        %v1562 = vld [vmem:[%s7 + $0x4c] sm:$0xf]
        %v1563 = vld [vmem:[%s7 + $0x50] sm:$0xf]
        %v1564 = vld [vmem:[%s7 + $0x54] sm:$0xf]
        %v1565 = vld [vmem:[%s7 + $0x58] sm:$0xf]
        %v1566 = vld [vmem:[%s7 + $0x5c] sm:$0xf]
        %v1567 = vld [vmem:[%s7 + $0x60] sm:$0xf]
        %v1568 = vld [vmem:[%s7 + $0x64] sm:$0xf]
        %v1569 = vld [vmem:[%s7 + $0x68] sm:$0xf]
        %v1570 = vld [vmem:[%s7 + $0x6c] sm:$0xf]
        %v1571 = vld [vmem:[%s7 + $0x70] sm:$0xf]
        %v1572 = vld [vmem:[%s7 + $0x74] sm:$0xf]
        %v1573 = vld [vmem:[%s7 + $0x78] sm:$0xf]
        %v1574 = vld [vmem:[%s7 + $0x7c] sm:$0xf]
        %v1575 = vld [vmem:[%s7 + $0x80] sm:$0xf]
        %v1576 = vld [vmem:[%s7 + $0x84] sm:$0xf]
        %v1577 = vld [vmem:[%s7 + $0x88] sm:$0xf]
        %v1578 = vld [vmem:[%s7 + $0x8c] sm:$0xf]
        %v1579 = vld [vmem:[%s8] sm:$0x1]
        %v1580 = vld [vmem:[%s9] sm:$0x1]
        %v1588 = vrot.slane %v696, 7
        %v1589 = vsel %vm895, %v896, %v1588
        %v1590 = vrot.slane %v697, 7
        %v1591 = vsel %vm895, %v1588, %v1590
        %v1592 = vrot.slane %v698, 7
        %v1593 = vsel %vm895, %v1590, %v1592
        %v1594 = vrot.slane %v699, 7
        %v1595 = vsel %vm895, %v1592, %v1594
        %v1596 = vrot.slane %v700, 7
        %v1597 = vsel %vm895, %v1594, %v1596
        %v1598 = vrot.slane %v701, 7
        %v1599 = vsel %vm895, %v1596, %v1598
        %v1600 = vrot.slane %v702, 7
        %v1601 = vsel %vm895, %v1598, %v1600
        %v1609 = vsel %vm880, %v1589, 0.0
        %v1610 = vsel %vm881, %v1591, 0.0
        %v1611 = vsel %vm882, %v1593, 0.0
        %v1612 = vsel %vm883, %v1595, 0.0
        %v1613 = vsel %vm884, %v1597, 0.0
        %v1614 = vsel %vm885, %v1599, 0.0
        %v1615 = vsel %vm886, %v1601, 0.0
        %v1617 = vrot.slane %v696, 1
        %v1618 = vsel %vm945, %v946, %v1617
        %v1619 = vrot.slane %v697, 1
        %v1620 = vsel %vm945, %v1617, %v1619
        %v1621 = vrot.slane %v698, 1
        %v1622 = vsel %vm945, %v1619, %v1621
        %v1623 = vrot.slane %v699, 1
        %v1624 = vsel %vm945, %v1621, %v1623
        %v1625 = vrot.slane %v700, 1
        %v1626 = vsel %vm945, %v1623, %v1625
        %v1627 = vrot.slane %v701, 1
        %v1628 = vsel %vm945, %v1625, %v1627
        %v1629 = vrot.slane %v702, 1
        %v1630 = vsel %vm945, %v1627, %v1629
        %v1631 = vrot.slane %v703, 1
        %v1632 = vsel %vm945, %v1629, %v1631
        %v1641 = vsel %vm936, %v1618, 0.0
        %v1642 = vsel %vm937, %v1620, 0.0
        %v1643 = vsel %vm938, %v1622, 0.0
        %v1644 = vsel %vm939, %v1624, 0.0
        %v1645 = vsel %vm940, %v1626, 0.0
        %v1646 = vsel %vm941, %v1628, 0.0
        %v1647 = vsel %vm942, %v1630, 0.0
        %v1648 = vsel %vm943, %v1632, 0.0
        %v1649 = vrot.slane %v703, 7
        %v1650 = vsel %vm895, %v1600, %v1649
        %v1652 = vsel %vm879, %v1589, 0.0
        %v1653 = vsel %vm880, %v1591, 0.0
        %v1654 = vsel %vm881, %v1593, 0.0
        %v1655 = vsel %vm882, %v1595, 0.0
        %v1656 = vsel %vm883, %v1597, 0.0
        %v1657 = vsel %vm884, %v1599, 0.0
        %v1658 = vsel %vm885, %v1601, 0.0
        %v1659 = vsel %vm886, %v1650, 0.0
        %v1660 = vsel %vm945, %v1631, %v946
        %v1662 = vsel %vm936, %v1620, 0.0
        %v1663 = vsel %vm937, %v1622, 0.0
        %v1664 = vsel %vm938, %v1624, 0.0
        %v1665 = vsel %vm939, %v1626, 0.0
        %v1666 = vsel %vm940, %v1628, 0.0
        %v1667 = vsel %vm941, %v1630, 0.0
        %v1668 = vsel %vm942, %v1632, 0.0
        %v1669 = vsel %vm943, %v1660, 0.0
        %v1670 = vsel %vm895, %v1649, %v896
        %v1672 = vsel %vm879, %v1591, 0.0
        %v1673 = vsel %vm880, %v1593, 0.0
        %v1674 = vsel %vm881, %v1595, 0.0
        %v1675 = vsel %vm882, %v1597, 0.0
        %v1676 = vsel %vm883, %v1599, 0.0
        %v1677 = vsel %vm884, %v1601, 0.0
        %v1678 = vsel %vm885, %v1650, 0.0
        %v1679 = vsel %vm886, %v1670, 0.0
        %v1680 = vsel %vm936, %v1622, 0.0
        %v1681 = vsel %vm937, %v1624, 0.0
        %v1682 = vsel %vm938, %v1626, 0.0
        %v1683 = vsel %vm939, %v1628, 0.0
        %v1684 = vsel %vm940, %v1630, 0.0
        %v1685 = vsel %vm941, %v1632, 0.0
        %v1686 = vsel %vm942, %v1660, 0.0
        %1687 = vrot.lane.b32.xlu0 %v696, 32
        %v1688 = vpop.permute.xlu0 %1687
        %1689 = vrot.lane.b32.xlu0 %v697, 32
        %v1690 = vpop.permute.xlu0 %1689
        %1691 = vrot.lane.b32.xlu0 %v698, 32
        %v1692 = vpop.permute.xlu0 %1691
        %1693 = vrot.lane.b32.xlu0 %v699, 32
        %v1694 = vpop.permute.xlu0 %1693
        %1695 = vrot.lane.b32.xlu0 %v700, 32
        %v1696 = vpop.permute.xlu0 %1695
        %1697 = vrot.lane.b32.xlu0 %v701, 32
        %v1698 = vpop.permute.xlu0 %1697
        %1699 = vrot.lane.b32.xlu0 %v702, 32
        %v1700 = vpop.permute.xlu0 %1699
        %1716 = vrot.lane.b32.xlu0 %v1641, 64
        %v1717 = vpop.permute.xlu0 %1716
        %1718 = vrot.lane.b32.xlu0 %v1642, 64
        %v1719 = vpop.permute.xlu0 %1718
        %1720 = vrot.lane.b32.xlu0 %v1643, 64
        %v1721 = vpop.permute.xlu0 %1720
        %1722 = vrot.lane.b32.xlu0 %v1644, 64
        %v1723 = vpop.permute.xlu0 %1722
        %1724 = vrot.lane.b32.xlu0 %v1645, 64
        %v1725 = vpop.permute.xlu0 %1724
        %1726 = vrot.lane.b32.xlu0 %v1646, 64
        %v1727 = vpop.permute.xlu0 %1726
        %1728 = vrot.lane.b32.xlu0 %v1647, 64
        %v1729 = vpop.permute.xlu0 %1728
        %1730 = vrot.lane.b32.xlu0 %v1648, 64
        %v1731 = vpop.permute.xlu0 %1730
        %1748 = vrot.lane.b32.xlu0 %v1652, 96
        %v1749 = vpop.permute.xlu0 %1748
        %1750 = vrot.lane.b32.xlu0 %v1653, 96
        %v1751 = vpop.permute.xlu0 %1750
        %1752 = vrot.lane.b32.xlu0 %v1654, 96
        %v1753 = vpop.permute.xlu0 %1752
        %1754 = vrot.lane.b32.xlu0 %v1655, 96
        %v1755 = vpop.permute.xlu0 %1754
        %1756 = vrot.lane.b32.xlu0 %v1656, 96
        %v1757 = vpop.permute.xlu0 %1756
        %1758 = vrot.lane.b32.xlu0 %v1657, 96
        %v1759 = vpop.permute.xlu0 %1758
        %1760 = vrot.lane.b32.xlu0 %v1658, 96
        %v1761 = vpop.permute.xlu0 %1760
        %1762 = vrot.lane.b32.xlu0 %v1659, 96
        %v1763 = vpop.permute.xlu0 %1762
        %1780 = vrot.lane.b32.xlu0 %v1662, 32
        %v1781 = vpop.permute.xlu0 %1780
        %1782 = vrot.lane.b32.xlu0 %v1663, 32
        %v1783 = vpop.permute.xlu0 %1782
        %1784 = vrot.lane.b32.xlu0 %v1664, 32
        %v1785 = vpop.permute.xlu0 %1784
        %1786 = vrot.lane.b32.xlu0 %v1665, 32
        %v1787 = vpop.permute.xlu0 %1786
        %1788 = vrot.lane.b32.xlu0 %v1666, 32
        %v1789 = vpop.permute.xlu0 %1788
        %1790 = vrot.lane.b32.xlu0 %v1667, 32
        %v1791 = vpop.permute.xlu0 %1790
        %1792 = vrot.lane.b32.xlu0 %v1668, 32
        %v1793 = vpop.permute.xlu0 %1792
        %1794 = vrot.lane.b32.xlu0 %v1669, 32
        %v1795 = vpop.permute.xlu0 %1794
        %1812 = vrot.lane.b32.xlu0 %v1672, 64
        %v1813 = vpop.permute.xlu0 %1812
        %1814 = vrot.lane.b32.xlu0 %v1673, 64
        %v1815 = vpop.permute.xlu0 %1814
        %1816 = vrot.lane.b32.xlu0 %v1674, 64
        %v1817 = vpop.permute.xlu0 %1816
        %1818 = vrot.lane.b32.xlu0 %v1675, 64
        %v1819 = vpop.permute.xlu0 %1818
        %1820 = vrot.lane.b32.xlu0 %v1676, 64
        %v1821 = vpop.permute.xlu0 %1820
        %1822 = vrot.lane.b32.xlu0 %v1677, 64
        %v1823 = vpop.permute.xlu0 %1822
        %1824 = vrot.lane.b32.xlu0 %v1678, 64
        %v1825 = vpop.permute.xlu0 %1824
        %1826 = vrot.lane.b32.xlu0 %v1679, 64
        %v1827 = vpop.permute.xlu0 %1826
        %1836 = vrot.lane.b32.xlu0 %v697, 96
        %v1837 = vpop.permute.xlu0 %1836
        %1838 = vrot.lane.b32.xlu0 %v698, 96
        %v1839 = vpop.permute.xlu0 %1838
        %1840 = vrot.lane.b32.xlu0 %v699, 96
        %v1841 = vpop.permute.xlu0 %1840
        %1842 = vrot.lane.b32.xlu0 %v700, 96
        %v1843 = vpop.permute.xlu0 %1842
        %1844 = vrot.lane.b32.xlu0 %v701, 96
        %v1845 = vpop.permute.xlu0 %1844
        %1846 = vrot.lane.b32.xlu0 %v702, 96
        %v1847 = vpop.permute.xlu0 %1846
        %1848 = vrot.lane.b32.xlu0 %v703, 96
        %v1849 = vpop.permute.xlu0 %1848
        %v1857 = vsel %vm539, %v1609, %v1688
        %v1858 = vsel %vm539, %v1610, %v1690
        %v1859 = vsel %vm539, %v1611, %v1692
        %v1860 = vsel %vm539, %v1612, %v1694
        %v1861 = vsel %vm539, %v1613, %v1696
        %v1862 = vsel %vm539, %v1614, %v1698
        %v1863 = vsel %vm539, %v1615, %v1700
        %v1864 = vsel %vm483, %v1196, %v1717
        %v1865 = vsel %vm483, %v1857, %v1719
        %v1866 = vsel %vm483, %v1858, %v1721
        %v1867 = vsel %vm483, %v1859, %v1723
        %v1868 = vsel %vm483, %v1860, %v1725
        %v1869 = vsel %vm483, %v1861, %v1727
        %v1870 = vsel %vm483, %v1862, %v1729
        %v1871 = vsel %vm483, %v1863, %v1731
        %v1872 = vsel %vm1212, %v1864, %v1749
        %v1873 = vsel %vm1212, %v1865, %v1751
        %v1874 = vsel %vm1212, %v1866, %v1753
        %v1875 = vsel %vm1212, %v1867, %v1755
        %v1876 = vsel %vm1212, %v1868, %v1757
        %v1877 = vsel %vm1212, %v1869, %v1759
        %v1878 = vsel %vm1212, %v1870, %v1761
        %v1879 = vsel %vm1212, %v1871, %v1763
        %v1880 = vsel %vm539, %v696, %v1781
        %v1881 = vsel %vm539, %v697, %v1783
        %v1882 = vsel %vm539, %v698, %v1785
        %v1883 = vsel %vm539, %v699, %v1787
        %v1884 = vsel %vm539, %v700, %v1789
        %v1885 = vsel %vm539, %v701, %v1791
        %v1886 = vsel %vm539, %v702, %v1793
        %v1887 = vsel %vm539, %v703, %v1795
        %v1888 = vsel %vm483, %v1880, %v1813
        %v1889 = vsel %vm483, %v1881, %v1815
        %v1890 = vsel %vm483, %v1882, %v1817
        %v1891 = vsel %vm483, %v1883, %v1819
        %v1892 = vsel %vm483, %v1884, %v1821
        %v1893 = vsel %vm483, %v1885, %v1823
        %v1894 = vsel %vm483, %v1886, %v1825
        %v1895 = vsel %vm483, %v1887, %v1827
        %v1896 = vsel %vm1212, %v1888, %v1837
        %v1897 = vsel %vm1212, %v1889, %v1839
        %v1898 = vsel %vm1212, %v1890, %v1841
        %v1899 = vsel %vm1212, %v1891, %v1843
        %v1900 = vsel %vm1212, %v1892, %v1845
        %v1901 = vsel %vm1212, %v1893, %v1847
        %v1902 = vsel %vm1212, %v1894, %v1849
        %v1903 = vsel %vm1212, %v1895, %v1187
        %v1904 = vpack.c.bf16 %v1873, %v1872
        %v1905 = vpack.c.bf16 %v1897, %v1896
        %v1906 = vpack.c.bf16 %v1681, %v1680
        %v1907 = vpack.c.bf16 %v1875, %v1874
        %v1908 = vpack.c.bf16 %v1899, %v1898
        %v1909 = vpack.c.bf16 %v1683, %v1682
        %v1910 = vpack.c.bf16 %v1877, %v1876
        %v1911 = vpack.c.bf16 %v1901, %v1900
        %v1912 = vpack.c.bf16 %v1685, %v1684
        %v1913 = vpack.c.bf16 %v1879, %v1878
        %v1914 = vpack.c.bf16 %v1903, %v1902
        %v1915 = vpack.c.bf16 %v1019, %v1686
        %v1952 = vunpack.c.l.b16 %v1543
        %v1953 = vunpack.c.l.b16 %v1544
        %v1954 = vunpack.c.l.b16 %v1545
        %v1955 = vunpack.c.l.b16 %v1546
        %v1956 = vunpack.c.l.b16 %v1547
        %v1957 = vunpack.c.l.b16 %v1548
        %v1958 = vunpack.c.l.b16 %v1549
        %v1959 = vunpack.c.l.b16 %v1550
        %v1960 = vunpack.c.l.b16 %v1551
        %v1961 = vunpack.c.l.b16 %v1552
        %v1962 = vunpack.c.l.b16 %v1553
        %v1963 = vunpack.c.l.b16 %v1554
        %v1964 = vunpack.c.l.b16 %v1555
        %v1965 = vunpack.c.l.b16 %v1556
        %v1966 = vunpack.c.l.b16 %v1557
        %v1967 = vunpack.c.l.b16 %v1558
        %v1968 = vunpack.c.l.b16 %v1559
        %v1969 = vunpack.c.l.b16 %v1560
        %v1970 = vunpack.c.l.b16 %v1561
        %v1971 = vunpack.c.l.b16 %v1562
        %v1972 = vunpack.c.l.b16 %v1563
        %v1973 = vunpack.c.l.b16 %v1564
        %v1974 = vunpack.c.l.b16 %v1565
        %v1975 = vunpack.c.l.b16 %v1566
        %v1976 = vunpack.c.l.b16 %v1567
        %v1977 = vunpack.c.l.b16 %v1568
        %v1978 = vunpack.c.l.b16 %v1569
        %v1979 = vunpack.c.l.b16 %v1570
        %v1980 = vunpack.c.l.b16 %v1571
        %v1981 = vunpack.c.l.b16 %v1572
        %v1982 = vunpack.c.l.b16 %v1573
        %v1983 = vunpack.c.l.b16 %v1574
        %v1984 = vunpack.c.l.b16 %v1575
        %v1985 = vunpack.c.l.b16 %v1576
        %v1986 = vunpack.c.l.b16 %v1577
        %v1987 = vunpack.c.l.b16 %v1578
        %v1988 = vpack.c.b16 %v1953, %v1952
        %v1989 = vpack.c.b16 %v1955, %v1954
        %v1990 = vpack.c.b16 %v1957, %v1956
        %v1991 = vpack.c.b16 %v1959, %v1958
        %v1992 = vpack.c.b16 %v1961, %v1960
        %v1993 = vpack.c.b16 %v1963, %v1962
        %v1994 = vpack.c.b16 %v1965, %v1964
        %v1995 = vpack.c.b16 %v1967, %v1966
        %v1996 = vpack.c.b16 %v1969, %v1968
        %v1997 = vpack.c.b16 %v1971, %v1970
        %v1998 = vpack.c.b16 %v1973, %v1972
        %v1999 = vpack.c.b16 %v1975, %v1974
        %v2000 = vpack.c.b16 %v1977, %v1976
        %v2001 = vpack.c.b16 %v1979, %v1978
        %v2002 = vpack.c.b16 %v1981, %v1980
        %v2003 = vpack.c.b16 %v1983, %v1982
        %v2004 = vpack.c.b16 %v1985, %v1984
        %v2005 = vpack.c.b16 %v1987, %v1986
        %v2025 = vsel %vm539, %v1906, 0
        %v2028 = vsel %vm539, %v1909, 0
        %v2031 = vsel %vm539, %v1912, 0
        %v2034 = vsel %vm539, %v1915, 0
        %2036 = vmatprep.subr.bf16.mxu0 0
        %2037 = vmatpush1.bf16.msra.mxu0 %v1988
        %2038 = vmatprep.subr.bf16.mxu0 0
        %2039 = vmatpush1.bf16.msra.mxu0 %v1989
        %2040 = vmatprep.subr.bf16.mxu0 0
        %2041 = vmatpush1.bf16.msra.mxu0 %v1990
        %2042 = vmatprep.subr.bf16.mxu0 0
        %2043 = vmatpush1.bf16.msra.mxu0 %v1991
        %2044 = vmatprep.subr.bf16.mxu0 0
        %2045 = vmatpush1.bf16.msra.mxu0 %v1992
        %2046 = vmatprep.subr.bf16.mxu0 0
        %2047 = vmatpush1.bf16.msra.mxu0 %v1993
        %2048 = vmatprep.subr.bf16.mxu0 0
        %2049 = vmatpush1.bf16.msra.mxu0 %v1994
        %2050 = vmatprep.subr.bf16.mxu0 0
        %2051 = vmatpush1.bf16.msra.mxu0 %v1995
        %2052 = vmatprep.subr.bf16.mxu0 0
        %2053 = vmatpush1.bf16.msra.mxu0 %v1996
        %2054 = vmatprep.subr.bf16.mxu0 0
        %2055 = vmatpush1.bf16.msra.mxu0 %v1997
        %2056 = vmatprep.subr.bf16.mxu0 0
        %2057 = vmatpush1.bf16.msra.mxu0 %v1998
        %2058 = vmatprep.subr.bf16.mxu0 0
        %2059 = vmatpush1.bf16.msra.mxu0 %v1999
        %2060 = vmatprep.subr.bf16.mxu0 0
        %2061 = vmatpush1.bf16.msra.mxu0 %v2000
        %2062 = vmatprep.subr.bf16.mxu0 0
        %2063 = vmatpush1.bf16.msra.mxu0 %v2001
        %2064 = vmatprep.subr.bf16.mxu0 0
        %2065 = vmatpush1.bf16.msra.mxu0 %v2002
        %2066 = vmatprep.subr.bf16.mxu0 0
        %2067 = vmatpush1.bf16.msra.mxu0 %v2003
        %2068 = vmatprep.mubr.bf16.mxu0 %v1905
        %2069 = vmatmul.mubr.bf16.gmra.mrb[0].mxu0 %v1904
        %v2070 = vpop.f32.mrb[0].mxu0
        %v2071 = vadd.f32 0.0, %v2070
        %v2072 = vpop.f32.mrb[0].mxu0
        %v2073 = vpop.f32.mrb[0].mxu0
        %v2074 = vadd.f32 0.0, %v2073
        %v2075 = vpop.f32.mrb[0].mxu0
        %2076 = vmatprep.mubr.bf16.mxu0 %v1908
        %2077 = vmatmul.mubr.bf16.gmra.mrb[0].mxu0 %v1907
        %v2078 = vpop.f32.mrb[0].mxu0
        %v2079 = vadd.f32 0.0, %v2078
        %v2080 = vpop.f32.mrb[0].mxu0
        %v2081 = vpop.f32.mrb[0].mxu0
        %v2082 = vadd.f32 0.0, %v2081
        %v2083 = vpop.f32.mrb[0].mxu0
        %2084 = vmatprep.mubr.bf16.mxu0 %v1911
        %2085 = vmatmul.mubr.bf16.gmra.mrb[0].mxu0 %v1910
        %v2086 = vpop.f32.mrb[0].mxu0
        %v2087 = vadd.f32 0.0, %v2086
        %v2088 = vpop.f32.mrb[0].mxu0
        %v2089 = vpop.f32.mrb[0].mxu0
        %v2090 = vadd.f32 0.0, %v2089
        %v2091 = vpop.f32.mrb[0].mxu0
        %2092 = vmatprep.mubr.bf16.mxu0 %v1914
        %2093 = vmatmul.mubr.bf16.gmra.mrb[0].mxu0 %v1913
        %v2094 = vpop.f32.mrb[0].mxu0
        %v2095 = vadd.f32 0.0, %v2094
        %v2096 = vpop.f32.mrb[0].mxu0
        %v2097 = vpop.f32.mrb[0].mxu0
        %v2098 = vadd.f32 0.0, %v2097
        %v2099 = vpop.f32.mrb[0].mxu0
        %2100 = vdwg.mxu0
        %2101 = vmatprep.subr.bf16.mxu0 0
        %2102 = vmatpush1.bf16.msra.mxu0 %v2004
        %2103 = vmatprep.subr.bf16.mxu0 0
        %2104 = vmatpush1.bf16.msra.mxu0 %v2005
        %2105 = vmatprep.subr.bf16.mxu0 0
        %2106 = vmatpush1.bf16.msra.mxu0 0
        %2107 = vmatprep.subr.bf16.mxu0 0
        %2108 = vmatpush1.bf16.msra.mxu0 0
        %2109 = vmatprep.subr.bf16.mxu0 0
        %2110 = vmatpush1.bf16.msra.mxu0 0
        %2111 = vmatprep.subr.bf16.mxu0 0
        %2112 = vmatpush1.bf16.msra.mxu0 0
        %2113 = vmatprep.subr.bf16.mxu0 0
        %2114 = vmatpush1.bf16.msra.mxu0 0
        %2115 = vmatprep.subr.bf16.mxu0 0
        %2116 = vmatpush1.bf16.msra.mxu0 0
        %2117 = vmatprep.subr.bf16.mxu0 0
        %2118 = vmatpush1.bf16.msra.mxu0 0
        %2119 = vmatprep.subr.bf16.mxu0 0
        %2120 = vmatpush1.bf16.msra.mxu0 0
        %2121 = vmatprep.subr.bf16.mxu0 0
        %2122 = vmatpush1.bf16.msra.mxu0 0
        %2123 = vmatprep.subr.bf16.mxu0 0
        %2124 = vmatpush1.bf16.msra.mxu0 0
        %2125 = vmatprep.subr.bf16.mxu0 0
        %2126 = vmatpush1.bf16.msra.mxu0 0
        %2127 = vmatprep.subr.bf16.mxu0 0
        %2128 = vmatpush1.bf16.msra.mxu0 0
        %2129 = vmatprep.subr.bf16.mxu0 0
        %2130 = vmatpush1.bf16.msra.mxu0 0
        %2131 = vmatprep.subr.bf16.mxu0 0
        %2132 = vmatpush1.bf16.msra.mxu0 0
        %2133 = vmatprep.mubr.bf16.mxu0 0
        %2134 = vmatmul.mubr.bf16.gmra.mrb[0].mxu0 %v2025
        %v2135 = vpop.f32.mrb[0].mxu0
        %v2136 = vadd.f32 %v2071, %v2135
        %v2137 = vpop.f32.mrb[0].mxu0
        %v2138 = vpop.f32.mrb[0].mxu0
        %v2139 = vadd.f32 %v2074, %v2138
        %v2140 = vpop.f32.mrb[0].mxu0
        %2141 = vmatprep.mubr.bf16.mxu0 0
        %2142 = vmatmul.mubr.bf16.gmra.mrb[0].mxu0 %v2028
        %v2143 = vpop.f32.mrb[0].mxu0
        %v2144 = vadd.f32 %v2079, %v2143
        %v2145 = vpop.f32.mrb[0].mxu0
        %v2146 = vpop.f32.mrb[0].mxu0
        %v2147 = vadd.f32 %v2082, %v2146
        %v2148 = vpop.f32.mrb[0].mxu0
        %2149 = vmatprep.mubr.bf16.mxu0 0
        %2150 = vmatmul.mubr.bf16.gmra.mrb[0].mxu0 %v2031
        %v2151 = vpop.f32.mrb[0].mxu0
        %v2152 = vadd.f32 %v2087, %v2151
        %v2153 = vpop.f32.mrb[0].mxu0
        %v2154 = vpop.f32.mrb[0].mxu0
        %v2155 = vadd.f32 %v2090, %v2154
        %v2156 = vpop.f32.mrb[0].mxu0
        %2157 = vmatprep.mubr.bf16.mxu0 0
        %2158 = vmatmul.mubr.bf16.gmra.mrb[0].mxu0 %v2034
        %v2159 = vpop.f32.mrb[0].mxu0
        %v2160 = vadd.f32 %v2095, %v2159
        %v2161 = vpop.f32.mrb[0].mxu0
        %v2162 = vpop.f32.mrb[0].mxu0
        %v2163 = vadd.f32 %v2098, %v2162
        %v2164 = vpop.f32.mrb[0].mxu0
        %2165 = vdwg.mxu0
        %v2167 = vlaneseq
        %v2168 = vshrl.u32 %v2167, 7
        %v2169 = vsub.s32 0, %v2168
        %v2170 = vrot.slane %v1579, %v2169
        %v2172 = vmul.f32 %v2136, %v2170
        %v2173 = vmul.f32 %v2139, %v2170
        %v2174 = vmul.f32 %v2144, %v2170
        %v2175 = vmul.f32 %v2147, %v2170
        %v2176 = vmul.f32 %v2152, %v2170
        %v2177 = vmul.f32 %v2155, %v2170
        %v2178 = vmul.f32 %v2160, %v2170
        %v2179 = vmul.f32 %v2163, %v2170
        %v2181 = vlaneseq
        %v2182 = vshrl.u32 %v2181, 7
        %v2183 = vsub.s32 0, %v2182
        %v2184 = vrot.slane %v1580, %v2183
        %v2186 = vadd.f32 %v2172, %v2184
        %v2187 = vadd.f32 %v2173, %v2184
        %v2188 = vadd.f32 %v2174, %v2184
        %v2189 = vadd.f32 %v2175, %v2184
        %v2190 = vadd.f32 %v2176, %v2184
        %v2191 = vadd.f32 %v2177, %v2184
        %v2192 = vadd.f32 %v2178, %v2184
        %v2193 = vadd.f32 %v2179, %v2184
        %v2194 = vmax.f32 %v2186, 0.0
        %v2195 = vmax.f32 %v2187, 0.0
        %v2196 = vmax.f32 %v2188, 0.0
        %v2197 = vmax.f32 %v2189, 0.0
        %v2198 = vmax.f32 %v2190, 0.0
        %v2199 = vmax.f32 %v2191, 0.0
        %v2200 = vmax.f32 %v2192, 0.0
        %v2201 = vmax.f32 %v2193, 0.0
        %v2202 = vadd.f32 %v1535, %v2194
        %v2203 = vadd.f32 %v1536, %v2195
        %v2204 = vadd.f32 %v1537, %v2196
        %v2205 = vadd.f32 %v1538, %v2197
        %v2206 = vadd.f32 %v1539, %v2198
        %v2207 = vadd.f32 %v1540, %v2199
        %v2208 = vadd.f32 %v1541, %v2200
        %v2209 = vadd.f32 %v1542, %v2201
        %v2210 = vld [vmem:[%s453] sm:$0xff]
        %v2211 = vld [vmem:[%s453 + $0x8] sm:$0xff]
        %v2212 = vld [vmem:[%s453 + $0x10] sm:$0xff]
        %v2213 = vld [vmem:[%s453 + $0x18] sm:$0xff]
        %v2214 = vld [vmem:[%s453 + $0x20] sm:$0xff]
        %v2215 = vld [vmem:[%s453 + $0x28] sm:$0xff]
        %v2216 = vld [vmem:[%s453 + $0x30] sm:$0xff]
        %v2217 = vld [vmem:[%s453 + $0x38] sm:$0xff]
        %v2218 = vxor.u32 %v2210, 2147483648
        %v2219 = vxor.u32 %v2211, 2147483648
        %v2220 = vxor.u32 %v2212, 2147483648
        %v2221 = vxor.u32 %v2213, 2147483648
        %v2222 = vxor.u32 %v2214, 2147483648
        %v2223 = vxor.u32 %v2215, 2147483648
        %v2224 = vxor.u32 %v2216, 2147483648
        %v2225 = vxor.u32 %v2217, 2147483648
        %v2226 = vmul.f32 %v2218, 1.442695
        %v2227 = vpow.pop %v2226
        %v2228 = vmul.f32 %v2219, 1.442695
        %v2229 = vpow.pop %v2228
        %v2230 = vmul.f32 %v2220, 1.442695
        %v2231 = vpow.pop %v2230
        %v2232 = vmul.f32 %v2221, 1.442695
        %v2233 = vpow.pop %v2232
        %v2234 = vmul.f32 %v2222, 1.442695
        %v2235 = vpow.pop %v2234
        %v2236 = vmul.f32 %v2223, 1.442695
        %v2237 = vpow.pop %v2236
        %v2238 = vmul.f32 %v2224, 1.442695
        %v2239 = vpow.pop %v2238
        %v2240 = vmul.f32 %v2225, 1.442695
        %v2241 = vpow.pop %v2240
        %v2242 = vadd.f32 %v2227, 1.0
        %v2243 = vadd.f32 %v2229, 1.0
        %v2244 = vadd.f32 %v2231, 1.0
        %v2245 = vadd.f32 %v2233, 1.0
        %v2246 = vadd.f32 %v2235, 1.0
        %v2247 = vadd.f32 %v2237, 1.0
        %v2248 = vadd.f32 %v2239, 1.0
        %v2249 = vadd.f32 %v2241, 1.0
        %v2250 = vrcp.pop %v2242
        %v2251 = vmul.f32 1.0, %v2250
        %v2252 = vrcp.pop %v2243
        %v2253 = vmul.f32 1.0, %v2252
        %v2254 = vrcp.pop %v2244
        %v2255 = vmul.f32 1.0, %v2254
        %v2256 = vrcp.pop %v2245
        %v2257 = vmul.f32 1.0, %v2256
        %v2258 = vrcp.pop %v2246
        %v2259 = vmul.f32 1.0, %v2258
        %v2260 = vrcp.pop %v2247
        %v2261 = vmul.f32 1.0, %v2260
        %v2262 = vrcp.pop %v2248
        %v2263 = vmul.f32 1.0, %v2262
        %v2264 = vrcp.pop %v2249
        %v2265 = vmul.f32 1.0, %v2264
        %v2266 = vmul.f32 %v2202, %v2251
        %v2267 = vmul.f32 %v2203, %v2253
        %v2268 = vmul.f32 %v2204, %v2255
        %v2269 = vmul.f32 %v2205, %v2257
        %v2270 = vmul.f32 %v2206, %v2259
        %v2271 = vmul.f32 %v2207, %v2261
        %v2272 = vmul.f32 %v2208, %v2263
        %v2273 = vmul.f32 %v2209, %v2265
        %v2274 = vpack.c.bf16 %v2267, %v2266
        %v2275 = vpack.c.bf16 %v2269, %v2268
        %v2276 = vpack.c.bf16 %v2271, %v2270
        %v2277 = vpack.c.bf16 %v2273, %v2272
        %v2278 = vld [vmem:[%s10] sm:$0xf]
        %v2279 = vld [vmem:[%s10 + $0x4] sm:$0xf]
        %v2280 = vld [vmem:[%s10 + $0x8] sm:$0xf]
        %v2281 = vld [vmem:[%s10 + $0xc] sm:$0xf]
        %v2282 = vld [vmem:[%s11] sm:$0x1]
        %v2284 = vlaneseq
        %v2285 = vshrl.u32 %v2284, 7
        %v2286 = vsub.s32 0, %v2285
        %v2287 = vrot.slane %v2282, %v2286
        %v2293 = vunpack.c.l.b16 %v2278
        %v2294 = vunpack.c.l.b16 %v2279
        %v2295 = vunpack.c.l.b16 %v2280
        %v2296 = vunpack.c.l.b16 %v2281
        %v2297 = vpack.c.b16 %v2294, %v2293
        %v2298 = vpack.c.b16 %v2296, %v2295
        %v2302 = vsel %vm539, %v2274, 0
        %v2305 = vsel %vm539, %v2275, 0
        %v2308 = vsel %vm539, %v2276, 0
        %v2311 = vsel %vm539, %v2277, 0
        %2313 = vmatprep.subr.bf16.mxu0 0
        %2314 = vmatpush1.bf16.msra.mxu0 %v2297
        %2315 = vmatprep.subr.bf16.mxu0 0
        %2316 = vmatpush1.bf16.msra.mxu0 %v2298
        %2317 = vmatprep.subr.bf16.mxu0 0
        %2318 = vmatpush1.bf16.msra.mxu0 0
        %2319 = vmatprep.subr.bf16.mxu0 0
        %2320 = vmatpush1.bf16.msra.mxu0 0
        %2321 = vmatprep.subr.bf16.mxu0 0
        %2322 = vmatpush1.bf16.msra.mxu0 0
        %2323 = vmatprep.subr.bf16.mxu0 0
        %2324 = vmatpush1.bf16.msra.mxu0 0
        %2325 = vmatprep.subr.bf16.mxu0 0
        %2326 = vmatpush1.bf16.msra.mxu0 0
        %2327 = vmatprep.subr.bf16.mxu0 0
        %2328 = vmatpush1.bf16.msra.mxu0 0
        %2329 = vmatprep.subr.bf16.mxu0 0
        %2330 = vmatpush1.bf16.msra.mxu0 0
        %2331 = vmatprep.subr.bf16.mxu0 0
        %2332 = vmatpush1.bf16.msra.mxu0 0
        %2333 = vmatprep.subr.bf16.mxu0 0
        %2334 = vmatpush1.bf16.msra.mxu0 0
        %2335 = vmatprep.subr.bf16.mxu0 0
        %2336 = vmatpush1.bf16.msra.mxu0 0
        %2337 = vmatprep.subr.bf16.mxu0 0
        %2338 = vmatpush1.bf16.msra.mxu0 0
        %2339 = vmatprep.subr.bf16.mxu0 0
        %2340 = vmatpush1.bf16.msra.mxu0 0
        %2341 = vmatprep.subr.bf16.mxu0 0
        %2342 = vmatpush1.bf16.msra.mxu0 0
        %2343 = vmatprep.subr.bf16.mxu0 0
        %2344 = vmatpush1.bf16.msra.mxu0 0
        %2345 = vmatprep.mubr.bf16.mxu0 0
        %2346 = vmatmul.mubr.bf16.gmra.mrb[0].mxu0 %v2302
        %v2347 = vpop.f32.mrb[0].mxu0
        %v2348 = vadd.f32 %v2287, %v2347
        %v2349 = vpop.f32.mrb[0].mxu0
        %v2350 = vpop.f32.mrb[0].mxu0
        %v2351 = vadd.f32 %v2287, %v2350
        %v2352 = vpop.f32.mrb[0].mxu0
        %2353 = vmatprep.mubr.bf16.mxu0 0
        %2354 = vmatmul.mubr.bf16.gmra.mrb[0].mxu0 %v2305
        %v2355 = vpop.f32.mrb[0].mxu0
        %v2356 = vadd.f32 %v2287, %v2355
        %v2357 = vpop.f32.mrb[0].mxu0
        %v2358 = vpop.f32.mrb[0].mxu0
        %v2359 = vadd.f32 %v2287, %v2358
        %v2360 = vpop.f32.mrb[0].mxu0
        %2361 = vmatprep.mubr.bf16.mxu0 0
        %2362 = vmatmul.mubr.bf16.gmra.mrb[0].mxu0 %v2308
        %v2363 = vpop.f32.mrb[0].mxu0
        %v2364 = vadd.f32 %v2287, %v2363
        %v2365 = vpop.f32.mrb[0].mxu0
        %v2366 = vpop.f32.mrb[0].mxu0
        %v2367 = vadd.f32 %v2287, %v2366
        %v2368 = vpop.f32.mrb[0].mxu0
        %2369 = vmatprep.mubr.bf16.mxu0 0
        %2370 = vmatmul.mubr.bf16.gmra.mrb[0].mxu0 %v2311
        %v2371 = vpop.f32.mrb[0].mxu0
        %v2372 = vadd.f32 %v2287, %v2371
        %v2373 = vpop.f32.mrb[0].mxu0
        %v2374 = vpop.f32.mrb[0].mxu0
        %v2375 = vadd.f32 %v2287, %v2374
        %v2376 = vpop.f32.mrb[0].mxu0
        %2377 = vdwg.mxu0
        %2378 = vst.msk [vmem:[%s438] sm:$0xff] %vm539, %v2348
        %2379 = vst.msk [vmem:[%s438 + $0x8] sm:$0xff] %vm539, %v2351
        %2380 = vst.msk [vmem:[%s438 + $0x10] sm:$0xff] %vm539, %v2356
        %2381 = vst.msk [vmem:[%s438 + $0x18] sm:$0xff] %vm539, %v2359
        %2382 = vst.msk [vmem:[%s438 + $0x20] sm:$0xff] %vm539, %v2364
        %2383 = vst.msk [vmem:[%s438 + $0x28] sm:$0xff] %vm539, %v2367
        %2384 = vst.msk [vmem:[%s438 + $0x30] sm:$0xff] %vm539, %v2372
        %2385 = vst.msk [vmem:[%s438 + $0x38] sm:$0xff] %vm539, %v2375
        %s2386 = sand.u32 %s303, 1
        %s2387 = scalar_lea.sflag [#allocation4], %s2386
        %s2388 = sand.u32 %s303, 1
        %s2389 = smul.addr %s2388, 64
        %s2390 = scalar_lea.vmem [#allocation3], %s2389
        // Predicated region
        $region69: #{danet_head.5} parent=67 // pred_check
          %p2391 = pneg %p313
        $region70: #{danet_head.5} parent=67 // pred_check_branch
          %2393 = sbr.rel (%p2391) target = $region72
        $region71: #{danet_head.5} parent=67 // pred_region
          %s2395 = ssub.s32 1024, 1024
          %2396 = vsyncadd %s2387, %s2395
          %s2397 = smul.addr %s28, 8
          %s2398 = smul.addr %s2397, 128
          %s2399 = scalar_lea.hbm %s12, %s2398
          %s2400 = sshll.u32 %s2390, 4
          %s2401 = int_to_ptr.vmem [resolvable:$true] %s2400
          %2406 = dma.vmem_to_hbm [thread:$0]  %s2401, 1024, %s2399, %s2387, 128, 128, 8
        $region72: #{danet_head.5} parent=67 // pred_fallthru
          _
      $region68: #{danet_head.5} parent=5 // pred_fallthru
        _
      %p2407 = scmp.le.s32.totalorder 2, %s23
      // Predicated region
      $region73: #{danet_head.5} parent=5 // pred_check
        %p2408 = pneg %p2407
      $region74: #{danet_head.5} parent=5 // pred_check_branch
        %2410 = sbr.rel (%p2408) target = $region76
      $region75: #{danet_head.5} parent=5 // pred_region
        %s2411 = ssub.s32 %s23, 2
        // Predicated region
        $region77: #{danet_head.5} parent=75 // pred_check
          %p2412 = pneg %p319
        $region78: #{danet_head.5} parent=75 // pred_check_branch
          %2414 = sbr.rel (%p2412) target = $region80
        $region79: #{danet_head.5} parent=75 // pred_region
          %s2415 = sand.u32 %s304, 1
          %s2416 = scalar_lea.sflag [#allocation4], %s2415
          %s2417 = sand.u32 %s304, 1
          %s2418 = smul.addr %s2417, 64
          %s2419 = scalar_lea.vmem [#allocation3], %s2418
          %2420 = dma.done %s2416, 1024
        $region80: #{danet_head.5} parent=75 // pred_fallthru
          _
      $region76: #{danet_head.5} parent=5 // pred_fallthru
        _
    $region6: #{danet_head.5} parent=1 // loop_footer
      %s27 = sadd.s32 1, %s23
    $region7: #{danet_head.5} parent=1 // loop_footer_branch
      %22 = sbr.rel target = $region3
    $region8: #{danet_head.5} parent=1 // loop_exit
      _
    %2421 = vsyncpa [#allocation4], 1
    %s2422 = scalar_lea.sflag [#allocation4], 1
    %2423 = vsyncpa %s2422, 1

</llo_original>
